<compile_context>
chip_gen: v5e
topology: v5e:2x2
jax: 0.10.0
libtpu: 0.0.40
codegen_flags: <defaults>
</compile_context>

<pallas_src>
import functools
import math

import numpy as np
import jax
import jax.numpy as jnp
from jax import lax
from jax.experimental import pallas as pl
from jax.experimental.pallas import tpu as pltpu


_SQRT_HALF = 0.7071067811865476  # 1/sqrt(2)


def _gelu_exact(x):
    # nn.GELU() default = exact erf formulation, evaluated in f32.
    return 0.5 * x * (1.0 + lax.erf(x * _SQRT_HALF))


def _round_up(x, m):
    return pl.cdiv(x, m) * m


def _pad2d(a, rows, cols):
    pr, pc = rows - a.shape[0], cols - a.shape[1]
    if pr == 0 and pc == 0:
        return a
    return jnp.pad(a, ((0, pr), (0, pc)))


def _pad_bias(b, n):
    if b.shape[0] != n:
        b = jnp.pad(b, ((0, n - b.shape[0]),))
    return b.reshape(1, n)


# ----------------------------------------------------------------------------- kernels


def _mlp_kernel_resident(x_ref, w1_ref, b1_ref, w2_ref, b2_ref, o_ref, *, compute_dtype):
    """Weights VMEM-resident (constant index maps); one token tile per grid step."""
    x = x_ref[...].astype(compute_dtype)
    h = jnp.dot(x, w1_ref[...], preferred_element_type=jnp.float32)
    h = _gelu_exact(h + b1_ref[...].astype(jnp.float32))
    y = jnp.dot(h.astype(compute_dtype), w2_ref[...], preferred_element_type=jnp.float32)
    o_ref[...] = (y + b2_ref[...].astype(jnp.float32)).astype(o_ref.dtype)


def _mlp_kernel_stream(x_ref, w1_ref, b1_ref, w2_ref, b2_ref, o_ref, *maybe_acc,
                       compute_dtype):
    """Hidden dim streamed as the reduction axis k.  If no scratch ref is passed, o_ref
    (f32) doubles as the accumulator."""
    acc_ref = maybe_acc[0] if maybe_acc else o_ref
    k = pl.program_id(1)

    @pl.when(k == 0)
    def _():
        acc_ref[...] = jnp.zeros_like(acc_ref)

    x = x_ref[...].astype(compute_dtype)
    h = jnp.dot(x, w1_ref[...], preferred_element_type=jnp.float32)
    h = _gelu_exact(h + b1_ref[...].astype(jnp.float32))
    acc_ref[...] += jnp.dot(h.astype(compute_dtype), w2_ref[...],
                            preferred_element_type=jnp.float32)

    @pl.when(k == pl.num_programs(1) - 1)
    def _():
        y = acc_ref[...] + b2_ref[...].astype(jnp.float32)
        o_ref[...] = y.astype(o_ref.dtype)


# ----------------------------------------------------------------------------- wrapper


def mlp_pallas(x, w1, b1, w2, b2, *,
               tm=512,
               th_target=512,
               use_bf16_matmul=False,
               resident_vmem_budget_bytes=40 * 1024 * 1024,  # v7x-safe (64 MiB chip)
               vmem_limit_bytes=48 * 1024 * 1024,
               force_streaming=False):
    """MLP forward: gelu(x @ w1 + b1) @ w2 + b2; dropout(p=0) is the identity.

    Weights are stored transposed vs. torch nn.Linear: w1: (in, hidden), w2: (hidden, out).
    """
    orig_lead = x.shape[:-1]
    C_in = x.shape[-1]
    M = int(math.prod(orig_lead))
    hidden = w1.shape[1]
    C_out = w2.shape[1]

    out_dtype = x.dtype
    compute_dtype = jnp.bfloat16 if use_bf16_matmul else w1.dtype

    x_bytes = np.dtype(x.dtype).itemsize
    o_bytes = np.dtype(out_dtype).itemsize
    c_bytes = np.dtype(compute_dtype).itemsize
    b_bytes = np.dtype(b1.dtype).itemsize

    # Lane-dense feature padding (multiples of 128 -> unmasked vector stores).
    C_in_p = _round_up(C_in, 128)
    C_out_p = _round_up(C_out, 128)
    hidden_p = _round_up(hidden, 128)

    # Token tile: never larger than M (rounded to the sublane), and prefer >=2 parallel
    # tiles so v7x's two TensorCores both get work (no-op on v5e/v6e).
    tm = max(8, min(tm, _round_up(M, 8)))
    while tm > 256 and pl.cdiv(M, tm) < 2:
        tm = max(256, _round_up(tm // 2, 8))

    # Resident-weight feasibility: 2x for (possible) double-buffer allocation of the
    # weights plus token-tile IO and the f32 intermediates.
    def resident_bytes(tm_):
        weights = (C_in_p * hidden_p + hidden_p * C_out_p) * c_bytes
        biases = (hidden_p + C_out_p) * b_bytes
        io = 2 * tm_ * C_in_p * x_bytes + 2 * tm_ * C_out_p * o_bytes
        inter = tm_ * hidden_p * 4 + 2 * tm_ * C_out_p * 4
        return 2 * (weights + biases) + io + inter

    use_resident = (not force_streaming) and \
        resident_bytes(tm) <= resident_vmem_budget_bytes

    if use_resident:
        nk, th = 1, hidden_p
    else:
        # Hidden-dim streaming: pick the hidden tile so padding is at most one 128-lane
        # block per slice (old code could pad by up to th-128 columns).
        nk = max(1, pl.cdiv(hidden_p, th_target))
        th = _round_up(pl.cdiv(hidden_p, nk), 128)
        hidden_p = nk * th

        # Keep the per-step working set inside the VMEM budget (3-deep weight buffers).
        def stream_bytes(tm_):
            weights = 3 * (C_in_p * th + th * C_out_p) * c_bytes
            biases = 2 * (th + C_out_p) * b_bytes
            io = 2 * tm_ * C_in_p * x_bytes + 2 * tm_ * C_out_p * o_bytes
            return weights + biases + io + tm_ * C_out_p * 4 + tm_ * th * 4

        while tm > 256 and stream_bytes(tm) > resident_vmem_budget_bytes:
            tm = max(256, _round_up(tm // 2, 8))

    M_p = _round_up(M, tm)
    n_i = M_p // tm

    # Pad operands (conditional: no copies when already aligned).  Zero padding is exact
    # (gelu(0)=0, zero weight rows/cols contribute nothing).
    x2 = _pad2d(x.reshape(M, C_in), M_p, C_in_p)
    w1p = _pad2d(w1, C_in_p, hidden_p)
    w2p = _pad2d(w2, hidden_p, C_out_p)
    if w1p.dtype != np.dtype(compute_dtype):
        w1p = w1p.astype(compute_dtype)
        w2p = w2p.astype(compute_dtype)
    b1p = _pad_bias(b1, hidden_p)
    b2p = _pad_bias(b2, C_out_p)

    # Advisory cost estimate with the real per-path HBM traffic.
    weight_bytes = (w1p.size + w2p.size) * c_bytes
    if use_resident:
        bytes_accessed = (x2.size * x_bytes + weight_bytes
                          + (b1p.size + b2p.size) * b_bytes + M_p * C_out_p * o_bytes)
    else:
        bytes_accessed = (x2.size * x_bytes + n_i * (weight_bytes + b1p.size * b_bytes)
                          + b2p.size * b_bytes + M_p * C_out_p * o_bytes)
    cost = pl.CostEstimate(
        flops=2 * M_p * hidden_p * (C_in_p + C_out_p),
        transcendentals=M_p * hidden_p,
        bytes_accessed=int(bytes_accessed),
    )

    if use_resident:
        kernel = functools.partial(_mlp_kernel_resident, compute_dtype=compute_dtype)
        grid_spec = pltpu.PrefetchScalarGridSpec(
            num_scalar_prefetch=0,
            grid=(n_i,),
            in_specs=[
                pl.BlockSpec((tm, C_in_p), lambda i: (i, 0)),           # x token tile
                pl.BlockSpec((C_in_p, hidden_p), lambda i: (0, 0)),     # W1 (resident)
                pl.BlockSpec((1, hidden_p), lambda i: (0, 0)),          # b1 (resident)
                pl.BlockSpec((hidden_p, C_out_p), lambda i: (0, 0)),    # W2 (resident)
                pl.BlockSpec((1, C_out_p), lambda i: (0, 0)),           # b2 (resident)
            ],
            out_specs=pl.BlockSpec((tm, C_out_p), lambda i: (i, 0)),
            scratch_shapes=[],
        )
        dim_sem = ("parallel",)
    else:
        kernel = functools.partial(_mlp_kernel_stream, compute_dtype=compute_dtype)
        acc_in_out = np.dtype(out_dtype) == np.dtype(np.float32)
        scratch = [] if acc_in_out else [pltpu.VMEM((tm, C_out_p), jnp.float32)]
        wbuf = pl.Buffered(3) if nk >= 3 else None  # deeper buffering for weight slices
        grid_spec = pltpu.PrefetchScalarGridSpec(
            num_scalar_prefetch=0,
            grid=(n_i, nk),
            in_specs=[
                pl.BlockSpec((tm, C_in_p), lambda i, k: (i, 0)),        # x tile (resident over k)
                pl.BlockSpec((C_in_p, th), lambda i, k: (0, k),
                             pipeline_mode=wbuf),                       # W1 hidden slice
                pl.BlockSpec((1, th), lambda i, k: (0, k)),             # b1 hidden slice
                pl.BlockSpec((th, C_out_p), lambda i, k: (k, 0),
                             pipeline_mode=wbuf),                       # W2 hidden slice
                pl.BlockSpec((1, C_out_p), lambda i, k: (0, 0)),        # b2
            ],
            out_specs=pl.BlockSpec((tm, C_out_p), lambda i, k: (i, 0)),
            scratch_shapes=scratch,
        )
        dim_sem = ("parallel", "arbitrary")

    out = pl.pallas_call(
        kernel,
        out_shape=jax.ShapeDtypeStruct((M_p, C_out_p), out_dtype),
        grid_spec=grid_spec,
        compiler_params=pltpu.CompilerParams(
            dimension_semantics=dim_sem,
            vmem_limit_bytes=vmem_limit_bytes,
        ),
        cost_estimate=cost,
    )(x2, w1p, b1p, w2p, b2p)

    return out[:M, :C_out].reshape(*orig_lead, C_out)


def mlp_reference(x, w1, b1, w2, b2):
    h = jnp.einsum("bnc,ch->bnh", x, w1) + b1
    h = jax.nn.gelu(h, approximate=False)
    return jnp.einsum("bnh,ho->bno", h, w2) + b2


if __name__ == "__main__":
    # Small but non-trivial shapes: M padding (400 tokens), feature padding
    # (192->256, 384->512 resident / 384 streaming, 160->256), both code paths.
    B, N = 2, 200
    in_features, hidden_features, out_features = 192, 384, 160

    key = jax.random.PRNGKey(0)
    kx, k1, k2, k3, k4 = jax.random.split(key, 5)
    x = jax.random.normal(kx, (B, N, in_features), dtype=jnp.float32)
    # Deterministic synthetic parameters (stored transposed vs torch nn.Linear).
    w1 = jax.random.normal(k1, (in_features, hidden_features), jnp.float32) * 0.02
    b1 = jax.random.normal(k2, (hidden_features,), jnp.float32) * 0.02
    w2 = jax.random.normal(k3, (hidden_features, out_features), jnp.float32) * 0.02
    b2 = jax.random.normal(k4, (out_features,), jnp.float32) * 0.02

    y_ref = mlp_reference(x, w1, b1, w2, b2)

    # 1) Resident-weight fast path (default).
    y = jax.block_until_ready(mlp_pallas(x, w1, b1, w2, b2))
    assert y.shape == (B, N, out_features)
    err = jnp.max(jnp.abs(y - y_ref))
    assert jnp.allclose(y, y_ref, atol=1e-4, rtol=1e-4), f"resident path mismatch (max err {err})"

    # 2) Streaming fallback (forced), 3 hidden slices, f32 output accumulated in o_ref.
    y_s = jax.block_until_ready(
        mlp_pallas(x, w1, b1, w2, b2, th_target=128, force_streaming=True))
    err_s = jnp.max(jnp.abs(y_s - y_ref))
    assert jnp.allclose(y_s, y_ref, atol=1e-4, rtol=1e-4), f"streaming path mismatch (max err {err_s})"

    # 3) Streaming path with bf16 params/activations (exercises the f32 scratch accumulator).
    xb = x.astype(jnp.bfloat16)
    y_b = jax.block_until_ready(
        mlp_pallas(xb, w1.astype(jnp.bfloat16), b1.astype(jnp.bfloat16),
                   w2.astype(jnp.bfloat16), b2.astype(jnp.bfloat16),
                   th_target=128, force_streaming=True))
    err_b = jnp.max(jnp.abs(y_b.astype(jnp.float32) - y_ref))
    assert err_b < 3e-2, f"bf16 streaming path mismatch (max err {err_b})"

    print("KERNEL_OK")
</pallas_src>

<mosaic_0001>
module attributes {stable_mosaic.version = 11 : i64} {
  func.func @_mlp_kernel_resident(%arg0: i32, %arg1: memref<256x256xf32, #tpu.memory_space<vmem>>, %arg2: memref<256x384xf32, #tpu.memory_space<vmem>>, %arg3: memref<1x384xf32, #tpu.memory_space<vmem>>, %arg4: memref<384x256xf32, #tpu.memory_space<vmem>>, %arg5: memref<1x256xf32, #tpu.memory_space<vmem>>, %arg6: memref<256x256xf32, #tpu.memory_space<vmem>>) attributes {dimension_semantics = [#tpu.dimension_semantics<parallel>], iteration_bounds = array<i64: 2>, scalar_prefetch = 0 : i64, scratch_operands = 0 : i64, tpu.core_type = #tpu.core_type<tc>, window_params = [{transform_indices = @transform_0, window_bounds = array<i64: 256, 256>}, {pipeline_mode = #tpu.pipeline_mode<synchronous>, transform_indices = @transform_1, window_bounds = array<i64: 256, 384>}, {pipeline_mode = #tpu.pipeline_mode<synchronous>, transform_indices = @transform_2, window_bounds = array<i64: 1, 384>}, {pipeline_mode = #tpu.pipeline_mode<synchronous>, transform_indices = @transform_3, window_bounds = array<i64: 384, 256>}, {pipeline_mode = #tpu.pipeline_mode<synchronous>, transform_indices = @transform_4, window_bounds = array<i64: 1, 256>}, {transform_indices = @transform_5, window_bounds = array<i64: 256, 256>}]} {
    %c0 = arith.constant 0 : index
    %c0_0 = arith.constant 0 : index
    %0 = vector.load %arg1[%c0, %c0_0] : memref<256x256xf32, #tpu.memory_space<vmem>>, vector<256x256xf32>
    %c0_1 = arith.constant 0 : index
    %c0_2 = arith.constant 0 : index
    %1 = vector.load %arg2[%c0_1, %c0_2] : memref<256x384xf32, #tpu.memory_space<vmem>>, vector<256x384xf32>
    %cst = arith.constant dense<0.000000e+00> : vector<256x384xf32>
    %2 = tpu.matmul %0, %1, %cst {dimension_numbers = #tpu.dot_dimension_numbers<[1], [0], [0], [1], [0, 0, 1, 1], [], []>} : vector<256x256xf32>, vector<256x384xf32>, vector<256x384xf32> -> vector<256x384xf32>
    %c0_3 = arith.constant 0 : index
    %c0_4 = arith.constant 0 : index
    %3 = vector.load %arg3[%c0_3, %c0_4] : memref<1x384xf32, #tpu.memory_space<vmem>>, vector<1x384xf32>
    %4 = vector.broadcast %3 : vector<1x384xf32> to vector<256x384xf32>
    %5 = arith.addf %2, %4 : vector<256x384xf32>
    %cst_5 = arith.constant 5.000000e-01 : f32
    %6 = vector.broadcast %cst_5 : f32 to vector<256x384xf32>
    %7 = arith.mulf %6, %5 : vector<256x384xf32>
    %cst_6 = arith.constant 0.707106769 : f32
    %8 = vector.broadcast %cst_6 : f32 to vector<256x384xf32>
    %9 = arith.mulf %5, %8 : vector<256x384xf32>
    %10 = math.erf %9 : vector<256x384xf32>
    %cst_7 = arith.constant 1.000000e+00 : f32
    %11 = vector.broadcast %cst_7 : f32 to vector<256x384xf32>
    %12 = arith.addf %11, %10 : vector<256x384xf32>
    %13 = arith.mulf %7, %12 : vector<256x384xf32>
    %c0_8 = arith.constant 0 : index
    %c0_9 = arith.constant 0 : index
    %14 = vector.load %arg4[%c0_8, %c0_9] : memref<384x256xf32, #tpu.memory_space<vmem>>, vector<384x256xf32>
    %cst_10 = arith.constant dense<0.000000e+00> : vector<256x256xf32>
    %15 = tpu.matmul %13, %14, %cst_10 {dimension_numbers = #tpu.dot_dimension_numbers<[1], [0], [0], [1], [0, 0, 1, 1], [], []>} : vector<256x384xf32>, vector<384x256xf32>, vector<256x256xf32> -> vector<256x256xf32>
    %c0_11 = arith.constant 0 : index
    %c0_12 = arith.constant 0 : index
    %16 = vector.load %arg5[%c0_11, %c0_12] : memref<1x256xf32, #tpu.memory_space<vmem>>, vector<1x256xf32>
    %17 = vector.broadcast %16 : vector<1x256xf32> to vector<256x256xf32>
    %18 = arith.addf %15, %17 : vector<256x256xf32>
    %c0_13 = arith.constant 0 : index
    %c0_14 = arith.constant 0 : index
    %19 = vector.load %arg6[%c0_13, %c0_14] : memref<256x256xf32, #tpu.memory_space<vmem>>, vector<256x256xf32>
    tpu.vector_store %arg6[%c0_13, %c0_14], %18 {strides = array<i32>} : memref<256x256xf32, #tpu.memory_space<vmem>>, vector<256x256xf32>,
    return
  }
  func.func @transform_0(%arg0: i32) -> (i32, i32) {
    %c0_i32 = arith.constant 0 : i32
    %c0_i32_0 = arith.constant 0 : i32
    return %arg0, %c0_i32 : i32, i32
  }
  func.func @transform_1(%arg0: i32) -> (i32, i32) {
    %c0_i32 = arith.constant 0 : i32
    %c0_i32_0 = arith.constant 0 : i32
    %c0_i32_1 = arith.constant 0 : i32
    return %c0_i32, %c0_i32_0 : i32, i32
  }
  func.func @transform_2(%arg0: i32) -> (i32, i32) {
    %c0_i32 = arith.constant 0 : i32
    %c0_i32_0 = arith.constant 0 : i32
    %c0_i32_1 = arith.constant 0 : i32
    return %c0_i32, %c0_i32_0 : i32, i32
  }
  func.func @transform_3(%arg0: i32) -> (i32, i32) {
    %c0_i32 = arith.constant 0 : i32
    %c0_i32_0 = arith.constant 0 : i32
    %c0_i32_1 = arith.constant 0 : i32
    return %c0_i32, %c0_i32_0 : i32, i32
  }
  func.func @transform_4(%arg0: i32) -> (i32, i32) {
    %c0_i32 = arith.constant 0 : i32
    %c0_i32_0 = arith.constant 0 : i32
    %c0_i32_1 = arith.constant 0 : i32
    return %c0_i32, %c0_i32_0 : i32, i32
  }
  func.func @transform_5(%arg0: i32) -> (i32, i32) {
    %c0_i32 = arith.constant 0 : i32
    %c0_i32_0 = arith.constant 0 : i32
    return %arg0, %c0_i32 : i32, i32
  }
}

</mosaic_0001>

<llo_original>
// kernel: tpu_custom_call.1
$region0: #{tpu_custom_call.1}
  #allocation0 [shape = 'u32[]', space=smem, size = 0x4, offset = 0x4, fixed_abs, tag = 'smem constant byte address 0x4 - core index']
  #allocation1 [shape = 'u32[72,128]{1,0:T(1,128)}', space=vmem, size = 0x9000, scoped, tag = 'internal scratch']
  %s0 = inlined_call_operand.hbm [shape: f32[512,256], index: 0, kind: input, shape index: {}]
  %s1 = inlined_call_operand.hbm [shape: f32[256,384], index: 1, kind: input, shape index: {}]
  %s2 = inlined_call_operand.hbm [shape: f32[1,384], index: 2, kind: input, shape index: {}]
  %s3 = inlined_call_operand.hbm [shape: f32[384,256], index: 3, kind: input, shape index: {}]
  %s4 = inlined_call_operand.vmem [shape: f32[1,256], index: 4, kind: input, shape index: {}]
  %s5 = inlined_call_operand.hbm [shape: f32[512,256], index: 5, kind: output, shape index: {}]
  %s6 = sld [smem:[#allocation0]]
  $region69: #{tpu_custom_call.1} parent=0
    _
  %s8 = ssub.s32 1, %s6
  %s9 = scalar_select 0, %s8, %s6
  $region1: #{tpu_custom_call.1} parent=0
    #allocation2 [shape = 'u8[524288]{0}', space=vmem, size = 0x80000, scoped, tag = 'input window, operand 0']
    #allocation3 [shape = 's32[2]{0}', space=sflag, size = 0x8, scoped, tag = 'scoped memory for tpu_custom_call.1']
    #allocation4 [shape = 's32[2]{0}', space=sflag, size = 0x8, scoped, tag = 'scoped memory for tpu_custom_call.1']
    #allocation5 [shape = 'u8[393216]{0}', space=vmem, size = 0x60000, scoped, tag = 'input window, operand 1, single buffered']
    #allocation6 [shape = 's32[1]{0}', space=sflag, size = 0x4, scoped, tag = 'scoped memory for tpu_custom_call.1']
    #allocation7 [shape = 'u8[1536]{0}', space=vmem, size = 0x800, scoped, tag = 'input window, operand 2, single buffered']
    #allocation8 [shape = 'u8[393216]{0}', space=vmem, size = 0x60000, scoped, tag = 'input window, operand 3, single buffered']
    #allocation9 [shape = 's32[1]{0}', space=sflag, size = 0x4, scoped, tag = 'scoped memory for tpu_custom_call.1']
    #allocation10 [shape = 'u8[524288]{0}', space=vmem, size = 0x80000, scoped, tag = 'output window, operand 0']
    %10 = vsyncpa [#allocation3], 0
    %s11 = scalar_lea.sflag [#allocation3], 1
    %12 = vsyncpa %s11, 0
    %13 = vsyncpa [#allocation6], 0
    %14 = vsyncpa [#allocation9], 0
    %15 = vsyncpa [#allocation4], 0
    %s16 = scalar_lea.sflag [#allocation4], 1
    %17 = vsyncpa %s16, 0
    loop: start=0, step=1, limit=4
    $region2: #{tpu_custom_call.1} parent=1 // loop_pre_header
      _
    $region3: #{tpu_custom_call.1} parent=1 // loop_header
      %s19 = sphi 0, %s23
      %p20 = scmp.ge.s32.totalorder %s19, 4
      %s29 = sphi 0, %s31
      %s32 = sphi 0, %s29
      %s33 = sphi 0, %s32
      %s49 = sphi 0, %s33
      %s53 = sphi 0, %s53
      %s55 = sphi 0, %s53
      %s56 = sphi 0, %s55
      %s70 = sphi 0, %s56
      %s74 = sphi 0, %s74
      %s76 = sphi 0, %s74
      %s77 = sphi 0, %s76
      %s91 = sphi 0, %s77
      %s95 = sphi 0, %s95
      %s97 = sphi 0, %s95
      %s98 = sphi 0, %s97
      %s112 = sphi 0, %s98
      %s116 = sphi 0, %s116
      %s118 = sphi 0, %s116
      %s119 = sphi 0, %s118
      %s133 = sphi 0, %s119
      %s139 = sphi 0, %s141
      %s142 = sphi 0, %s139
      %s143 = sphi 0, %s142
      %s159 = sphi 0, %s143
    $region4: #{tpu_custom_call.1} parent=1 // loop_header_branch
      %22 = sbr.rel (%p20) target = $region8
    $region5: #{tpu_custom_call.1} parent=1 // loop_body
      %s24 = ssub.s32 %s19, 1
      %s25 = ssub.s32 %s19, 2
      %s26 = sadd.s32 %s19, 1
      %s27 = ssub.s32 %s19, %s26
      %p28 = scmp.eq.s32.totalorder %s27, 0
      %s30 = sadd.s32 %s29, 1
      %s31 = scalar_select %p28, %s29, %s30
      %p34 = pneg %p28
      %p35 = scmp.eq.s32.totalorder %s19, 1
      %p36 = por %p34, %p35
      %p37 = scmp.ne.s32.totalorder %s29, %s32
      %p38 = scmp.eq.s32.totalorder %s19, 0
      %p39 = por %p37, %p38
      %p40 = scmp.ne.s32.totalorder %s29, %s32
      %p41 = scmp.eq.s32.totalorder %s24, 1
      %p42 = por %p40, %p41
      %p43 = scmp.ne.s32.totalorder %s32, %s33
      %p44 = scmp.eq.s32.totalorder %s24, 0
      %p45 = por %p43, %p44
      %p46 = scmp.ne.s32.totalorder %s32, %s33
      %p47 = scmp.eq.s32.totalorder %s25, 1
      %p48 = por %p46, %p47
      %p50 = scmp.ne.s32.totalorder %s33, %s49
      %p51 = scmp.eq.s32.totalorder %s25, 0
      %p52 = por %p50, %p51
      %s54 = sadd.s32 %s53, 1
      %p57 = scmp.eq.s32.totalorder %s19, 1
      %p58 = scmp.ne.s32.totalorder %s53, %s55
      %p59 = scmp.eq.s32.totalorder %s19, 0
      %p60 = por %p58, %p59
      %p61 = scmp.ne.s32.totalorder %s53, %s55
      %p62 = scmp.eq.s32.totalorder %s24, 1
      %p63 = por %p61, %p62
      %p64 = scmp.ne.s32.totalorder %s55, %s56
      %p65 = scmp.eq.s32.totalorder %s24, 0
      %p66 = por %p64, %p65
      %p67 = scmp.ne.s32.totalorder %s55, %s56
      %p68 = scmp.eq.s32.totalorder %s25, 1
      %p69 = por %p67, %p68
      %p71 = scmp.ne.s32.totalorder %s56, %s70
      %p72 = scmp.eq.s32.totalorder %s25, 0
      %p73 = por %p71, %p72
      %s75 = sadd.s32 %s74, 1
      %p78 = scmp.eq.s32.totalorder %s19, 1
      %p79 = scmp.ne.s32.totalorder %s74, %s76
      %p80 = scmp.eq.s32.totalorder %s19, 0
      %p81 = por %p79, %p80
      %p82 = scmp.ne.s32.totalorder %s74, %s76
      %p83 = scmp.eq.s32.totalorder %s24, 1
      %p84 = por %p82, %p83
      %p85 = scmp.ne.s32.totalorder %s76, %s77
      %p86 = scmp.eq.s32.totalorder %s24, 0
      %p87 = por %p85, %p86
      %p88 = scmp.ne.s32.totalorder %s76, %s77
      %p89 = scmp.eq.s32.totalorder %s25, 1
      %p90 = por %p88, %p89
      %p92 = scmp.ne.s32.totalorder %s77, %s91
      %p93 = scmp.eq.s32.totalorder %s25, 0
      %p94 = por %p92, %p93
      %s96 = sadd.s32 %s95, 1
      %p99 = scmp.eq.s32.totalorder %s19, 1
      %p100 = scmp.ne.s32.totalorder %s95, %s97
      %p101 = scmp.eq.s32.totalorder %s19, 0
      %p102 = por %p100, %p101
      %p103 = scmp.ne.s32.totalorder %s95, %s97
      %p104 = scmp.eq.s32.totalorder %s24, 1
      %p105 = por %p103, %p104
      %p106 = scmp.ne.s32.totalorder %s97, %s98
      %p107 = scmp.eq.s32.totalorder %s24, 0
      %p108 = por %p106, %p107
      %p109 = scmp.ne.s32.totalorder %s97, %s98
      %p110 = scmp.eq.s32.totalorder %s25, 1
      %p111 = por %p109, %p110
      %p113 = scmp.ne.s32.totalorder %s98, %s112
      %p114 = scmp.eq.s32.totalorder %s25, 0
      %p115 = por %p113, %p114
      %s117 = sadd.s32 %s116, 1
      %p120 = scmp.eq.s32.totalorder %s19, 1
      %p121 = scmp.ne.s32.totalorder %s116, %s118
      %p122 = scmp.eq.s32.totalorder %s19, 0
      %p123 = por %p121, %p122
      %p124 = scmp.ne.s32.totalorder %s116, %s118
      %p125 = scmp.eq.s32.totalorder %s24, 1
      %p126 = por %p124, %p125
      %p127 = scmp.ne.s32.totalorder %s118, %s119
      %p128 = scmp.eq.s32.totalorder %s24, 0
      %p129 = por %p127, %p128
      %p130 = scmp.ne.s32.totalorder %s118, %s119
      %p131 = scmp.eq.s32.totalorder %s25, 1
      %p132 = por %p130, %p131
      %p134 = scmp.ne.s32.totalorder %s119, %s133
      %p135 = scmp.eq.s32.totalorder %s25, 0
      %p136 = por %p134, %p135
      %s137 = ssub.s32 %s19, %s26
      %p138 = scmp.eq.s32.totalorder %s137, 0
      %s140 = sadd.s32 %s139, 1
      %s141 = scalar_select %p138, %s139, %s140
      %p144 = pneg %p138
      %p145 = scmp.eq.s32.totalorder %s19, 1
      %p146 = por %p144, %p145
      %p147 = scmp.ne.s32.totalorder %s139, %s142
      %p148 = scmp.eq.s32.totalorder %s19, 0
      %p149 = por %p147, %p148
      %p150 = scmp.ne.s32.totalorder %s139, %s142
      %p151 = scmp.eq.s32.totalorder %s24, 1
      %p152 = por %p150, %p151
      %p153 = scmp.ne.s32.totalorder %s142, %s143
      %p154 = scmp.eq.s32.totalorder %s24, 0
      %p155 = por %p153, %p154
      %p156 = scmp.ne.s32.totalorder %s142, %s143
      %p157 = scmp.eq.s32.totalorder %s25, 1
      %p158 = por %p156, %p157
      %p160 = scmp.ne.s32.totalorder %s143, %s159
      %p161 = scmp.eq.s32.totalorder %s25, 0
      %p162 = por %p160, %p161
      %p163 = scmp.le.s32.totalorder 1, %s19
      %p164 = scmp.lt.s32.totalorder %s19, 3
      %p165 = pnand %p163, %p164
      %p166 = pneg %p165
      // Predicated region
      $region9: #{tpu_custom_call.1} parent=5 // pred_check
        _
      $region10: #{tpu_custom_call.1} parent=5 // pred_check_branch
        %168 = sbr.rel (%p165) target = $region12
      $region11: #{tpu_custom_call.1} parent=5 // pred_region
        %s169 = ssub.s32 %s19, 1
        // Predicated region
        $region13: #{tpu_custom_call.1} parent=11 // pred_check
          %p170 = pneg %p66
        $region14: #{tpu_custom_call.1} parent=11 // pred_check_branch
          %172 = sbr.rel (%p170) target = $region16
        $region15: #{tpu_custom_call.1} parent=11 // pred_region
          %174 = vsyncadd [#allocation6], 0
          %s175 = sshll.u32 %s1, 4
          %s176 = int_to_ptr.hbm [resolvable:$true] %s175
          %s177 = sshll.u32 [#allocation5], 4
          %s178 = int_to_ptr.vmem [resolvable:$true] %s177
          %183 = dma.hbm_to_vmem [thread:$0]  %s176, 12288, %s178, [#allocation6], 384, 384, 24
        $region16: #{tpu_custom_call.1} parent=11 // pred_fallthru
          _
        // Predicated region
        $region17: #{tpu_custom_call.1} parent=11 // pred_check
          %p184 = pneg %p87
        $region18: #{tpu_custom_call.1} parent=11 // pred_check_branch
          %186 = sbr.rel (%p184) target = $region20
        $region19: #{tpu_custom_call.1} parent=11 // pred_region
          %188 = vsyncadd [#allocation6], 0
          %s190 = sshll.u32 %s2, 4
          %s191 = int_to_ptr.hbm [resolvable:$true] %s190
          %s192 = sshll.u32 [#allocation7], 4
          %s193 = int_to_ptr.vmem [resolvable:$true] %s192
          %195 = dma.hbm_to_vmem [thread:$0]  %s191, 48, %s193, [#allocation6]
        $region20: #{tpu_custom_call.1} parent=11 // pred_fallthru
          _
        // Predicated region
        $region21: #{tpu_custom_call.1} parent=11 // pred_check
          %p196 = pneg %p108
        $region22: #{tpu_custom_call.1} parent=11 // pred_check_branch
          %198 = sbr.rel (%p196) target = $region24
        $region23: #{tpu_custom_call.1} parent=11 // pred_region
          %200 = vsyncadd [#allocation9], 0
          %s201 = sshll.u32 %s3, 4
          %s202 = int_to_ptr.hbm [resolvable:$true] %s201
          %s203 = sshll.u32 [#allocation8], 4
          %s204 = int_to_ptr.vmem [resolvable:$true] %s203
          %209 = dma.hbm_to_vmem [thread:$0]  %s202, 12288, %s204, [#allocation9], 256, 256, 16
        $region24: #{tpu_custom_call.1} parent=11 // pred_fallthru
          _
        // Predicated region
        $region25: #{tpu_custom_call.1} parent=11 // pred_check
          %p210 = pneg %p129
        $region26: #{tpu_custom_call.1} parent=11 // pred_check_branch
          %212 = sbr.rel (%p210) target = $region28
        $region27: #{tpu_custom_call.1} parent=11 // pred_region
          _
        $region28: #{tpu_custom_call.1} parent=11 // pred_fallthru
          _
      $region12: #{tpu_custom_call.1} parent=5 // pred_fallthru
        _
      %p213 = scmp.lt.s32.totalorder %s19, 2
      // Predicated region
      $region29: #{tpu_custom_call.1} parent=5 // pred_check
        %p214 = pneg %p213
      $region30: #{tpu_custom_call.1} parent=5 // pred_check_branch
        %216 = sbr.rel (%p214) target = $region32
      $region31: #{tpu_custom_call.1} parent=5 // pred_region
        // Predicated region
        $region33: #{tpu_custom_call.1} parent=31 // pred_check
          %p217 = pneg %p39
        $region34: #{tpu_custom_call.1} parent=31 // pred_check_branch
          %219 = sbr.rel (%p217) target = $region36
        $region35: #{tpu_custom_call.1} parent=31 // pred_region
          %s220 = sand.u32 %s29, 1
          %s221 = scalar_lea.sflag [#allocation3], %s220
          %s222 = sand.u32 %s29, 1
          %s223 = smul.addr %s222, 512
          %s224 = scalar_lea.vmem [#allocation2], %s223
          %s225 = smul.u32 32, %s19
          %227 = vsyncadd %s221, 0
          %s228 = smul.addr %s225, 2
          %s229 = smul.addr %s228, 8
          %s230 = scalar_lea.hbm %s0, %s229
          %s231 = sshll.u32 %s230, 4
          %s232 = int_to_ptr.hbm [resolvable:$true] %s231
          %s233 = sshll.u32 %s224, 4
          %s234 = int_to_ptr.vmem [resolvable:$true] %s233
          %239 = dma.hbm_to_vmem [thread:$0]  %s232, 8192, %s234, %s221, 256, 256, 16
        $region36: #{tpu_custom_call.1} parent=31 // pred_fallthru
          _
      $region32: #{tpu_custom_call.1} parent=5 // pred_fallthru
        _
      %p240 = scmp.le.s32.totalorder 1, %s19
      %p241 = scmp.lt.s32.totalorder %s19, 3
      %p242 = pnand %p240, %p241
      %p243 = pneg %p242
      // Predicated region
      $region37: #{tpu_custom_call.1} parent=5 // pred_check
        _
      $region38: #{tpu_custom_call.1} parent=5 // pred_check_branch
        %245 = sbr.rel (%p242) target = $region40
      $region39: #{tpu_custom_call.1} parent=5 // pred_region
        %s246 = ssub.s32 %s19, 1
        %s247 = sand.u32 %s32, 1
        %s248 = scalar_lea.sflag [#allocation3], %s247
        %s249 = sand.u32 %s32, 1
        %s250 = smul.addr %s249, 512
        %s251 = scalar_lea.vmem [#allocation2], %s250
        // Predicated region
        $region41: #{tpu_custom_call.1} parent=39 // pred_check
          %p252 = pneg %p45
        $region42: #{tpu_custom_call.1} parent=39 // pred_check_branch
          %254 = sbr.rel (%p252) target = $region44
        $region43: #{tpu_custom_call.1} parent=39 // pred_region
          %256 = dma.done %s248, 8192
        $region44: #{tpu_custom_call.1} parent=39 // pred_fallthru
          _
        // Predicated region
        $region45: #{tpu_custom_call.1} parent=39 // pred_check
          %p257 = pneg %p66
        $region46: #{tpu_custom_call.1} parent=39 // pred_check_branch
          %259 = sbr.rel (%p257) target = $region48
        $region47: #{tpu_custom_call.1} parent=39 // pred_region
          %261 = dma.done [#allocation6], 12288
        $region48: #{tpu_custom_call.1} parent=39 // pred_fallthru
          _
        // Predicated region
        $region49: #{tpu_custom_call.1} parent=39 // pred_check
          %p262 = pneg %p87
        $region50: #{tpu_custom_call.1} parent=39 // pred_check_branch
          %264 = sbr.rel (%p262) target = $region52
        $region51: #{tpu_custom_call.1} parent=39 // pred_region
          %266 = dma.done [#allocation6], 48
        $region52: #{tpu_custom_call.1} parent=39 // pred_fallthru
          _
        // Predicated region
        $region53: #{tpu_custom_call.1} parent=39 // pred_check
          %p267 = pneg %p108
        $region54: #{tpu_custom_call.1} parent=39 // pred_check_branch
          %269 = sbr.rel (%p267) target = $region56
        $region55: #{tpu_custom_call.1} parent=39 // pred_region
          %271 = dma.done [#allocation9], 12288
        $region56: #{tpu_custom_call.1} parent=39 // pred_fallthru
          _
        %s272 = sand.u32 %s32, 1
        %s273 = scalar_lea.sflag [#allocation3], %s272
        %s274 = sand.u32 %s32, 1
        %s275 = smul.addr %s274, 512
        %s276 = scalar_lea.vmem [#allocation2], %s275
        %p277 = pneg %p45
        %p278 = pneg %p42
        %p279 = pneg %p66
        %p280 = pneg %p63
        %p281 = pneg %p87
        %p282 = pneg %p84
        %p283 = pneg %p108
        %p284 = pneg %p105
        %p285 = pneg %p129
        %p286 = pneg %p126
        %p287 = pneg %p155
        %p288 = pneg %p152
        %s289 = sand.u32 %s142, 1
        %s290 = scalar_lea.sflag [#allocation4], %s289
        %s291 = sand.u32 %s142, 1
        %s292 = smul.addr %s291, 512
        %s293 = scalar_lea.vmem [#allocation10], %s292
        %s294 = smul.u32 32, %s24
        %s295 = smul.u32 32, %s24
        %v296 = vld [vmem:[%s251] sm:$0xff]
        %v297 = vld [vmem:[%s251 + $0x8] sm:$0xff]
        %v298 = vld [vmem:[%s251 + $0x10] sm:$0xff]
        %v299 = vld [vmem:[%s251 + $0x18] sm:$0xff]
        %v300 = vld [vmem:[%s251 + $0x20] sm:$0xff]
        %v301 = vld [vmem:[%s251 + $0x28] sm:$0xff]
        %v302 = vld [vmem:[%s251 + $0x30] sm:$0xff]
        %v303 = vld [vmem:[%s251 + $0x38] sm:$0xff]
        %v304 = vld [vmem:[%s251 + $0x40] sm:$0xff]
        %v305 = vld [vmem:[%s251 + $0x48] sm:$0xff]
        %v306 = vld [vmem:[%s251 + $0x50] sm:$0xff]
        %v307 = vld [vmem:[%s251 + $0x58] sm:$0xff]
        %v308 = vld [vmem:[%s251 + $0x60] sm:$0xff]
        %v309 = vld [vmem:[%s251 + $0x68] sm:$0xff]
        %v310 = vld [vmem:[%s251 + $0x70] sm:$0xff]
        %v311 = vld [vmem:[%s251 + $0x78] sm:$0xff]
        %v312 = vld [vmem:[%s251 + $0x80] sm:$0xff]
        %v313 = vld [vmem:[%s251 + $0x88] sm:$0xff]
        %v314 = vld [vmem:[%s251 + $0x90] sm:$0xff]
        %v315 = vld [vmem:[%s251 + $0x98] sm:$0xff]
        %v316 = vld [vmem:[%s251 + $0xa0] sm:$0xff]
        %v317 = vld [vmem:[%s251 + $0xa8] sm:$0xff]
        %v318 = vld [vmem:[%s251 + $0xb0] sm:$0xff]
        %v319 = vld [vmem:[%s251 + $0xb8] sm:$0xff]
        %v320 = vld [vmem:[%s251 + $0xc0] sm:$0xff]
        %v321 = vld [vmem:[%s251 + $0xc8] sm:$0xff]
        %v322 = vld [vmem:[%s251 + $0xd0] sm:$0xff]
        %v323 = vld [vmem:[%s251 + $0xd8] sm:$0xff]
        %v324 = vld [vmem:[%s251 + $0xe0] sm:$0xff]
        %v325 = vld [vmem:[%s251 + $0xe8] sm:$0xff]
        %v326 = vld [vmem:[%s251 + $0xf0] sm:$0xff]
        %v327 = vld [vmem:[%s251 + $0xf8] sm:$0xff]
        %v328 = vld [vmem:[%s251 + $0x100] sm:$0xff]
        %v329 = vld [vmem:[%s251 + $0x108] sm:$0xff]
        %v330 = vld [vmem:[%s251 + $0x110] sm:$0xff]
        %v331 = vld [vmem:[%s251 + $0x118] sm:$0xff]
        %v332 = vld [vmem:[%s251 + $0x120] sm:$0xff]
        %v333 = vld [vmem:[%s251 + $0x128] sm:$0xff]
        %v334 = vld [vmem:[%s251 + $0x130] sm:$0xff]
        %v335 = vld [vmem:[%s251 + $0x138] sm:$0xff]
        %v336 = vld [vmem:[%s251 + $0x140] sm:$0xff]
        %v337 = vld [vmem:[%s251 + $0x148] sm:$0xff]
        %v338 = vld [vmem:[%s251 + $0x150] sm:$0xff]
        %v339 = vld [vmem:[%s251 + $0x158] sm:$0xff]
        %v340 = vld [vmem:[%s251 + $0x160] sm:$0xff]
        %v341 = vld [vmem:[%s251 + $0x168] sm:$0xff]
        %v342 = vld [vmem:[%s251 + $0x170] sm:$0xff]
        %v343 = vld [vmem:[%s251 + $0x178] sm:$0xff]
        %v344 = vld [vmem:[%s251 + $0x180] sm:$0xff]
        %v345 = vld [vmem:[%s251 + $0x188] sm:$0xff]
        %v346 = vld [vmem:[%s251 + $0x190] sm:$0xff]
        %v347 = vld [vmem:[%s251 + $0x198] sm:$0xff]
        %v348 = vld [vmem:[%s251 + $0x1a0] sm:$0xff]
        %v349 = vld [vmem:[%s251 + $0x1a8] sm:$0xff]
        %v350 = vld [vmem:[%s251 + $0x1b0] sm:$0xff]
        %v351 = vld [vmem:[%s251 + $0x1b8] sm:$0xff]
        %v352 = vld [vmem:[%s251 + $0x1c0] sm:$0xff]
        %v353 = vld [vmem:[%s251 + $0x1c8] sm:$0xff]
        %v354 = vld [vmem:[%s251 + $0x1d0] sm:$0xff]
        %v355 = vld [vmem:[%s251 + $0x1d8] sm:$0xff]
        %v356 = vld [vmem:[%s251 + $0x1e0] sm:$0xff]
        %v357 = vld [vmem:[%s251 + $0x1e8] sm:$0xff]
        %v358 = vld [vmem:[%s251 + $0x1f0] sm:$0xff]
        %v359 = vld [vmem:[%s251 + $0x1f8] sm:$0xff]
        %v360 = vld [vmem:[#allocation5] sm:$0xff]
        %v361 = vld [vmem:[#allocation5 + $0x8] sm:$0xff]
        %v362 = vld [vmem:[#allocation5 + $0x10] sm:$0xff]
        %v363 = vld [vmem:[#allocation5 + $0x18] sm:$0xff]
        %v364 = vld [vmem:[#allocation5 + $0x20] sm:$0xff]
        %v365 = vld [vmem:[#allocation5 + $0x28] sm:$0xff]
        %v366 = vld [vmem:[#allocation5 + $0x30] sm:$0xff]
        %v367 = vld [vmem:[#allocation5 + $0x38] sm:$0xff]
        %v368 = vld [vmem:[#allocation5 + $0x40] sm:$0xff]
        %v369 = vld [vmem:[#allocation5 + $0x48] sm:$0xff]
        %v370 = vld [vmem:[#allocation5 + $0x50] sm:$0xff]
        %v371 = vld [vmem:[#allocation5 + $0x58] sm:$0xff]
        %v372 = vld [vmem:[#allocation5 + $0x60] sm:$0xff]
        %v373 = vld [vmem:[#allocation5 + $0x68] sm:$0xff]
        %v374 = vld [vmem:[#allocation5 + $0x70] sm:$0xff]
        %v375 = vld [vmem:[#allocation5 + $0x78] sm:$0xff]
        %v376 = vld [vmem:[#allocation5 + $0x80] sm:$0xff]
        %v377 = vld [vmem:[#allocation5 + $0x88] sm:$0xff]
        %v378 = vld [vmem:[#allocation5 + $0x90] sm:$0xff]
        %v379 = vld [vmem:[#allocation5 + $0x98] sm:$0xff]
        %v380 = vld [vmem:[#allocation5 + $0xa0] sm:$0xff]
        %v381 = vld [vmem:[#allocation5 + $0xa8] sm:$0xff]
        %v382 = vld [vmem:[#allocation5 + $0xb0] sm:$0xff]
        %v383 = vld [vmem:[#allocation5 + $0xb8] sm:$0xff]
        %v384 = vld [vmem:[#allocation5 + $0xc0] sm:$0xff]
        %v385 = vld [vmem:[#allocation5 + $0xc8] sm:$0xff]
        %v386 = vld [vmem:[#allocation5 + $0xd0] sm:$0xff]
        %v387 = vld [vmem:[#allocation5 + $0xd8] sm:$0xff]
        %v388 = vld [vmem:[#allocation5 + $0xe0] sm:$0xff]
        %v389 = vld [vmem:[#allocation5 + $0xe8] sm:$0xff]
        %v390 = vld [vmem:[#allocation5 + $0xf0] sm:$0xff]
        %v391 = vld [vmem:[#allocation5 + $0xf8] sm:$0xff]
        %v392 = vld [vmem:[#allocation5 + $0x100] sm:$0xff]
        %v393 = vld [vmem:[#allocation5 + $0x108] sm:$0xff]
        %v394 = vld [vmem:[#allocation5 + $0x110] sm:$0xff]
        %v395 = vld [vmem:[#allocation5 + $0x118] sm:$0xff]
        %v396 = vld [vmem:[#allocation5 + $0x120] sm:$0xff]
        %v397 = vld [vmem:[#allocation5 + $0x128] sm:$0xff]
        %v398 = vld [vmem:[#allocation5 + $0x130] sm:$0xff]
        %v399 = vld [vmem:[#allocation5 + $0x138] sm:$0xff]
        %v400 = vld [vmem:[#allocation5 + $0x140] sm:$0xff]
        %v401 = vld [vmem:[#allocation5 + $0x148] sm:$0xff]
        %v402 = vld [vmem:[#allocation5 + $0x150] sm:$0xff]
        %v403 = vld [vmem:[#allocation5 + $0x158] sm:$0xff]
        %v404 = vld [vmem:[#allocation5 + $0x160] sm:$0xff]
        %v405 = vld [vmem:[#allocation5 + $0x168] sm:$0xff]
        %v406 = vld [vmem:[#allocation5 + $0x170] sm:$0xff]
        %v407 = vld [vmem:[#allocation5 + $0x178] sm:$0xff]
        %v408 = vld [vmem:[#allocation5 + $0x180] sm:$0xff]
        %v409 = vld [vmem:[#allocation5 + $0x188] sm:$0xff]
        %v410 = vld [vmem:[#allocation5 + $0x190] sm:$0xff]
        %v411 = vld [vmem:[#allocation5 + $0x198] sm:$0xff]
        %v412 = vld [vmem:[#allocation5 + $0x1a0] sm:$0xff]
        %v413 = vld [vmem:[#allocation5 + $0x1a8] sm:$0xff]
        %v414 = vld [vmem:[#allocation5 + $0x1b0] sm:$0xff]
        %v415 = vld [vmem:[#allocation5 + $0x1b8] sm:$0xff]
        %v416 = vld [vmem:[#allocation5 + $0x1c0] sm:$0xff]
        %v417 = vld [vmem:[#allocation5 + $0x1c8] sm:$0xff]
        %v418 = vld [vmem:[#allocation5 + $0x1d0] sm:$0xff]
        %v419 = vld [vmem:[#allocation5 + $0x1d8] sm:$0xff]
        %v420 = vld [vmem:[#allocation5 + $0x1e0] sm:$0xff]
        %v421 = vld [vmem:[#allocation5 + $0x1e8] sm:$0xff]
        %v422 = vld [vmem:[#allocation5 + $0x1f0] sm:$0xff]
        %v423 = vld [vmem:[#allocation5 + $0x1f8] sm:$0xff]
        %v424 = vld [vmem:[#allocation5 + $0x200] sm:$0xff]
        %v425 = vld [vmem:[#allocation5 + $0x208] sm:$0xff]
        %v426 = vld [vmem:[#allocation5 + $0x210] sm:$0xff]
        %v427 = vld [vmem:[#allocation5 + $0x218] sm:$0xff]
        %v428 = vld [vmem:[#allocation5 + $0x220] sm:$0xff]
        %v429 = vld [vmem:[#allocation5 + $0x228] sm:$0xff]
        %v430 = vld [vmem:[#allocation5 + $0x230] sm:$0xff]
        %v431 = vld [vmem:[#allocation5 + $0x238] sm:$0xff]
        %v432 = vld [vmem:[#allocation5 + $0x240] sm:$0xff]
        %v433 = vld [vmem:[#allocation5 + $0x248] sm:$0xff]
        %v434 = vld [vmem:[#allocation5 + $0x250] sm:$0xff]
        %v435 = vld [vmem:[#allocation5 + $0x258] sm:$0xff]
        %v436 = vld [vmem:[#allocation5 + $0x260] sm:$0xff]
        %v437 = vld [vmem:[#allocation5 + $0x268] sm:$0xff]
        %v438 = vld [vmem:[#allocation5 + $0x270] sm:$0xff]
        %v439 = vld [vmem:[#allocation5 + $0x278] sm:$0xff]
        %v440 = vld [vmem:[#allocation5 + $0x280] sm:$0xff]
        %v441 = vld [vmem:[#allocation5 + $0x288] sm:$0xff]
        %v442 = vld [vmem:[#allocation5 + $0x290] sm:$0xff]
        %v443 = vld [vmem:[#allocation5 + $0x298] sm:$0xff]
        %v444 = vld [vmem:[#allocation5 + $0x2a0] sm:$0xff]
        %v445 = vld [vmem:[#allocation5 + $0x2a8] sm:$0xff]
        %v446 = vld [vmem:[#allocation5 + $0x2b0] sm:$0xff]
        %v447 = vld [vmem:[#allocation5 + $0x2b8] sm:$0xff]
        %v448 = vld [vmem:[#allocation5 + $0x2c0] sm:$0xff]
        %v449 = vld [vmem:[#allocation5 + $0x2c8] sm:$0xff]
        %v450 = vld [vmem:[#allocation5 + $0x2d0] sm:$0xff]
        %v451 = vld [vmem:[#allocation5 + $0x2d8] sm:$0xff]
        %v452 = vld [vmem:[#allocation5 + $0x2e0] sm:$0xff]
        %v453 = vld [vmem:[#allocation5 + $0x2e8] sm:$0xff]
        %v454 = vld [vmem:[#allocation5 + $0x2f0] sm:$0xff]
        %v455 = vld [vmem:[#allocation5 + $0x2f8] sm:$0xff]
        %v456 = vld [vmem:[#allocation7] sm:$0x7]
        %v458 = vperm.slane %v456, 0
        %v459 = vperm.slane %v456, 1
        %v460 = vperm.slane %v456, 2
        %464 = vmatpush.msra.mxu0 %v405
        %465 = vmatpush.msra.mxu0 %v402
        %466 = vmatpush.msra.mxu0 %v399
        %467 = vmatpush.msra.mxu0 %v396
        %468 = vmatpush.msra.mxu0 %v393
        %469 = vmatpush.msra.mxu0 %v390
        %470 = vmatpush.msra.mxu0 %v387
        %471 = vmatpush.msra.mxu0 %v384
        %472 = vmatpush.msra.mxu0 %v381
        %473 = vmatpush.msra.mxu0 %v378
        %474 = vmatpush.msra.mxu0 %v375
        %475 = vmatpush.msra.mxu0 %v372
        %476 = vmatpush.msra.mxu0 %v369
        %477 = vmatpush.msra.mxu0 %v366
        %478 = vmatpush.msra.mxu0 %v363
        %479 = vmatpush.msra.mxu0 %v360
        %480 = vmatmul.f32.gmra.mxu0 %v296
        %v481 = vpop.f32.mrf.mxu0
        %v482 = vadd.f32 %v458, %v481
        %483 = vmatmul.f32.gmra.mxu0 %v298
        %v484 = vpop.f32.mrf.mxu0
        %v485 = vadd.f32 %v458, %v484
        %486 = vmatmul.f32.gmra.mxu0 %v300
        %v487 = vpop.f32.mrf.mxu0
        %v488 = vadd.f32 %v458, %v487
        %489 = vmatmul.f32.gmra.mxu0 %v302
        %v490 = vpop.f32.mrf.mxu0
        %v491 = vadd.f32 %v458, %v490
        %492 = vmatmul.f32.gmra.mxu0 %v304
        %v493 = vpop.f32.mrf.mxu0
        %v494 = vadd.f32 %v458, %v493
        %495 = vmatmul.f32.gmra.mxu0 %v306
        %v496 = vpop.f32.mrf.mxu0
        %v497 = vadd.f32 %v458, %v496
        %498 = vmatmul.f32.gmra.mxu0 %v308
        %v499 = vpop.f32.mrf.mxu0
        %v500 = vadd.f32 %v458, %v499
        %501 = vmatmul.f32.gmra.mxu0 %v310
        %v502 = vpop.f32.mrf.mxu0
        %v503 = vadd.f32 %v458, %v502
        %504 = vmatmul.f32.gmra.mxu0 %v312
        %v505 = vpop.f32.mrf.mxu0
        %v506 = vadd.f32 %v458, %v505
        %507 = vmatmul.f32.gmra.mxu0 %v314
        %v508 = vpop.f32.mrf.mxu0
        %v509 = vadd.f32 %v458, %v508
        %510 = vmatmul.f32.gmra.mxu0 %v316
        %v511 = vpop.f32.mrf.mxu0
        %v512 = vadd.f32 %v458, %v511
        %513 = vmatmul.f32.gmra.mxu0 %v318
        %v514 = vpop.f32.mrf.mxu0
        %v515 = vadd.f32 %v458, %v514
        %516 = vmatmul.f32.gmra.mxu0 %v320
        %v517 = vpop.f32.mrf.mxu0
        %v518 = vadd.f32 %v458, %v517
        %519 = vmatmul.f32.gmra.mxu0 %v322
        %v520 = vpop.f32.mrf.mxu0
        %v521 = vadd.f32 %v458, %v520
        %522 = vmatmul.f32.gmra.mxu0 %v324
        %v523 = vpop.f32.mrf.mxu0
        %v524 = vadd.f32 %v458, %v523
        %525 = vmatmul.f32.gmra.mxu0 %v326
        %v526 = vpop.f32.mrf.mxu0
        %v527 = vadd.f32 %v458, %v526
        %528 = vmatmul.f32.gmra.mxu0 %v328
        %v529 = vpop.f32.mrf.mxu0
        %v530 = vadd.f32 %v458, %v529
        %531 = vmatmul.f32.gmra.mxu0 %v330
        %v532 = vpop.f32.mrf.mxu0
        %v533 = vadd.f32 %v458, %v532
        %534 = vmatmul.f32.gmra.mxu0 %v332
        %v535 = vpop.f32.mrf.mxu0
        %v536 = vadd.f32 %v458, %v535
        %537 = vmatmul.f32.gmra.mxu0 %v334
        %v538 = vpop.f32.mrf.mxu0
        %v539 = vadd.f32 %v458, %v538
        %540 = vmatmul.f32.gmra.mxu0 %v336
        %v541 = vpop.f32.mrf.mxu0
        %v542 = vadd.f32 %v458, %v541
        %543 = vmatmul.f32.gmra.mxu0 %v338
        %v544 = vpop.f32.mrf.mxu0
        %v545 = vadd.f32 %v458, %v544
        %546 = vmatmul.f32.gmra.mxu0 %v340
        %v547 = vpop.f32.mrf.mxu0
        %v548 = vadd.f32 %v458, %v547
        %549 = vmatmul.f32.gmra.mxu0 %v342
        %v550 = vpop.f32.mrf.mxu0
        %v551 = vadd.f32 %v458, %v550
        %552 = vmatmul.f32.gmra.mxu0 %v344
        %v553 = vpop.f32.mrf.mxu0
        %v554 = vadd.f32 %v458, %v553
        %555 = vmatmul.f32.gmra.mxu0 %v346
        %v556 = vpop.f32.mrf.mxu0
        %v557 = vadd.f32 %v458, %v556
        %558 = vmatmul.f32.gmra.mxu0 %v348
        %v559 = vpop.f32.mrf.mxu0
        %v560 = vadd.f32 %v458, %v559
        %561 = vmatmul.f32.gmra.mxu0 %v350
        %v562 = vpop.f32.mrf.mxu0
        %v563 = vadd.f32 %v458, %v562
        %564 = vmatmul.f32.gmra.mxu0 %v352
        %v565 = vpop.f32.mrf.mxu0
        %v566 = vadd.f32 %v458, %v565
        %567 = vmatmul.f32.gmra.mxu0 %v354
        %v568 = vpop.f32.mrf.mxu0
        %v569 = vadd.f32 %v458, %v568
        %570 = vmatmul.f32.gmra.mxu0 %v356
        %v571 = vpop.f32.mrf.mxu0
        %v572 = vadd.f32 %v458, %v571
        %573 = vmatmul.f32.gmra.mxu0 %v358
        %v574 = vpop.f32.mrf.mxu0
        %v575 = vadd.f32 %v458, %v574
        %576 = vdwg.mxu0
        %577 = vmatpush.msra.mxu0 %v453
        %578 = vmatpush.msra.mxu0 %v450
        %579 = vmatpush.msra.mxu0 %v447
        %580 = vmatpush.msra.mxu0 %v444
        %581 = vmatpush.msra.mxu0 %v441
        %582 = vmatpush.msra.mxu0 %v438
        %583 = vmatpush.msra.mxu0 %v435
        %584 = vmatpush.msra.mxu0 %v432
        %585 = vmatpush.msra.mxu0 %v429
        %586 = vmatpush.msra.mxu0 %v426
        %587 = vmatpush.msra.mxu0 %v423
        %588 = vmatpush.msra.mxu0 %v420
        %589 = vmatpush.msra.mxu0 %v417
        %590 = vmatpush.msra.mxu0 %v414
        %591 = vmatpush.msra.mxu0 %v411
        %592 = vmatpush.msra.mxu0 %v408
        %593 = vmatmul.f32.gmra.mxu0 %v297
        %v594 = vpop.f32.mrf.mxu0
        %v595 = vadd.f32 %v482, %v594
        %596 = vmatmul.f32.gmra.mxu0 %v299
        %v597 = vpop.f32.mrf.mxu0
        %v598 = vadd.f32 %v485, %v597
        %599 = vmatmul.f32.gmra.mxu0 %v301
        %v600 = vpop.f32.mrf.mxu0
        %v601 = vadd.f32 %v488, %v600
        %602 = vmatmul.f32.gmra.mxu0 %v303
        %v603 = vpop.f32.mrf.mxu0
        %v604 = vadd.f32 %v491, %v603
        %605 = vmatmul.f32.gmra.mxu0 %v305
        %v606 = vpop.f32.mrf.mxu0
        %v607 = vadd.f32 %v494, %v606
        %608 = vmatmul.f32.gmra.mxu0 %v307
        %v609 = vpop.f32.mrf.mxu0
        %v610 = vadd.f32 %v497, %v609
        %611 = vmatmul.f32.gmra.mxu0 %v309
        %v612 = vpop.f32.mrf.mxu0
        %v613 = vadd.f32 %v500, %v612
        %614 = vmatmul.f32.gmra.mxu0 %v311
        %v615 = vpop.f32.mrf.mxu0
        %v616 = vadd.f32 %v503, %v615
        %617 = vmatmul.f32.gmra.mxu0 %v313
        %v618 = vpop.f32.mrf.mxu0
        %v619 = vadd.f32 %v506, %v618
        %620 = vmatmul.f32.gmra.mxu0 %v315
        %v621 = vpop.f32.mrf.mxu0
        %v622 = vadd.f32 %v509, %v621
        %623 = vmatmul.f32.gmra.mxu0 %v317
        %v624 = vpop.f32.mrf.mxu0
        %v625 = vadd.f32 %v512, %v624
        %626 = vmatmul.f32.gmra.mxu0 %v319
        %v627 = vpop.f32.mrf.mxu0
        %v628 = vadd.f32 %v515, %v627
        %629 = vmatmul.f32.gmra.mxu0 %v321
        %v630 = vpop.f32.mrf.mxu0
        %v631 = vadd.f32 %v518, %v630
        %632 = vmatmul.f32.gmra.mxu0 %v323
        %v633 = vpop.f32.mrf.mxu0
        %v634 = vadd.f32 %v521, %v633
        %635 = vmatmul.f32.gmra.mxu0 %v325
        %v636 = vpop.f32.mrf.mxu0
        %v637 = vadd.f32 %v524, %v636
        %638 = vmatmul.f32.gmra.mxu0 %v327
        %v639 = vpop.f32.mrf.mxu0
        %v640 = vadd.f32 %v527, %v639
        %641 = vmatmul.f32.gmra.mxu0 %v329
        %v642 = vpop.f32.mrf.mxu0
        %v643 = vadd.f32 %v530, %v642
        %644 = vmatmul.f32.gmra.mxu0 %v331
        %v645 = vpop.f32.mrf.mxu0
        %v646 = vadd.f32 %v533, %v645
        %647 = vmatmul.f32.gmra.mxu0 %v333
        %v648 = vpop.f32.mrf.mxu0
        %v649 = vadd.f32 %v536, %v648
        %650 = vmatmul.f32.gmra.mxu0 %v335
        %v651 = vpop.f32.mrf.mxu0
        %v652 = vadd.f32 %v539, %v651
        %653 = vmatmul.f32.gmra.mxu0 %v337
        %v654 = vpop.f32.mrf.mxu0
        %v655 = vadd.f32 %v542, %v654
        %656 = vmatmul.f32.gmra.mxu0 %v339
        %v657 = vpop.f32.mrf.mxu0
        %v658 = vadd.f32 %v545, %v657
        %659 = vmatmul.f32.gmra.mxu0 %v341
        %v660 = vpop.f32.mrf.mxu0
        %v661 = vadd.f32 %v548, %v660
        %662 = vmatmul.f32.gmra.mxu0 %v343
        %v663 = vpop.f32.mrf.mxu0
        %v664 = vadd.f32 %v551, %v663
        %665 = vmatmul.f32.gmra.mxu0 %v345
        %v666 = vpop.f32.mrf.mxu0
        %v667 = vadd.f32 %v554, %v666
        %668 = vmatmul.f32.gmra.mxu0 %v347
        %v669 = vpop.f32.mrf.mxu0
        %v670 = vadd.f32 %v557, %v669
        %671 = vmatmul.f32.gmra.mxu0 %v349
        %v672 = vpop.f32.mrf.mxu0
        %v673 = vadd.f32 %v560, %v672
        %674 = vmatmul.f32.gmra.mxu0 %v351
        %v675 = vpop.f32.mrf.mxu0
        %v676 = vadd.f32 %v563, %v675
        %677 = vmatmul.f32.gmra.mxu0 %v353
        %v678 = vpop.f32.mrf.mxu0
        %v679 = vadd.f32 %v566, %v678
        %680 = vmatmul.f32.gmra.mxu0 %v355
        %v681 = vpop.f32.mrf.mxu0
        %v682 = vadd.f32 %v569, %v681
        %683 = vmatmul.f32.gmra.mxu0 %v357
        %v684 = vpop.f32.mrf.mxu0
        %v685 = vadd.f32 %v572, %v684
        %686 = vmatmul.f32.gmra.mxu0 %v359
        %v687 = vpop.f32.mrf.mxu0
        %v688 = vadd.f32 %v575, %v687
        %689 = vdwg.mxu0
        %690 = vmatpush.msra.mxu0 %v406
        %691 = vmatpush.msra.mxu0 %v403
        %692 = vmatpush.msra.mxu0 %v400
        %693 = vmatpush.msra.mxu0 %v397
        %694 = vmatpush.msra.mxu0 %v394
        %695 = vmatpush.msra.mxu0 %v391
        %696 = vmatpush.msra.mxu0 %v388
        %697 = vmatpush.msra.mxu0 %v385
        %698 = vmatpush.msra.mxu0 %v382
        %699 = vmatpush.msra.mxu0 %v379
        %700 = vmatpush.msra.mxu0 %v376
        %701 = vmatpush.msra.mxu0 %v373
        %702 = vmatpush.msra.mxu0 %v370
        %703 = vmatpush.msra.mxu0 %v367
        %704 = vmatpush.msra.mxu0 %v364
        %705 = vmatpush.msra.mxu0 %v361
        %706 = vmatmul.f32.gmra.mxu0 %v296
        %v707 = vpop.f32.mrf.mxu0
        %v708 = vadd.f32 %v459, %v707
        %709 = vmatmul.f32.gmra.mxu0 %v298
        %v710 = vpop.f32.mrf.mxu0
        %v711 = vadd.f32 %v459, %v710
        %712 = vmatmul.f32.gmra.mxu0 %v300
        %v713 = vpop.f32.mrf.mxu0
        %v714 = vadd.f32 %v459, %v713
        %715 = vmatmul.f32.gmra.mxu0 %v302
        %v716 = vpop.f32.mrf.mxu0
        %v717 = vadd.f32 %v459, %v716
        %718 = vmatmul.f32.gmra.mxu0 %v304
        %v719 = vpop.f32.mrf.mxu0
        %v720 = vadd.f32 %v459, %v719
        %721 = vmatmul.f32.gmra.mxu0 %v306
        %v722 = vpop.f32.mrf.mxu0
        %v723 = vadd.f32 %v459, %v722
        %724 = vmatmul.f32.gmra.mxu0 %v308
        %v725 = vpop.f32.mrf.mxu0
        %v726 = vadd.f32 %v459, %v725
        %727 = vmatmul.f32.gmra.mxu0 %v310
        %v728 = vpop.f32.mrf.mxu0
        %v729 = vadd.f32 %v459, %v728
        %730 = vmatmul.f32.gmra.mxu0 %v312
        %v731 = vpop.f32.mrf.mxu0
        %v732 = vadd.f32 %v459, %v731
        %733 = vmatmul.f32.gmra.mxu0 %v314
        %v734 = vpop.f32.mrf.mxu0
        %v735 = vadd.f32 %v459, %v734
        %736 = vmatmul.f32.gmra.mxu0 %v316
        %v737 = vpop.f32.mrf.mxu0
        %v738 = vadd.f32 %v459, %v737
        %739 = vmatmul.f32.gmra.mxu0 %v318
        %v740 = vpop.f32.mrf.mxu0
        %v741 = vadd.f32 %v459, %v740
        %742 = vmatmul.f32.gmra.mxu0 %v320
        %v743 = vpop.f32.mrf.mxu0
        %v744 = vadd.f32 %v459, %v743
        %745 = vmatmul.f32.gmra.mxu0 %v322
        %v746 = vpop.f32.mrf.mxu0
        %v747 = vadd.f32 %v459, %v746
        %748 = vmatmul.f32.gmra.mxu0 %v324
        %v749 = vpop.f32.mrf.mxu0
        %v750 = vadd.f32 %v459, %v749
        %751 = vmatmul.f32.gmra.mxu0 %v326
        %v752 = vpop.f32.mrf.mxu0
        %v753 = vadd.f32 %v459, %v752
        %754 = vmatmul.f32.gmra.mxu0 %v328
        %v755 = vpop.f32.mrf.mxu0
        %v756 = vadd.f32 %v459, %v755
        %757 = vmatmul.f32.gmra.mxu0 %v330
        %v758 = vpop.f32.mrf.mxu0
        %v759 = vadd.f32 %v459, %v758
        %760 = vmatmul.f32.gmra.mxu0 %v332
        %v761 = vpop.f32.mrf.mxu0
        %v762 = vadd.f32 %v459, %v761
        %763 = vmatmul.f32.gmra.mxu0 %v334
        %v764 = vpop.f32.mrf.mxu0
        %v765 = vadd.f32 %v459, %v764
        %766 = vmatmul.f32.gmra.mxu0 %v336
        %v767 = vpop.f32.mrf.mxu0
        %v768 = vadd.f32 %v459, %v767
        %769 = vmatmul.f32.gmra.mxu0 %v338
        %v770 = vpop.f32.mrf.mxu0
        %v771 = vadd.f32 %v459, %v770
        %772 = vmatmul.f32.gmra.mxu0 %v340
        %v773 = vpop.f32.mrf.mxu0
        %v774 = vadd.f32 %v459, %v773
        %775 = vmatmul.f32.gmra.mxu0 %v342
        %v776 = vpop.f32.mrf.mxu0
        %v777 = vadd.f32 %v459, %v776
        %778 = vmatmul.f32.gmra.mxu0 %v344
        %v779 = vpop.f32.mrf.mxu0
        %v780 = vadd.f32 %v459, %v779
        %781 = vmatmul.f32.gmra.mxu0 %v346
        %v782 = vpop.f32.mrf.mxu0
        %v783 = vadd.f32 %v459, %v782
        %784 = vmatmul.f32.gmra.mxu0 %v348
        %v785 = vpop.f32.mrf.mxu0
        %v786 = vadd.f32 %v459, %v785
        %787 = vmatmul.f32.gmra.mxu0 %v350
        %v788 = vpop.f32.mrf.mxu0
        %v789 = vadd.f32 %v459, %v788
        %790 = vmatmul.f32.gmra.mxu0 %v352
        %v791 = vpop.f32.mrf.mxu0
        %v792 = vadd.f32 %v459, %v791
        %793 = vmatmul.f32.gmra.mxu0 %v354
        %v794 = vpop.f32.mrf.mxu0
        %v795 = vadd.f32 %v459, %v794
        %796 = vmatmul.f32.gmra.mxu0 %v356
        %v797 = vpop.f32.mrf.mxu0
        %v798 = vadd.f32 %v459, %v797
        %799 = vmatmul.f32.gmra.mxu0 %v358
        %v800 = vpop.f32.mrf.mxu0
        %v801 = vadd.f32 %v459, %v800
        %802 = vdwg.mxu0
        %803 = vmatpush.msra.mxu0 %v454
        %804 = vmatpush.msra.mxu0 %v451
        %805 = vmatpush.msra.mxu0 %v448
        %806 = vmatpush.msra.mxu0 %v445
        %807 = vmatpush.msra.mxu0 %v442
        %808 = vmatpush.msra.mxu0 %v439
        %809 = vmatpush.msra.mxu0 %v436
        %810 = vmatpush.msra.mxu0 %v433
        %811 = vmatpush.msra.mxu0 %v430
        %812 = vmatpush.msra.mxu0 %v427
        %813 = vmatpush.msra.mxu0 %v424
        %814 = vmatpush.msra.mxu0 %v421
        %815 = vmatpush.msra.mxu0 %v418
        %816 = vmatpush.msra.mxu0 %v415
        %817 = vmatpush.msra.mxu0 %v412
        %818 = vmatpush.msra.mxu0 %v409
        %819 = vmatmul.f32.gmra.mxu0 %v297
        %v820 = vpop.f32.mrf.mxu0
        %v821 = vadd.f32 %v708, %v820
        %822 = vmatmul.f32.gmra.mxu0 %v299
        %v823 = vpop.f32.mrf.mxu0
        %v824 = vadd.f32 %v711, %v823
        %825 = vmatmul.f32.gmra.mxu0 %v301
        %v826 = vpop.f32.mrf.mxu0
        %v827 = vadd.f32 %v714, %v826
        %828 = vmatmul.f32.gmra.mxu0 %v303
        %v829 = vpop.f32.mrf.mxu0
        %v830 = vadd.f32 %v717, %v829
        %831 = vmatmul.f32.gmra.mxu0 %v305
        %v832 = vpop.f32.mrf.mxu0
        %v833 = vadd.f32 %v720, %v832
        %834 = vmatmul.f32.gmra.mxu0 %v307
        %v835 = vpop.f32.mrf.mxu0
        %v836 = vadd.f32 %v723, %v835
        %837 = vmatmul.f32.gmra.mxu0 %v309
        %v838 = vpop.f32.mrf.mxu0
        %v839 = vadd.f32 %v726, %v838
        %840 = vmatmul.f32.gmra.mxu0 %v311
        %v841 = vpop.f32.mrf.mxu0
        %v842 = vadd.f32 %v729, %v841
        %843 = vmatmul.f32.gmra.mxu0 %v313
        %v844 = vpop.f32.mrf.mxu0
        %v845 = vadd.f32 %v732, %v844
        %846 = vmatmul.f32.gmra.mxu0 %v315
        %v847 = vpop.f32.mrf.mxu0
        %v848 = vadd.f32 %v735, %v847
        %849 = vmatmul.f32.gmra.mxu0 %v317
        %v850 = vpop.f32.mrf.mxu0
        %v851 = vadd.f32 %v738, %v850
        %852 = vmatmul.f32.gmra.mxu0 %v319
        %v853 = vpop.f32.mrf.mxu0
        %v854 = vadd.f32 %v741, %v853
        %855 = vmatmul.f32.gmra.mxu0 %v321
        %v856 = vpop.f32.mrf.mxu0
        %v857 = vadd.f32 %v744, %v856
        %858 = vmatmul.f32.gmra.mxu0 %v323
        %v859 = vpop.f32.mrf.mxu0
        %v860 = vadd.f32 %v747, %v859
        %861 = vmatmul.f32.gmra.mxu0 %v325
        %v862 = vpop.f32.mrf.mxu0
        %v863 = vadd.f32 %v750, %v862
        %864 = vmatmul.f32.gmra.mxu0 %v327
        %v865 = vpop.f32.mrf.mxu0
        %v866 = vadd.f32 %v753, %v865
        %867 = vmatmul.f32.gmra.mxu0 %v329
        %v868 = vpop.f32.mrf.mxu0
        %v869 = vadd.f32 %v756, %v868
        %870 = vmatmul.f32.gmra.mxu0 %v331
        %v871 = vpop.f32.mrf.mxu0
        %v872 = vadd.f32 %v759, %v871
        %873 = vmatmul.f32.gmra.mxu0 %v333
        %v874 = vpop.f32.mrf.mxu0
        %v875 = vadd.f32 %v762, %v874
        %876 = vmatmul.f32.gmra.mxu0 %v335
        %v877 = vpop.f32.mrf.mxu0
        %v878 = vadd.f32 %v765, %v877
        %879 = vmatmul.f32.gmra.mxu0 %v337
        %v880 = vpop.f32.mrf.mxu0
        %v881 = vadd.f32 %v768, %v880
        %882 = vmatmul.f32.gmra.mxu0 %v339
        %v883 = vpop.f32.mrf.mxu0
        %v884 = vadd.f32 %v771, %v883
        %885 = vmatmul.f32.gmra.mxu0 %v341
        %v886 = vpop.f32.mrf.mxu0
        %v887 = vadd.f32 %v774, %v886
        %888 = vmatmul.f32.gmra.mxu0 %v343
        %v889 = vpop.f32.mrf.mxu0
        %v890 = vadd.f32 %v777, %v889
        %891 = vmatmul.f32.gmra.mxu0 %v345
        %v892 = vpop.f32.mrf.mxu0
        %v893 = vadd.f32 %v780, %v892
        %894 = vmatmul.f32.gmra.mxu0 %v347
        %v895 = vpop.f32.mrf.mxu0
        %v896 = vadd.f32 %v783, %v895
        %897 = vmatmul.f32.gmra.mxu0 %v349
        %v898 = vpop.f32.mrf.mxu0
        %v899 = vadd.f32 %v786, %v898
        %900 = vmatmul.f32.gmra.mxu0 %v351
        %v901 = vpop.f32.mrf.mxu0
        %v902 = vadd.f32 %v789, %v901
        %903 = vmatmul.f32.gmra.mxu0 %v353
        %v904 = vpop.f32.mrf.mxu0
        %v905 = vadd.f32 %v792, %v904
        %906 = vmatmul.f32.gmra.mxu0 %v355
        %v907 = vpop.f32.mrf.mxu0
        %v908 = vadd.f32 %v795, %v907
        %909 = vmatmul.f32.gmra.mxu0 %v357
        %v910 = vpop.f32.mrf.mxu0
        %v911 = vadd.f32 %v798, %v910
        %912 = vmatmul.f32.gmra.mxu0 %v359
        %v913 = vpop.f32.mrf.mxu0
        %v914 = vadd.f32 %v801, %v913
        %915 = vdwg.mxu0
        %916 = vmatpush.msra.mxu0 %v407
        %917 = vmatpush.msra.mxu0 %v404
        %918 = vmatpush.msra.mxu0 %v401
        %919 = vmatpush.msra.mxu0 %v398
        %920 = vmatpush.msra.mxu0 %v395
        %921 = vmatpush.msra.mxu0 %v392
        %922 = vmatpush.msra.mxu0 %v389
        %923 = vmatpush.msra.mxu0 %v386
        %924 = vmatpush.msra.mxu0 %v383
        %925 = vmatpush.msra.mxu0 %v380
        %926 = vmatpush.msra.mxu0 %v377
        %927 = vmatpush.msra.mxu0 %v374
        %928 = vmatpush.msra.mxu0 %v371
        %929 = vmatpush.msra.mxu0 %v368
        %930 = vmatpush.msra.mxu0 %v365
        %931 = vmatpush.msra.mxu0 %v362
        %932 = vmatmul.f32.gmra.mxu0 %v296
        %v933 = vpop.f32.mrf.mxu0
        %v934 = vadd.f32 %v460, %v933
        %935 = vmatmul.f32.gmra.mxu0 %v298
        %v936 = vpop.f32.mrf.mxu0
        %v937 = vadd.f32 %v460, %v936
        %938 = vmatmul.f32.gmra.mxu0 %v300
        %v939 = vpop.f32.mrf.mxu0
        %v940 = vadd.f32 %v460, %v939
        %941 = vmatmul.f32.gmra.mxu0 %v302
        %v942 = vpop.f32.mrf.mxu0
        %v943 = vadd.f32 %v460, %v942
        %944 = vmatmul.f32.gmra.mxu0 %v304
        %v945 = vpop.f32.mrf.mxu0
        %v946 = vadd.f32 %v460, %v945
        %947 = vmatmul.f32.gmra.mxu0 %v306
        %v948 = vpop.f32.mrf.mxu0
        %v949 = vadd.f32 %v460, %v948
        %950 = vmatmul.f32.gmra.mxu0 %v308
        %v951 = vpop.f32.mrf.mxu0
        %v952 = vadd.f32 %v460, %v951
        %953 = vmatmul.f32.gmra.mxu0 %v310
        %v954 = vpop.f32.mrf.mxu0
        %v955 = vadd.f32 %v460, %v954
        %956 = vmatmul.f32.gmra.mxu0 %v312
        %v957 = vpop.f32.mrf.mxu0
        %v958 = vadd.f32 %v460, %v957
        %959 = vmatmul.f32.gmra.mxu0 %v314
        %v960 = vpop.f32.mrf.mxu0
        %v961 = vadd.f32 %v460, %v960
        %962 = vmatmul.f32.gmra.mxu0 %v316
        %v963 = vpop.f32.mrf.mxu0
        %v964 = vadd.f32 %v460, %v963
        %965 = vmatmul.f32.gmra.mxu0 %v318
        %v966 = vpop.f32.mrf.mxu0
        %v967 = vadd.f32 %v460, %v966
        %968 = vmatmul.f32.gmra.mxu0 %v320
        %v969 = vpop.f32.mrf.mxu0
        %v970 = vadd.f32 %v460, %v969
        %971 = vmatmul.f32.gmra.mxu0 %v322
        %v972 = vpop.f32.mrf.mxu0
        %v973 = vadd.f32 %v460, %v972
        %974 = vmatmul.f32.gmra.mxu0 %v324
        %v975 = vpop.f32.mrf.mxu0
        %v976 = vadd.f32 %v460, %v975
        %977 = vmatmul.f32.gmra.mxu0 %v326
        %v978 = vpop.f32.mrf.mxu0
        %v979 = vadd.f32 %v460, %v978
        %980 = vmatmul.f32.gmra.mxu0 %v328
        %v981 = vpop.f32.mrf.mxu0
        %v982 = vadd.f32 %v460, %v981
        %983 = vmatmul.f32.gmra.mxu0 %v330
        %v984 = vpop.f32.mrf.mxu0
        %v985 = vadd.f32 %v460, %v984
        %986 = vmatmul.f32.gmra.mxu0 %v332
        %v987 = vpop.f32.mrf.mxu0
        %v988 = vadd.f32 %v460, %v987
        %989 = vmatmul.f32.gmra.mxu0 %v334
        %v990 = vpop.f32.mrf.mxu0
        %v991 = vadd.f32 %v460, %v990
        %992 = vmatmul.f32.gmra.mxu0 %v336
        %v993 = vpop.f32.mrf.mxu0
        %v994 = vadd.f32 %v460, %v993
        %995 = vmatmul.f32.gmra.mxu0 %v338
        %v996 = vpop.f32.mrf.mxu0
        %v997 = vadd.f32 %v460, %v996
        %998 = vmatmul.f32.gmra.mxu0 %v340
        %v999 = vpop.f32.mrf.mxu0
        %v1000 = vadd.f32 %v460, %v999
        %1001 = vmatmul.f32.gmra.mxu0 %v342
        %v1002 = vpop.f32.mrf.mxu0
        %v1003 = vadd.f32 %v460, %v1002
        %1004 = vmatmul.f32.gmra.mxu0 %v344
        %v1005 = vpop.f32.mrf.mxu0
        %v1006 = vadd.f32 %v460, %v1005
        %1007 = vmatmul.f32.gmra.mxu0 %v346
        %v1008 = vpop.f32.mrf.mxu0
        %v1009 = vadd.f32 %v460, %v1008
        %1010 = vmatmul.f32.gmra.mxu0 %v348
        %v1011 = vpop.f32.mrf.mxu0
        %v1012 = vadd.f32 %v460, %v1011
        %1013 = vmatmul.f32.gmra.mxu0 %v350
        %v1014 = vpop.f32.mrf.mxu0
        %v1015 = vadd.f32 %v460, %v1014
        %1016 = vmatmul.f32.gmra.mxu0 %v352
        %v1017 = vpop.f32.mrf.mxu0
        %v1018 = vadd.f32 %v460, %v1017
        %1019 = vmatmul.f32.gmra.mxu0 %v354
        %v1020 = vpop.f32.mrf.mxu0
        %v1021 = vadd.f32 %v460, %v1020
        %1022 = vmatmul.f32.gmra.mxu0 %v356
        %v1023 = vpop.f32.mrf.mxu0
        %v1024 = vadd.f32 %v460, %v1023
        %1025 = vmatmul.f32.gmra.mxu0 %v358
        %v1026 = vpop.f32.mrf.mxu0
        %v1027 = vadd.f32 %v460, %v1026
        %1028 = vdwg.mxu0
        %1029 = vmatpush.msra.mxu0 %v455
        %1030 = vmatpush.msra.mxu0 %v452
        %1031 = vmatpush.msra.mxu0 %v449
        %1032 = vmatpush.msra.mxu0 %v446
        %1033 = vmatpush.msra.mxu0 %v443
        %1034 = vmatpush.msra.mxu0 %v440
        %1035 = vmatpush.msra.mxu0 %v437
        %1036 = vmatpush.msra.mxu0 %v434
        %1037 = vmatpush.msra.mxu0 %v431
        %1038 = vmatpush.msra.mxu0 %v428
        %1039 = vmatpush.msra.mxu0 %v425
        %1040 = vmatpush.msra.mxu0 %v422
        %1041 = vmatpush.msra.mxu0 %v419
        %1042 = vmatpush.msra.mxu0 %v416
        %1043 = vmatpush.msra.mxu0 %v413
        %1044 = vmatpush.msra.mxu0 %v410
        %1045 = vmatmul.f32.gmra.mxu0 %v297
        %v1046 = vpop.f32.mrf.mxu0
        %v1047 = vadd.f32 %v934, %v1046
        %1048 = vmatmul.f32.gmra.mxu0 %v299
        %v1049 = vpop.f32.mrf.mxu0
        %v1050 = vadd.f32 %v937, %v1049
        %1051 = vmatmul.f32.gmra.mxu0 %v301
        %v1052 = vpop.f32.mrf.mxu0
        %v1053 = vadd.f32 %v940, %v1052
        %1054 = vmatmul.f32.gmra.mxu0 %v303
        %v1055 = vpop.f32.mrf.mxu0
        %v1056 = vadd.f32 %v943, %v1055
        %1057 = vmatmul.f32.gmra.mxu0 %v305
        %v1058 = vpop.f32.mrf.mxu0
        %v1059 = vadd.f32 %v946, %v1058
        %1060 = vmatmul.f32.gmra.mxu0 %v307
        %v1061 = vpop.f32.mrf.mxu0
        %v1062 = vadd.f32 %v949, %v1061
        %1063 = vmatmul.f32.gmra.mxu0 %v309
        %v1064 = vpop.f32.mrf.mxu0
        %v1065 = vadd.f32 %v952, %v1064
        %1066 = vmatmul.f32.gmra.mxu0 %v311
        %v1067 = vpop.f32.mrf.mxu0
        %v1068 = vadd.f32 %v955, %v1067
        %1069 = vmatmul.f32.gmra.mxu0 %v313
        %v1070 = vpop.f32.mrf.mxu0
        %v1071 = vadd.f32 %v958, %v1070
        %1072 = vmatmul.f32.gmra.mxu0 %v315
        %v1073 = vpop.f32.mrf.mxu0
        %v1074 = vadd.f32 %v961, %v1073
        %1075 = vmatmul.f32.gmra.mxu0 %v317
        %v1076 = vpop.f32.mrf.mxu0
        %v1077 = vadd.f32 %v964, %v1076
        %1078 = vmatmul.f32.gmra.mxu0 %v319
        %v1079 = vpop.f32.mrf.mxu0
        %v1080 = vadd.f32 %v967, %v1079
        %1081 = vmatmul.f32.gmra.mxu0 %v321
        %v1082 = vpop.f32.mrf.mxu0
        %v1083 = vadd.f32 %v970, %v1082
        %1084 = vmatmul.f32.gmra.mxu0 %v323
        %v1085 = vpop.f32.mrf.mxu0
        %v1086 = vadd.f32 %v973, %v1085
        %1087 = vmatmul.f32.gmra.mxu0 %v325
        %v1088 = vpop.f32.mrf.mxu0
        %v1089 = vadd.f32 %v976, %v1088
        %1090 = vmatmul.f32.gmra.mxu0 %v327
        %v1091 = vpop.f32.mrf.mxu0
        %v1092 = vadd.f32 %v979, %v1091
        %1093 = vmatmul.f32.gmra.mxu0 %v329
        %v1094 = vpop.f32.mrf.mxu0
        %v1095 = vadd.f32 %v982, %v1094
        %1096 = vmatmul.f32.gmra.mxu0 %v331
        %v1097 = vpop.f32.mrf.mxu0
        %v1098 = vadd.f32 %v985, %v1097
        %1099 = vmatmul.f32.gmra.mxu0 %v333
        %v1100 = vpop.f32.mrf.mxu0
        %v1101 = vadd.f32 %v988, %v1100
        %1102 = vmatmul.f32.gmra.mxu0 %v335
        %v1103 = vpop.f32.mrf.mxu0
        %v1104 = vadd.f32 %v991, %v1103
        %1105 = vmatmul.f32.gmra.mxu0 %v337
        %v1106 = vpop.f32.mrf.mxu0
        %v1107 = vadd.f32 %v994, %v1106
        %1108 = vmatmul.f32.gmra.mxu0 %v339
        %v1109 = vpop.f32.mrf.mxu0
        %v1110 = vadd.f32 %v997, %v1109
        %1111 = vmatmul.f32.gmra.mxu0 %v341
        %v1112 = vpop.f32.mrf.mxu0
        %v1113 = vadd.f32 %v1000, %v1112
        %1114 = vmatmul.f32.gmra.mxu0 %v343
        %v1115 = vpop.f32.mrf.mxu0
        %v1116 = vadd.f32 %v1003, %v1115
        %1117 = vmatmul.f32.gmra.mxu0 %v345
        %v1118 = vpop.f32.mrf.mxu0
        %v1119 = vadd.f32 %v1006, %v1118
        %1120 = vmatmul.f32.gmra.mxu0 %v347
        %v1121 = vpop.f32.mrf.mxu0
        %v1122 = vadd.f32 %v1009, %v1121
        %1123 = vmatmul.f32.gmra.mxu0 %v349
        %v1124 = vpop.f32.mrf.mxu0
        %v1125 = vadd.f32 %v1012, %v1124
        %1126 = vmatmul.f32.gmra.mxu0 %v351
        %v1127 = vpop.f32.mrf.mxu0
        %v1128 = vadd.f32 %v1015, %v1127
        %1129 = vmatmul.f32.gmra.mxu0 %v353
        %v1130 = vpop.f32.mrf.mxu0
        %v1131 = vadd.f32 %v1018, %v1130
        %1132 = vmatmul.f32.gmra.mxu0 %v355
        %v1133 = vpop.f32.mrf.mxu0
        %v1134 = vadd.f32 %v1021, %v1133
        %1135 = vmatmul.f32.gmra.mxu0 %v357
        %v1136 = vpop.f32.mrf.mxu0
        %v1137 = vadd.f32 %v1024, %v1136
        %1138 = vmatmul.f32.gmra.mxu0 %v359
        %v1139 = vpop.f32.mrf.mxu0
        %v1140 = vadd.f32 %v1027, %v1139
        %1141 = vdwg.mxu0
        %v1142 = vmul.f32 %v595, 0.5
        %v1143 = vmul.f32 %v821, 0.5
        %v1144 = vmul.f32 %v1047, 0.5
        %v1145 = vmul.f32 %v598, 0.5
        %v1146 = vmul.f32 %v824, 0.5
        %v1147 = vmul.f32 %v1050, 0.5
        %v1148 = vmul.f32 %v601, 0.5
        %v1149 = vmul.f32 %v827, 0.5
        %v1150 = vmul.f32 %v1053, 0.5
        %v1151 = vmul.f32 %v604, 0.5
        %v1152 = vmul.f32 %v830, 0.5
        %v1153 = vmul.f32 %v1056, 0.5
        %v1154 = vmul.f32 %v607, 0.5
        %v1155 = vmul.f32 %v833, 0.5
        %v1156 = vmul.f32 %v1059, 0.5
        %v1157 = vmul.f32 %v610, 0.5
        %v1158 = vmul.f32 %v836, 0.5
        %v1159 = vmul.f32 %v1062, 0.5
        %v1160 = vmul.f32 %v613, 0.5
        %v1161 = vmul.f32 %v839, 0.5
        %v1162 = vmul.f32 %v1065, 0.5
        %v1163 = vmul.f32 %v616, 0.5
        %v1164 = vmul.f32 %v842, 0.5
        %v1165 = vmul.f32 %v1068, 0.5
        %v1166 = vmul.f32 %v619, 0.5
        %v1167 = vmul.f32 %v845, 0.5
        %v1168 = vmul.f32 %v1071, 0.5
        %v1169 = vmul.f32 %v622, 0.5
        %v1170 = vmul.f32 %v848, 0.5
        %v1171 = vmul.f32 %v1074, 0.5
        %v1172 = vmul.f32 %v625, 0.5
        %v1173 = vmul.f32 %v851, 0.5
        %v1174 = vmul.f32 %v1077, 0.5
        %v1175 = vmul.f32 %v628, 0.5
        %v1176 = vmul.f32 %v854, 0.5
        %v1177 = vmul.f32 %v1080, 0.5
        %v1178 = vmul.f32 %v631, 0.5
        %v1179 = vmul.f32 %v857, 0.5
        %v1180 = vmul.f32 %v1083, 0.5
        %v1181 = vmul.f32 %v634, 0.5
        %v1182 = vmul.f32 %v860, 0.5
        %v1183 = vmul.f32 %v1086, 0.5
        %v1184 = vmul.f32 %v637, 0.5
        %v1185 = vmul.f32 %v863, 0.5
        %v1186 = vmul.f32 %v1089, 0.5
        %v1187 = vmul.f32 %v640, 0.5
        %v1188 = vmul.f32 %v866, 0.5
        %v1189 = vmul.f32 %v1092, 0.5
        %v1190 = vmul.f32 %v643, 0.5
        %v1191 = vmul.f32 %v869, 0.5
        %v1192 = vmul.f32 %v1095, 0.5
        %v1193 = vmul.f32 %v646, 0.5
        %v1194 = vmul.f32 %v872, 0.5
        %v1195 = vmul.f32 %v1098, 0.5
        %v1196 = vmul.f32 %v649, 0.5
        %v1197 = vmul.f32 %v875, 0.5
        %v1198 = vmul.f32 %v1101, 0.5
        %v1199 = vmul.f32 %v652, 0.5
        %v1200 = vmul.f32 %v878, 0.5
        %v1201 = vmul.f32 %v1104, 0.5
        %v1202 = vmul.f32 %v655, 0.5
        %v1203 = vmul.f32 %v881, 0.5
        %v1204 = vmul.f32 %v1107, 0.5
        %v1205 = vmul.f32 %v658, 0.5
        %v1206 = vmul.f32 %v884, 0.5
        %v1207 = vmul.f32 %v1110, 0.5
        %v1208 = vmul.f32 %v661, 0.5
        %v1209 = vmul.f32 %v887, 0.5
        %v1210 = vmul.f32 %v1113, 0.5
        %v1211 = vmul.f32 %v664, 0.5
        %v1212 = vmul.f32 %v890, 0.5
        %v1213 = vmul.f32 %v1116, 0.5
        %v1214 = vmul.f32 %v667, 0.5
        %v1215 = vmul.f32 %v893, 0.5
        %v1216 = vmul.f32 %v1119, 0.5
        %v1217 = vmul.f32 %v670, 0.5
        %v1218 = vmul.f32 %v896, 0.5
        %v1219 = vmul.f32 %v1122, 0.5
        %v1220 = vmul.f32 %v673, 0.5
        %v1221 = vmul.f32 %v899, 0.5
        %v1222 = vmul.f32 %v1125, 0.5
        %v1223 = vmul.f32 %v676, 0.5
        %v1224 = vmul.f32 %v902, 0.5
        %v1225 = vmul.f32 %v1128, 0.5
        %v1226 = vmul.f32 %v679, 0.5
        %v1227 = vmul.f32 %v905, 0.5
        %v1228 = vmul.f32 %v1131, 0.5
        %v1229 = vmul.f32 %v682, 0.5
        %v1230 = vmul.f32 %v908, 0.5
        %v1231 = vmul.f32 %v1134, 0.5
        %v1232 = vmul.f32 %v685, 0.5
        %v1233 = vmul.f32 %v911, 0.5
        %v1234 = vmul.f32 %v1137, 0.5
        %v1235 = vmul.f32 %v688, 0.5
        %v1236 = vmul.f32 %v914, 0.5
        %v1237 = vmul.f32 %v1140, 0.5
        %v1238 = vmul.f32 %v595, 0.70710677
        %v1239 = vmul.f32 %v821, 0.70710677
        %v1240 = vmul.f32 %v1047, 0.70710677
        %v1241 = vmul.f32 %v598, 0.70710677
        %v1242 = vmul.f32 %v824, 0.70710677
        %v1243 = vmul.f32 %v1050, 0.70710677
        %v1244 = vmul.f32 %v601, 0.70710677
        %v1245 = vmul.f32 %v827, 0.70710677
        %v1246 = vmul.f32 %v1053, 0.70710677
        %v1247 = vmul.f32 %v604, 0.70710677
        %v1248 = vmul.f32 %v830, 0.70710677
        %v1249 = vmul.f32 %v1056, 0.70710677
        %v1250 = vmul.f32 %v607, 0.70710677
        %v1251 = vmul.f32 %v833, 0.70710677
        %v1252 = vmul.f32 %v1059, 0.70710677
        %v1253 = vmul.f32 %v610, 0.70710677
        %v1254 = vmul.f32 %v836, 0.70710677
        %v1255 = vmul.f32 %v1062, 0.70710677
        %v1256 = vmul.f32 %v613, 0.70710677
        %v1257 = vmul.f32 %v839, 0.70710677
        %v1258 = vmul.f32 %v1065, 0.70710677
        %v1259 = vmul.f32 %v616, 0.70710677
        %v1260 = vmul.f32 %v842, 0.70710677
        %v1261 = vmul.f32 %v1068, 0.70710677
        %v1262 = vmul.f32 %v619, 0.70710677
        %v1263 = vmul.f32 %v845, 0.70710677
        %v1264 = vmul.f32 %v1071, 0.70710677
        %v1265 = vmul.f32 %v622, 0.70710677
        %v1266 = vmul.f32 %v848, 0.70710677
        %v1267 = vmul.f32 %v1074, 0.70710677
        %v1268 = vmul.f32 %v625, 0.70710677
        %v1269 = vmul.f32 %v851, 0.70710677
        %v1270 = vmul.f32 %v1077, 0.70710677
        %v1271 = vmul.f32 %v628, 0.70710677
        %v1272 = vmul.f32 %v854, 0.70710677
        %v1273 = vmul.f32 %v1080, 0.70710677
        %v1274 = vmul.f32 %v631, 0.70710677
        %v1275 = vmul.f32 %v857, 0.70710677
        %v1276 = vmul.f32 %v1083, 0.70710677
        %v1277 = vmul.f32 %v634, 0.70710677
        %v1278 = vmul.f32 %v860, 0.70710677
        %v1279 = vmul.f32 %v1086, 0.70710677
        %v1280 = vmul.f32 %v637, 0.70710677
        %v1281 = vmul.f32 %v863, 0.70710677
        %v1282 = vmul.f32 %v1089, 0.70710677
        %v1283 = vmul.f32 %v640, 0.70710677
        %v1284 = vmul.f32 %v866, 0.70710677
        %v1285 = vmul.f32 %v1092, 0.70710677
        %v1286 = vmul.f32 %v643, 0.70710677
        %v1287 = vmul.f32 %v869, 0.70710677
        %v1288 = vmul.f32 %v1095, 0.70710677
        %v1289 = vmul.f32 %v646, 0.70710677
        %v1290 = vmul.f32 %v872, 0.70710677
        %v1291 = vmul.f32 %v1098, 0.70710677
        %v1292 = vmul.f32 %v649, 0.70710677
        %v1293 = vmul.f32 %v875, 0.70710677
        %v1294 = vmul.f32 %v1101, 0.70710677
        %v1295 = vmul.f32 %v652, 0.70710677
        %v1296 = vmul.f32 %v878, 0.70710677
        %v1297 = vmul.f32 %v1104, 0.70710677
        %v1298 = vmul.f32 %v655, 0.70710677
        %v1299 = vmul.f32 %v881, 0.70710677
        %v1300 = vmul.f32 %v1107, 0.70710677
        %v1301 = vmul.f32 %v658, 0.70710677
        %v1302 = vmul.f32 %v884, 0.70710677
        %v1303 = vmul.f32 %v1110, 0.70710677
        %v1304 = vmul.f32 %v661, 0.70710677
        %v1305 = vmul.f32 %v887, 0.70710677
        %v1306 = vmul.f32 %v1113, 0.70710677
        %v1307 = vmul.f32 %v664, 0.70710677
        %v1308 = vmul.f32 %v890, 0.70710677
        %v1309 = vmul.f32 %v1116, 0.70710677
        %v1310 = vmul.f32 %v667, 0.70710677
        %v1311 = vmul.f32 %v893, 0.70710677
        %v1312 = vmul.f32 %v1119, 0.70710677
        %v1313 = vmul.f32 %v670, 0.70710677
        %v1314 = vmul.f32 %v896, 0.70710677
        %v1315 = vmul.f32 %v1122, 0.70710677
        %v1316 = vmul.f32 %v673, 0.70710677
        %v1317 = vmul.f32 %v899, 0.70710677
        %v1318 = vmul.f32 %v1125, 0.70710677
        %v1319 = vmul.f32 %v676, 0.70710677
        %v1320 = vmul.f32 %v902, 0.70710677
        %v1321 = vmul.f32 %v1128, 0.70710677
        %v1322 = vmul.f32 %v679, 0.70710677
        %v1323 = vmul.f32 %v905, 0.70710677
        %v1324 = vmul.f32 %v1131, 0.70710677
        %v1325 = vmul.f32 %v682, 0.70710677
        %v1326 = vmul.f32 %v908, 0.70710677
        %v1327 = vmul.f32 %v1134, 0.70710677
        %v1328 = vmul.f32 %v685, 0.70710677
        %v1329 = vmul.f32 %v911, 0.70710677
        %v1330 = vmul.f32 %v1137, 0.70710677
        %v1331 = vmul.f32 %v688, 0.70710677
        %v1332 = vmul.f32 %v914, 0.70710677
        %v1333 = vmul.f32 %v1140, 0.70710677
        %v1334 = vmul.f32 %v1238, %v1238
        %v1335 = vmin.f32 16.0, %v1334
        %v1336 = vmul.f32 %v1335, 2.1237322e-06
        %v1337 = vadd.f32 %v1336, 0.00028619796
        %v1338 = vmul.f32 %v1335, %v1337
        %v1339 = vadd.f32 %v1338, 0.0036580483
        %v1340 = vmul.f32 %v1335, %v1339
        %v1341 = vadd.f32 %v1340, 0.05243302
        %v1342 = vmul.f32 %v1335, %v1341
        %v1343 = vadd.f32 %v1342, 0.18741608
        %v1344 = vmul.f32 %v1335, %v1343
        %v1345 = vadd.f32 %v1344, 1.1283791
        %v1346 = vmul.f32 %v1238, %v1345
        %v1347 = vmul.f32 %v1335, 3.8918573e-05
        %v1348 = vadd.f32 %v1347, 0.001143296
        %v1349 = vmul.f32 %v1335, %v1348
        %v1350 = vadd.f32 %v1349, 0.014752088
        %v1351 = vmul.f32 %v1335, %v1350
        %v1352 = vadd.f32 %v1351, 0.112945676
        %v1353 = vmul.f32 %v1335, %v1352
        %v1354 = vadd.f32 %v1353, 0.4994258
        %v1355 = vmul.f32 %v1335, %v1354
        %v1356 = vadd.f32 %v1355, 1.0
        %v1357 = vrcp.pop %v1356
        %v1358 = vmul.f32 %v1356, %v1357
        %v1359 = vsub.f32 1.0, %v1358
        %v1360 = vmul.f32 %v1357, %v1359
        %v1361 = vadd.f32 %v1357, %v1360
        %vm1362 = vweird.f32 %v1356
        %vm1363 = vweird.f32 %v1357
        %vm1364 = vmor %vm1362, %vm1363
        %v1365 = vsel %vm1364, %v1357, %v1361
        %v1366 = vand.u32 2147483647, %v1356
        %vm1367 = vcmp.eq.f32.partialorder %v1366, 8.507059e+37
        %v1368 = vand.u32 %v1356, 2147483648
        %v1369 = vor.u32 1.1754944e-38, %v1368
        %v1370 = vsel %vm1367, %v1369, %v1365
        %v1371 = vmul.f32 %v1346, %v1370
        %v1372 = vmin.f32 %v1371, 1.0
        %v1373 = vmax.f32 %v1372, -1.0
        %v1374 = vmul.f32 %v1239, %v1239
        %v1375 = vmin.f32 16.0, %v1374
        %v1376 = vmul.f32 %v1375, 2.1237322e-06
        %v1377 = vadd.f32 %v1376, 0.00028619796
        %v1378 = vmul.f32 %v1375, %v1377
        %v1379 = vadd.f32 %v1378, 0.0036580483
        %v1380 = vmul.f32 %v1375, %v1379
        %v1381 = vadd.f32 %v1380, 0.05243302
        %v1382 = vmul.f32 %v1375, %v1381
        %v1383 = vadd.f32 %v1382, 0.18741608
        %v1384 = vmul.f32 %v1375, %v1383
        %v1385 = vadd.f32 %v1384, 1.1283791
        %v1386 = vmul.f32 %v1239, %v1385
        %v1387 = vmul.f32 %v1375, 3.8918573e-05
        %v1388 = vadd.f32 %v1387, 0.001143296
        %v1389 = vmul.f32 %v1375, %v1388
        %v1390 = vadd.f32 %v1389, 0.014752088
        %v1391 = vmul.f32 %v1375, %v1390
        %v1392 = vadd.f32 %v1391, 0.112945676
        %v1393 = vmul.f32 %v1375, %v1392
        %v1394 = vadd.f32 %v1393, 0.4994258
        %v1395 = vmul.f32 %v1375, %v1394
        %v1396 = vadd.f32 %v1395, 1.0
        %v1397 = vrcp.pop %v1396
        %v1398 = vmul.f32 %v1396, %v1397
        %v1399 = vsub.f32 1.0, %v1398
        %v1400 = vmul.f32 %v1397, %v1399
        %v1401 = vadd.f32 %v1397, %v1400
        %vm1402 = vweird.f32 %v1396
        %vm1403 = vweird.f32 %v1397
        %vm1404 = vmor %vm1402, %vm1403
        %v1405 = vsel %vm1404, %v1397, %v1401
        %v1406 = vand.u32 2147483647, %v1396
        %vm1407 = vcmp.eq.f32.partialorder %v1406, 8.507059e+37
        %v1408 = vand.u32 %v1396, 2147483648
        %v1409 = vor.u32 1.1754944e-38, %v1408
        %v1410 = vsel %vm1407, %v1409, %v1405
        %v1411 = vmul.f32 %v1386, %v1410
        %v1412 = vmin.f32 %v1411, 1.0
        %v1413 = vmax.f32 %v1412, -1.0
        %v1414 = vmul.f32 %v1240, %v1240
        %v1415 = vmin.f32 16.0, %v1414
        %v1416 = vmul.f32 %v1415, 2.1237322e-06
        %v1417 = vadd.f32 %v1416, 0.00028619796
        %v1418 = vmul.f32 %v1415, %v1417
        %v1419 = vadd.f32 %v1418, 0.0036580483
        %v1420 = vmul.f32 %v1415, %v1419
        %v1421 = vadd.f32 %v1420, 0.05243302
        %v1422 = vmul.f32 %v1415, %v1421
        %v1423 = vadd.f32 %v1422, 0.18741608
        %v1424 = vmul.f32 %v1415, %v1423
        %v1425 = vadd.f32 %v1424, 1.1283791
        %v1426 = vmul.f32 %v1240, %v1425
        %v1427 = vmul.f32 %v1415, 3.8918573e-05
        %v1428 = vadd.f32 %v1427, 0.001143296
        %v1429 = vmul.f32 %v1415, %v1428
        %v1430 = vadd.f32 %v1429, 0.014752088
        %v1431 = vmul.f32 %v1415, %v1430
        %v1432 = vadd.f32 %v1431, 0.112945676
        %v1433 = vmul.f32 %v1415, %v1432
        %v1434 = vadd.f32 %v1433, 0.4994258
        %v1435 = vmul.f32 %v1415, %v1434
        %v1436 = vadd.f32 %v1435, 1.0
        %v1437 = vrcp.pop %v1436
        %v1438 = vmul.f32 %v1436, %v1437
        %v1439 = vsub.f32 1.0, %v1438
        %v1440 = vmul.f32 %v1437, %v1439
        %v1441 = vadd.f32 %v1437, %v1440
        %vm1442 = vweird.f32 %v1436
        %vm1443 = vweird.f32 %v1437
        %vm1444 = vmor %vm1442, %vm1443
        %v1445 = vsel %vm1444, %v1437, %v1441
        %v1446 = vand.u32 2147483647, %v1436
        %vm1447 = vcmp.eq.f32.partialorder %v1446, 8.507059e+37
        %v1448 = vand.u32 %v1436, 2147483648
        %v1449 = vor.u32 1.1754944e-38, %v1448
        %v1450 = vsel %vm1447, %v1449, %v1445
        %v1451 = vmul.f32 %v1426, %v1450
        %v1452 = vmin.f32 %v1451, 1.0
        %v1453 = vmax.f32 %v1452, -1.0
        %v1454 = vmul.f32 %v1241, %v1241
        %v1455 = vmin.f32 16.0, %v1454
        %v1456 = vmul.f32 %v1455, 2.1237322e-06
        %v1457 = vadd.f32 %v1456, 0.00028619796
        %v1458 = vmul.f32 %v1455, %v1457
        %v1459 = vadd.f32 %v1458, 0.0036580483
        %v1460 = vmul.f32 %v1455, %v1459
        %v1461 = vadd.f32 %v1460, 0.05243302
        %v1462 = vmul.f32 %v1455, %v1461
        %v1463 = vadd.f32 %v1462, 0.18741608
        %v1464 = vmul.f32 %v1455, %v1463
        %v1465 = vadd.f32 %v1464, 1.1283791
        %v1466 = vmul.f32 %v1241, %v1465
        %v1467 = vmul.f32 %v1455, 3.8918573e-05
        %v1468 = vadd.f32 %v1467, 0.001143296
        %v1469 = vmul.f32 %v1455, %v1468
        %v1470 = vadd.f32 %v1469, 0.014752088
        %v1471 = vmul.f32 %v1455, %v1470
        %v1472 = vadd.f32 %v1471, 0.112945676
        %v1473 = vmul.f32 %v1455, %v1472
        %v1474 = vadd.f32 %v1473, 0.4994258
        %v1475 = vmul.f32 %v1455, %v1474
        %v1476 = vadd.f32 %v1475, 1.0
        %v1477 = vrcp.pop %v1476
        %v1478 = vmul.f32 %v1476, %v1477
        %v1479 = vsub.f32 1.0, %v1478
        %v1480 = vmul.f32 %v1477, %v1479
        %v1481 = vadd.f32 %v1477, %v1480
        %vm1482 = vweird.f32 %v1476
        %vm1483 = vweird.f32 %v1477
        %vm1484 = vmor %vm1482, %vm1483
        %v1485 = vsel %vm1484, %v1477, %v1481
        %v1486 = vand.u32 2147483647, %v1476
        %vm1487 = vcmp.eq.f32.partialorder %v1486, 8.507059e+37
        %v1488 = vand.u32 %v1476, 2147483648
        %v1489 = vor.u32 1.1754944e-38, %v1488
        %v1490 = vsel %vm1487, %v1489, %v1485
        %v1491 = vmul.f32 %v1466, %v1490
        %v1492 = vmin.f32 %v1491, 1.0
        %v1493 = vmax.f32 %v1492, -1.0
        %v1494 = vmul.f32 %v1242, %v1242
        %v1495 = vmin.f32 16.0, %v1494
        %v1496 = vmul.f32 %v1495, 2.1237322e-06
        %v1497 = vadd.f32 %v1496, 0.00028619796
        %v1498 = vmul.f32 %v1495, %v1497
        %v1499 = vadd.f32 %v1498, 0.0036580483
        %v1500 = vmul.f32 %v1495, %v1499
        %v1501 = vadd.f32 %v1500, 0.05243302
        %v1502 = vmul.f32 %v1495, %v1501
        %v1503 = vadd.f32 %v1502, 0.18741608
        %v1504 = vmul.f32 %v1495, %v1503
        %v1505 = vadd.f32 %v1504, 1.1283791
        %v1506 = vmul.f32 %v1242, %v1505
        %v1507 = vmul.f32 %v1495, 3.8918573e-05
        %v1508 = vadd.f32 %v1507, 0.001143296
        %v1509 = vmul.f32 %v1495, %v1508
        %v1510 = vadd.f32 %v1509, 0.014752088
        %v1511 = vmul.f32 %v1495, %v1510
        %v1512 = vadd.f32 %v1511, 0.112945676
        %v1513 = vmul.f32 %v1495, %v1512
        %v1514 = vadd.f32 %v1513, 0.4994258
        %v1515 = vmul.f32 %v1495, %v1514
        %v1516 = vadd.f32 %v1515, 1.0
        %v1517 = vrcp.pop %v1516
        %v1518 = vmul.f32 %v1516, %v1517
        %v1519 = vsub.f32 1.0, %v1518
        %v1520 = vmul.f32 %v1517, %v1519
        %v1521 = vadd.f32 %v1517, %v1520
        %vm1522 = vweird.f32 %v1516
        %vm1523 = vweird.f32 %v1517
        %vm1524 = vmor %vm1522, %vm1523
        %v1525 = vsel %vm1524, %v1517, %v1521
        %v1526 = vand.u32 2147483647, %v1516
        %vm1527 = vcmp.eq.f32.partialorder %v1526, 8.507059e+37
        %v1528 = vand.u32 %v1516, 2147483648
        %v1529 = vor.u32 1.1754944e-38, %v1528
        %v1530 = vsel %vm1527, %v1529, %v1525
        %v1531 = vmul.f32 %v1506, %v1530
        %v1532 = vmin.f32 %v1531, 1.0
        %v1533 = vmax.f32 %v1532, -1.0
        %v1534 = vmul.f32 %v1243, %v1243
        %v1535 = vmin.f32 16.0, %v1534
        %v1536 = vmul.f32 %v1535, 2.1237322e-06
        %v1537 = vadd.f32 %v1536, 0.00028619796
        %v1538 = vmul.f32 %v1535, %v1537
        %v1539 = vadd.f32 %v1538, 0.0036580483
        %v1540 = vmul.f32 %v1535, %v1539
        %v1541 = vadd.f32 %v1540, 0.05243302
        %v1542 = vmul.f32 %v1535, %v1541
        %v1543 = vadd.f32 %v1542, 0.18741608
        %v1544 = vmul.f32 %v1535, %v1543
        %v1545 = vadd.f32 %v1544, 1.1283791
        %v1546 = vmul.f32 %v1243, %v1545
        %v1547 = vmul.f32 %v1535, 3.8918573e-05
        %v1548 = vadd.f32 %v1547, 0.001143296
        %v1549 = vmul.f32 %v1535, %v1548
        %v1550 = vadd.f32 %v1549, 0.014752088
        %v1551 = vmul.f32 %v1535, %v1550
        %v1552 = vadd.f32 %v1551, 0.112945676
        %v1553 = vmul.f32 %v1535, %v1552
        %v1554 = vadd.f32 %v1553, 0.4994258
        %v1555 = vmul.f32 %v1535, %v1554
        %v1556 = vadd.f32 %v1555, 1.0
        %v1557 = vrcp.pop %v1556
        %v1558 = vmul.f32 %v1556, %v1557
        %v1559 = vsub.f32 1.0, %v1558
        %v1560 = vmul.f32 %v1557, %v1559
        %v1561 = vadd.f32 %v1557, %v1560
        %vm1562 = vweird.f32 %v1556
        %vm1563 = vweird.f32 %v1557
        %vm1564 = vmor %vm1562, %vm1563
        %v1565 = vsel %vm1564, %v1557, %v1561
        %v1566 = vand.u32 2147483647, %v1556
        %vm1567 = vcmp.eq.f32.partialorder %v1566, 8.507059e+37
        %v1568 = vand.u32 %v1556, 2147483648
        %v1569 = vor.u32 1.1754944e-38, %v1568
        %v1570 = vsel %vm1567, %v1569, %v1565
        %v1571 = vmul.f32 %v1546, %v1570
        %v1572 = vmin.f32 %v1571, 1.0
        %v1573 = vmax.f32 %v1572, -1.0
        %v1574 = vmul.f32 %v1244, %v1244
        %v1575 = vmin.f32 16.0, %v1574
        %v1576 = vmul.f32 %v1575, 2.1237322e-06
        %v1577 = vadd.f32 %v1576, 0.00028619796
        %v1578 = vmul.f32 %v1575, %v1577
        %v1579 = vadd.f32 %v1578, 0.0036580483
        %v1580 = vmul.f32 %v1575, %v1579
        %v1581 = vadd.f32 %v1580, 0.05243302
        %v1582 = vmul.f32 %v1575, %v1581
        %v1583 = vadd.f32 %v1582, 0.18741608
        %v1584 = vmul.f32 %v1575, %v1583
        %v1585 = vadd.f32 %v1584, 1.1283791
        %v1586 = vmul.f32 %v1244, %v1585
        %v1587 = vmul.f32 %v1575, 3.8918573e-05
        %v1588 = vadd.f32 %v1587, 0.001143296
        %v1589 = vmul.f32 %v1575, %v1588
        %v1590 = vadd.f32 %v1589, 0.014752088
        %v1591 = vmul.f32 %v1575, %v1590
        %v1592 = vadd.f32 %v1591, 0.112945676
        %v1593 = vmul.f32 %v1575, %v1592
        %v1594 = vadd.f32 %v1593, 0.4994258
        %v1595 = vmul.f32 %v1575, %v1594
        %v1596 = vadd.f32 %v1595, 1.0
        %v1597 = vrcp.pop %v1596
        %v1598 = vmul.f32 %v1596, %v1597
        %v1599 = vsub.f32 1.0, %v1598
        %v1600 = vmul.f32 %v1597, %v1599
        %v1601 = vadd.f32 %v1597, %v1600
        %vm1602 = vweird.f32 %v1596
        %vm1603 = vweird.f32 %v1597
        %vm1604 = vmor %vm1602, %vm1603
        %v1605 = vsel %vm1604, %v1597, %v1601
        %v1606 = vand.u32 2147483647, %v1596
        %vm1607 = vcmp.eq.f32.partialorder %v1606, 8.507059e+37
        %v1608 = vand.u32 %v1596, 2147483648
        %v1609 = vor.u32 1.1754944e-38, %v1608
        %v1610 = vsel %vm1607, %v1609, %v1605
        %v1611 = vmul.f32 %v1586, %v1610
        %v1612 = vmin.f32 %v1611, 1.0
        %v1613 = vmax.f32 %v1612, -1.0
        %v1614 = vmul.f32 %v1245, %v1245
        %v1615 = vmin.f32 16.0, %v1614
        %v1616 = vmul.f32 %v1615, 2.1237322e-06
        %v1617 = vadd.f32 %v1616, 0.00028619796
        %v1618 = vmul.f32 %v1615, %v1617
        %v1619 = vadd.f32 %v1618, 0.0036580483
        %v1620 = vmul.f32 %v1615, %v1619
        %v1621 = vadd.f32 %v1620, 0.05243302
        %v1622 = vmul.f32 %v1615, %v1621
        %v1623 = vadd.f32 %v1622, 0.18741608
        %v1624 = vmul.f32 %v1615, %v1623
        %v1625 = vadd.f32 %v1624, 1.1283791
        %v1626 = vmul.f32 %v1245, %v1625
        %v1627 = vmul.f32 %v1615, 3.8918573e-05
        %v1628 = vadd.f32 %v1627, 0.001143296
        %v1629 = vmul.f32 %v1615, %v1628
        %v1630 = vadd.f32 %v1629, 0.014752088
        %v1631 = vmul.f32 %v1615, %v1630
        %v1632 = vadd.f32 %v1631, 0.112945676
        %v1633 = vmul.f32 %v1615, %v1632
        %v1634 = vadd.f32 %v1633, 0.4994258
        %v1635 = vmul.f32 %v1615, %v1634
        %v1636 = vadd.f32 %v1635, 1.0
        %v1637 = vrcp.pop %v1636
        %v1638 = vmul.f32 %v1636, %v1637
        %v1639 = vsub.f32 1.0, %v1638
        %v1640 = vmul.f32 %v1637, %v1639
        %v1641 = vadd.f32 %v1637, %v1640
        %vm1642 = vweird.f32 %v1636
        %vm1643 = vweird.f32 %v1637
        %vm1644 = vmor %vm1642, %vm1643
        %v1645 = vsel %vm1644, %v1637, %v1641
        %v1646 = vand.u32 2147483647, %v1636
        %vm1647 = vcmp.eq.f32.partialorder %v1646, 8.507059e+37
        %v1648 = vand.u32 %v1636, 2147483648
        %v1649 = vor.u32 1.1754944e-38, %v1648
        %v1650 = vsel %vm1647, %v1649, %v1645
        %v1651 = vmul.f32 %v1626, %v1650
        %v1652 = vmin.f32 %v1651, 1.0
        %v1653 = vmax.f32 %v1652, -1.0
        %v1654 = vmul.f32 %v1246, %v1246
        %v1655 = vmin.f32 16.0, %v1654
        %v1656 = vmul.f32 %v1655, 2.1237322e-06
        %v1657 = vadd.f32 %v1656, 0.00028619796
        %v1658 = vmul.f32 %v1655, %v1657
        %v1659 = vadd.f32 %v1658, 0.0036580483
        %v1660 = vmul.f32 %v1655, %v1659
        %v1661 = vadd.f32 %v1660, 0.05243302
        %v1662 = vmul.f32 %v1655, %v1661
        %v1663 = vadd.f32 %v1662, 0.18741608
        %v1664 = vmul.f32 %v1655, %v1663
        %v1665 = vadd.f32 %v1664, 1.1283791
        %v1666 = vmul.f32 %v1246, %v1665
        %v1667 = vmul.f32 %v1655, 3.8918573e-05
        %v1668 = vadd.f32 %v1667, 0.001143296
        %v1669 = vmul.f32 %v1655, %v1668
        %v1670 = vadd.f32 %v1669, 0.014752088
        %v1671 = vmul.f32 %v1655, %v1670
        %v1672 = vadd.f32 %v1671, 0.112945676
        %v1673 = vmul.f32 %v1655, %v1672
        %v1674 = vadd.f32 %v1673, 0.4994258
        %v1675 = vmul.f32 %v1655, %v1674
        %v1676 = vadd.f32 %v1675, 1.0
        %v1677 = vrcp.pop %v1676
        %v1678 = vmul.f32 %v1676, %v1677
        %v1679 = vsub.f32 1.0, %v1678
        %v1680 = vmul.f32 %v1677, %v1679
        %v1681 = vadd.f32 %v1677, %v1680
        %vm1682 = vweird.f32 %v1676
        %vm1683 = vweird.f32 %v1677
        %vm1684 = vmor %vm1682, %vm1683
        %v1685 = vsel %vm1684, %v1677, %v1681
        %v1686 = vand.u32 2147483647, %v1676
        %vm1687 = vcmp.eq.f32.partialorder %v1686, 8.507059e+37
        %v1688 = vand.u32 %v1676, 2147483648
        %v1689 = vor.u32 1.1754944e-38, %v1688
        %v1690 = vsel %vm1687, %v1689, %v1685
        %v1691 = vmul.f32 %v1666, %v1690
        %v1692 = vmin.f32 %v1691, 1.0
        %v1693 = vmax.f32 %v1692, -1.0
        %v1694 = vmul.f32 %v1247, %v1247
        %v1695 = vmin.f32 16.0, %v1694
        %v1696 = vmul.f32 %v1695, 2.1237322e-06
        %v1697 = vadd.f32 %v1696, 0.00028619796
        %v1698 = vmul.f32 %v1695, %v1697
        %v1699 = vadd.f32 %v1698, 0.0036580483
        %v1700 = vmul.f32 %v1695, %v1699
        %v1701 = vadd.f32 %v1700, 0.05243302
        %v1702 = vmul.f32 %v1695, %v1701
        %v1703 = vadd.f32 %v1702, 0.18741608
        %v1704 = vmul.f32 %v1695, %v1703
        %v1705 = vadd.f32 %v1704, 1.1283791
        %v1706 = vmul.f32 %v1247, %v1705
        %v1707 = vmul.f32 %v1695, 3.8918573e-05
        %v1708 = vadd.f32 %v1707, 0.001143296
        %v1709 = vmul.f32 %v1695, %v1708
        %v1710 = vadd.f32 %v1709, 0.014752088
        %v1711 = vmul.f32 %v1695, %v1710
        %v1712 = vadd.f32 %v1711, 0.112945676
        %v1713 = vmul.f32 %v1695, %v1712
        %v1714 = vadd.f32 %v1713, 0.4994258
        %v1715 = vmul.f32 %v1695, %v1714
        %v1716 = vadd.f32 %v1715, 1.0
        %v1717 = vrcp.pop %v1716
        %v1718 = vmul.f32 %v1716, %v1717
        %v1719 = vsub.f32 1.0, %v1718
        %v1720 = vmul.f32 %v1717, %v1719
        %v1721 = vadd.f32 %v1717, %v1720
        %vm1722 = vweird.f32 %v1716
        %vm1723 = vweird.f32 %v1717
        %vm1724 = vmor %vm1722, %vm1723
        %v1725 = vsel %vm1724, %v1717, %v1721
        %v1726 = vand.u32 2147483647, %v1716
        %vm1727 = vcmp.eq.f32.partialorder %v1726, 8.507059e+37
        %v1728 = vand.u32 %v1716, 2147483648
        %v1729 = vor.u32 1.1754944e-38, %v1728
        %v1730 = vsel %vm1727, %v1729, %v1725
        %v1731 = vmul.f32 %v1706, %v1730
        %v1732 = vmin.f32 %v1731, 1.0
        %v1733 = vmax.f32 %v1732, -1.0
        %v1734 = vmul.f32 %v1248, %v1248
        %v1735 = vmin.f32 16.0, %v1734
        %v1736 = vmul.f32 %v1735, 2.1237322e-06
        %v1737 = vadd.f32 %v1736, 0.00028619796
        %v1738 = vmul.f32 %v1735, %v1737
        %v1739 = vadd.f32 %v1738, 0.0036580483
        %v1740 = vmul.f32 %v1735, %v1739
        %v1741 = vadd.f32 %v1740, 0.05243302
        %v1742 = vmul.f32 %v1735, %v1741
        %v1743 = vadd.f32 %v1742, 0.18741608
        %v1744 = vmul.f32 %v1735, %v1743
        %v1745 = vadd.f32 %v1744, 1.1283791
        %v1746 = vmul.f32 %v1248, %v1745
        %v1747 = vmul.f32 %v1735, 3.8918573e-05
        %v1748 = vadd.f32 %v1747, 0.001143296
        %v1749 = vmul.f32 %v1735, %v1748
        %v1750 = vadd.f32 %v1749, 0.014752088
        %v1751 = vmul.f32 %v1735, %v1750
        %v1752 = vadd.f32 %v1751, 0.112945676
        %v1753 = vmul.f32 %v1735, %v1752
        %v1754 = vadd.f32 %v1753, 0.4994258
        %v1755 = vmul.f32 %v1735, %v1754
        %v1756 = vadd.f32 %v1755, 1.0
        %v1757 = vrcp.pop %v1756
        %v1758 = vmul.f32 %v1756, %v1757
        %v1759 = vsub.f32 1.0, %v1758
        %v1760 = vmul.f32 %v1757, %v1759
        %v1761 = vadd.f32 %v1757, %v1760
        %vm1762 = vweird.f32 %v1756
        %vm1763 = vweird.f32 %v1757
        %vm1764 = vmor %vm1762, %vm1763
        %v1765 = vsel %vm1764, %v1757, %v1761
        %v1766 = vand.u32 2147483647, %v1756
        %vm1767 = vcmp.eq.f32.partialorder %v1766, 8.507059e+37
        %v1768 = vand.u32 %v1756, 2147483648
        %v1769 = vor.u32 1.1754944e-38, %v1768
        %v1770 = vsel %vm1767, %v1769, %v1765
        %v1771 = vmul.f32 %v1746, %v1770
        %v1772 = vmin.f32 %v1771, 1.0
        %v1773 = vmax.f32 %v1772, -1.0
        %v1774 = vmul.f32 %v1249, %v1249
        %v1775 = vmin.f32 16.0, %v1774
        %v1776 = vmul.f32 %v1775, 2.1237322e-06
        %v1777 = vadd.f32 %v1776, 0.00028619796
        %v1778 = vmul.f32 %v1775, %v1777
        %v1779 = vadd.f32 %v1778, 0.0036580483
        %v1780 = vmul.f32 %v1775, %v1779
        %v1781 = vadd.f32 %v1780, 0.05243302
        %v1782 = vmul.f32 %v1775, %v1781
        %v1783 = vadd.f32 %v1782, 0.18741608
        %v1784 = vmul.f32 %v1775, %v1783
        %v1785 = vadd.f32 %v1784, 1.1283791
        %v1786 = vmul.f32 %v1249, %v1785
        %v1787 = vmul.f32 %v1775, 3.8918573e-05
        %v1788 = vadd.f32 %v1787, 0.001143296
        %v1789 = vmul.f32 %v1775, %v1788
        %v1790 = vadd.f32 %v1789, 0.014752088
        %v1791 = vmul.f32 %v1775, %v1790
        %v1792 = vadd.f32 %v1791, 0.112945676
        %v1793 = vmul.f32 %v1775, %v1792
        %v1794 = vadd.f32 %v1793, 0.4994258
        %v1795 = vmul.f32 %v1775, %v1794
        %v1796 = vadd.f32 %v1795, 1.0
        %v1797 = vrcp.pop %v1796
        %v1798 = vmul.f32 %v1796, %v1797
        %v1799 = vsub.f32 1.0, %v1798
        %v1800 = vmul.f32 %v1797, %v1799
        %v1801 = vadd.f32 %v1797, %v1800
        %vm1802 = vweird.f32 %v1796
        %vm1803 = vweird.f32 %v1797
        %vm1804 = vmor %vm1802, %vm1803
        %v1805 = vsel %vm1804, %v1797, %v1801
        %v1806 = vand.u32 2147483647, %v1796
        %vm1807 = vcmp.eq.f32.partialorder %v1806, 8.507059e+37
        %v1808 = vand.u32 %v1796, 2147483648
        %v1809 = vor.u32 1.1754944e-38, %v1808
        %v1810 = vsel %vm1807, %v1809, %v1805
        %v1811 = vmul.f32 %v1786, %v1810
        %v1812 = vmin.f32 %v1811, 1.0
        %v1813 = vmax.f32 %v1812, -1.0
        %v1814 = vmul.f32 %v1250, %v1250
        %v1815 = vmin.f32 16.0, %v1814
        %v1816 = vmul.f32 %v1815, 2.1237322e-06
        %v1817 = vadd.f32 %v1816, 0.00028619796
        %v1818 = vmul.f32 %v1815, %v1817
        %v1819 = vadd.f32 %v1818, 0.0036580483
        %v1820 = vmul.f32 %v1815, %v1819
        %v1821 = vadd.f32 %v1820, 0.05243302
        %v1822 = vmul.f32 %v1815, %v1821
        %v1823 = vadd.f32 %v1822, 0.18741608
        %v1824 = vmul.f32 %v1815, %v1823
        %v1825 = vadd.f32 %v1824, 1.1283791
        %v1826 = vmul.f32 %v1250, %v1825
        %v1827 = vmul.f32 %v1815, 3.8918573e-05
        %v1828 = vadd.f32 %v1827, 0.001143296
        %v1829 = vmul.f32 %v1815, %v1828
        %v1830 = vadd.f32 %v1829, 0.014752088
        %v1831 = vmul.f32 %v1815, %v1830
        %v1832 = vadd.f32 %v1831, 0.112945676
        %v1833 = vmul.f32 %v1815, %v1832
        %v1834 = vadd.f32 %v1833, 0.4994258
        %v1835 = vmul.f32 %v1815, %v1834
        %v1836 = vadd.f32 %v1835, 1.0
        %v1837 = vrcp.pop %v1836
        %v1838 = vmul.f32 %v1836, %v1837
        %v1839 = vsub.f32 1.0, %v1838
        %v1840 = vmul.f32 %v1837, %v1839
        %v1841 = vadd.f32 %v1837, %v1840
        %vm1842 = vweird.f32 %v1836
        %vm1843 = vweird.f32 %v1837
        %vm1844 = vmor %vm1842, %vm1843
        %v1845 = vsel %vm1844, %v1837, %v1841
        %v1846 = vand.u32 2147483647, %v1836
        %vm1847 = vcmp.eq.f32.partialorder %v1846, 8.507059e+37
        %v1848 = vand.u32 %v1836, 2147483648
        %v1849 = vor.u32 1.1754944e-38, %v1848
        %v1850 = vsel %vm1847, %v1849, %v1845
        %v1851 = vmul.f32 %v1826, %v1850
        %v1852 = vmin.f32 %v1851, 1.0
        %v1853 = vmax.f32 %v1852, -1.0
        %v1854 = vmul.f32 %v1251, %v1251
        %v1855 = vmin.f32 16.0, %v1854
        %v1856 = vmul.f32 %v1855, 2.1237322e-06
        %v1857 = vadd.f32 %v1856, 0.00028619796
        %v1858 = vmul.f32 %v1855, %v1857
        %v1859 = vadd.f32 %v1858, 0.0036580483
        %v1860 = vmul.f32 %v1855, %v1859
        %v1861 = vadd.f32 %v1860, 0.05243302
        %v1862 = vmul.f32 %v1855, %v1861
        %v1863 = vadd.f32 %v1862, 0.18741608
        %v1864 = vmul.f32 %v1855, %v1863
        %v1865 = vadd.f32 %v1864, 1.1283791
        %v1866 = vmul.f32 %v1251, %v1865
        %v1867 = vmul.f32 %v1855, 3.8918573e-05
        %v1868 = vadd.f32 %v1867, 0.001143296
        %v1869 = vmul.f32 %v1855, %v1868
        %v1870 = vadd.f32 %v1869, 0.014752088
        %v1871 = vmul.f32 %v1855, %v1870
        %v1872 = vadd.f32 %v1871, 0.112945676
        %v1873 = vmul.f32 %v1855, %v1872
        %v1874 = vadd.f32 %v1873, 0.4994258
        %v1875 = vmul.f32 %v1855, %v1874
        %v1876 = vadd.f32 %v1875, 1.0
        %v1877 = vrcp.pop %v1876
        %v1878 = vmul.f32 %v1876, %v1877
        %v1879 = vsub.f32 1.0, %v1878
        %v1880 = vmul.f32 %v1877, %v1879
        %v1881 = vadd.f32 %v1877, %v1880
        %vm1882 = vweird.f32 %v1876
        %vm1883 = vweird.f32 %v1877
        %vm1884 = vmor %vm1882, %vm1883
        %v1885 = vsel %vm1884, %v1877, %v1881
        %v1886 = vand.u32 2147483647, %v1876
        %vm1887 = vcmp.eq.f32.partialorder %v1886, 8.507059e+37
        %v1888 = vand.u32 %v1876, 2147483648
        %v1889 = vor.u32 1.1754944e-38, %v1888
        %v1890 = vsel %vm1887, %v1889, %v1885
        %v1891 = vmul.f32 %v1866, %v1890
        %v1892 = vmin.f32 %v1891, 1.0
        %v1893 = vmax.f32 %v1892, -1.0
        %v1894 = vmul.f32 %v1252, %v1252
        %v1895 = vmin.f32 16.0, %v1894
        %v1896 = vmul.f32 %v1895, 2.1237322e-06
        %v1897 = vadd.f32 %v1896, 0.00028619796
        %v1898 = vmul.f32 %v1895, %v1897
        %v1899 = vadd.f32 %v1898, 0.0036580483
        %v1900 = vmul.f32 %v1895, %v1899
        %v1901 = vadd.f32 %v1900, 0.05243302
        %v1902 = vmul.f32 %v1895, %v1901
        %v1903 = vadd.f32 %v1902, 0.18741608
        %v1904 = vmul.f32 %v1895, %v1903
        %v1905 = vadd.f32 %v1904, 1.1283791
        %v1906 = vmul.f32 %v1252, %v1905
        %v1907 = vmul.f32 %v1895, 3.8918573e-05
        %v1908 = vadd.f32 %v1907, 0.001143296
        %v1909 = vmul.f32 %v1895, %v1908
        %v1910 = vadd.f32 %v1909, 0.014752088
        %v1911 = vmul.f32 %v1895, %v1910
        %v1912 = vadd.f32 %v1911, 0.112945676
        %v1913 = vmul.f32 %v1895, %v1912
        %v1914 = vadd.f32 %v1913, 0.4994258
        %v1915 = vmul.f32 %v1895, %v1914
        %v1916 = vadd.f32 %v1915, 1.0
        %v1917 = vrcp.pop %v1916
        %v1918 = vmul.f32 %v1916, %v1917
        %v1919 = vsub.f32 1.0, %v1918
        %v1920 = vmul.f32 %v1917, %v1919
        %v1921 = vadd.f32 %v1917, %v1920
        %vm1922 = vweird.f32 %v1916
        %vm1923 = vweird.f32 %v1917
        %vm1924 = vmor %vm1922, %vm1923
        %v1925 = vsel %vm1924, %v1917, %v1921
        %v1926 = vand.u32 2147483647, %v1916
        %vm1927 = vcmp.eq.f32.partialorder %v1926, 8.507059e+37
        %v1928 = vand.u32 %v1916, 2147483648
        %v1929 = vor.u32 1.1754944e-38, %v1928
        %v1930 = vsel %vm1927, %v1929, %v1925
        %v1931 = vmul.f32 %v1906, %v1930
        %v1932 = vmin.f32 %v1931, 1.0
        %v1933 = vmax.f32 %v1932, -1.0
        %v1934 = vmul.f32 %v1253, %v1253
        %v1935 = vmin.f32 16.0, %v1934
        %v1936 = vmul.f32 %v1935, 2.1237322e-06
        %v1937 = vadd.f32 %v1936, 0.00028619796
        %v1938 = vmul.f32 %v1935, %v1937
        %v1939 = vadd.f32 %v1938, 0.0036580483
        %v1940 = vmul.f32 %v1935, %v1939
        %v1941 = vadd.f32 %v1940, 0.05243302
        %v1942 = vmul.f32 %v1935, %v1941
        %v1943 = vadd.f32 %v1942, 0.18741608
        %v1944 = vmul.f32 %v1935, %v1943
        %v1945 = vadd.f32 %v1944, 1.1283791
        %v1946 = vmul.f32 %v1253, %v1945
        %v1947 = vmul.f32 %v1935, 3.8918573e-05
        %v1948 = vadd.f32 %v1947, 0.001143296
        %v1949 = vmul.f32 %v1935, %v1948
        %v1950 = vadd.f32 %v1949, 0.014752088
        %v1951 = vmul.f32 %v1935, %v1950
        %v1952 = vadd.f32 %v1951, 0.112945676
        %v1953 = vmul.f32 %v1935, %v1952
        %v1954 = vadd.f32 %v1953, 0.4994258
        %v1955 = vmul.f32 %v1935, %v1954
        %v1956 = vadd.f32 %v1955, 1.0
        %v1957 = vrcp.pop %v1956
        %v1958 = vmul.f32 %v1956, %v1957
        %v1959 = vsub.f32 1.0, %v1958
        %v1960 = vmul.f32 %v1957, %v1959
        %v1961 = vadd.f32 %v1957, %v1960
        %vm1962 = vweird.f32 %v1956
        %vm1963 = vweird.f32 %v1957
        %vm1964 = vmor %vm1962, %vm1963
        %v1965 = vsel %vm1964, %v1957, %v1961
        %v1966 = vand.u32 2147483647, %v1956
        %vm1967 = vcmp.eq.f32.partialorder %v1966, 8.507059e+37
        %v1968 = vand.u32 %v1956, 2147483648
        %v1969 = vor.u32 1.1754944e-38, %v1968
        %v1970 = vsel %vm1967, %v1969, %v1965
        %v1971 = vmul.f32 %v1946, %v1970
        %v1972 = vmin.f32 %v1971, 1.0
        %v1973 = vmax.f32 %v1972, -1.0
        %v1974 = vmul.f32 %v1254, %v1254
        %v1975 = vmin.f32 16.0, %v1974
        %v1976 = vmul.f32 %v1975, 2.1237322e-06
        %v1977 = vadd.f32 %v1976, 0.00028619796
        %v1978 = vmul.f32 %v1975, %v1977
        %v1979 = vadd.f32 %v1978, 0.0036580483
        %v1980 = vmul.f32 %v1975, %v1979
        %v1981 = vadd.f32 %v1980, 0.05243302
        %v1982 = vmul.f32 %v1975, %v1981
        %v1983 = vadd.f32 %v1982, 0.18741608
        %v1984 = vmul.f32 %v1975, %v1983
        %v1985 = vadd.f32 %v1984, 1.1283791
        %v1986 = vmul.f32 %v1254, %v1985
        %v1987 = vmul.f32 %v1975, 3.8918573e-05
        %v1988 = vadd.f32 %v1987, 0.001143296
        %v1989 = vmul.f32 %v1975, %v1988
        %v1990 = vadd.f32 %v1989, 0.014752088
        %v1991 = vmul.f32 %v1975, %v1990
        %v1992 = vadd.f32 %v1991, 0.112945676
        %v1993 = vmul.f32 %v1975, %v1992
        %v1994 = vadd.f32 %v1993, 0.4994258
        %v1995 = vmul.f32 %v1975, %v1994
        %v1996 = vadd.f32 %v1995, 1.0
        %v1997 = vrcp.pop %v1996
        %v1998 = vmul.f32 %v1996, %v1997
        %v1999 = vsub.f32 1.0, %v1998
        %v2000 = vmul.f32 %v1997, %v1999
        %v2001 = vadd.f32 %v1997, %v2000
        %vm2002 = vweird.f32 %v1996
        %vm2003 = vweird.f32 %v1997
        %vm2004 = vmor %vm2002, %vm2003
        %v2005 = vsel %vm2004, %v1997, %v2001
        %v2006 = vand.u32 2147483647, %v1996
        %vm2007 = vcmp.eq.f32.partialorder %v2006, 8.507059e+37
        %v2008 = vand.u32 %v1996, 2147483648
        %v2009 = vor.u32 1.1754944e-38, %v2008
        %v2010 = vsel %vm2007, %v2009, %v2005
        %v2011 = vmul.f32 %v1986, %v2010
        %v2012 = vmin.f32 %v2011, 1.0
        %v2013 = vmax.f32 %v2012, -1.0
        %v2014 = vmul.f32 %v1255, %v1255
        %v2015 = vmin.f32 16.0, %v2014
        %v2016 = vmul.f32 %v2015, 2.1237322e-06
        %v2017 = vadd.f32 %v2016, 0.00028619796
        %v2018 = vmul.f32 %v2015, %v2017
        %v2019 = vadd.f32 %v2018, 0.0036580483
        %v2020 = vmul.f32 %v2015, %v2019
        %v2021 = vadd.f32 %v2020, 0.05243302
        %v2022 = vmul.f32 %v2015, %v2021
        %v2023 = vadd.f32 %v2022, 0.18741608
        %v2024 = vmul.f32 %v2015, %v2023
        %v2025 = vadd.f32 %v2024, 1.1283791
        %v2026 = vmul.f32 %v1255, %v2025
        %v2027 = vmul.f32 %v2015, 3.8918573e-05
        %v2028 = vadd.f32 %v2027, 0.001143296
        %v2029 = vmul.f32 %v2015, %v2028
        %v2030 = vadd.f32 %v2029, 0.014752088
        %v2031 = vmul.f32 %v2015, %v2030
        %v2032 = vadd.f32 %v2031, 0.112945676
        %v2033 = vmul.f32 %v2015, %v2032
        %v2034 = vadd.f32 %v2033, 0.4994258
        %v2035 = vmul.f32 %v2015, %v2034
        %v2036 = vadd.f32 %v2035, 1.0
        %v2037 = vrcp.pop %v2036
        %v2038 = vmul.f32 %v2036, %v2037
        %v2039 = vsub.f32 1.0, %v2038
        %v2040 = vmul.f32 %v2037, %v2039
        %v2041 = vadd.f32 %v2037, %v2040
        %vm2042 = vweird.f32 %v2036
        %vm2043 = vweird.f32 %v2037
        %vm2044 = vmor %vm2042, %vm2043
        %v2045 = vsel %vm2044, %v2037, %v2041
        %v2046 = vand.u32 2147483647, %v2036
        %vm2047 = vcmp.eq.f32.partialorder %v2046, 8.507059e+37
        %v2048 = vand.u32 %v2036, 2147483648
        %v2049 = vor.u32 1.1754944e-38, %v2048
        %v2050 = vsel %vm2047, %v2049, %v2045
        %v2051 = vmul.f32 %v2026, %v2050
        %v2052 = vmin.f32 %v2051, 1.0
        %v2053 = vmax.f32 %v2052, -1.0
        %v2054 = vmul.f32 %v1256, %v1256
        %v2055 = vmin.f32 16.0, %v2054
        %v2056 = vmul.f32 %v2055, 2.1237322e-06
        %v2057 = vadd.f32 %v2056, 0.00028619796
        %v2058 = vmul.f32 %v2055, %v2057
        %v2059 = vadd.f32 %v2058, 0.0036580483
        %v2060 = vmul.f32 %v2055, %v2059
        %v2061 = vadd.f32 %v2060, 0.05243302
        %v2062 = vmul.f32 %v2055, %v2061
        %v2063 = vadd.f32 %v2062, 0.18741608
        %v2064 = vmul.f32 %v2055, %v2063
        %v2065 = vadd.f32 %v2064, 1.1283791
        %v2066 = vmul.f32 %v1256, %v2065
        %v2067 = vmul.f32 %v2055, 3.8918573e-05
        %v2068 = vadd.f32 %v2067, 0.001143296
        %v2069 = vmul.f32 %v2055, %v2068
        %v2070 = vadd.f32 %v2069, 0.014752088
        %v2071 = vmul.f32 %v2055, %v2070
        %v2072 = vadd.f32 %v2071, 0.112945676
        %v2073 = vmul.f32 %v2055, %v2072
        %v2074 = vadd.f32 %v2073, 0.4994258
        %v2075 = vmul.f32 %v2055, %v2074
        %v2076 = vadd.f32 %v2075, 1.0
        %v2077 = vrcp.pop %v2076
        %v2078 = vmul.f32 %v2076, %v2077
        %v2079 = vsub.f32 1.0, %v2078
        %v2080 = vmul.f32 %v2077, %v2079
        %v2081 = vadd.f32 %v2077, %v2080
        %vm2082 = vweird.f32 %v2076
        %vm2083 = vweird.f32 %v2077
        %vm2084 = vmor %vm2082, %vm2083
        %v2085 = vsel %vm2084, %v2077, %v2081
        %v2086 = vand.u32 2147483647, %v2076
        %vm2087 = vcmp.eq.f32.partialorder %v2086, 8.507059e+37
        %v2088 = vand.u32 %v2076, 2147483648
        %v2089 = vor.u32 1.1754944e-38, %v2088
        %v2090 = vsel %vm2087, %v2089, %v2085
        %v2091 = vmul.f32 %v2066, %v2090
        %v2092 = vmin.f32 %v2091, 1.0
        %v2093 = vmax.f32 %v2092, -1.0
        %v2094 = vmul.f32 %v1257, %v1257
        %v2095 = vmin.f32 16.0, %v2094
        %v2096 = vmul.f32 %v2095, 2.1237322e-06
        %v2097 = vadd.f32 %v2096, 0.00028619796
        %v2098 = vmul.f32 %v2095, %v2097
        %v2099 = vadd.f32 %v2098, 0.0036580483
        %v2100 = vmul.f32 %v2095, %v2099
        %v2101 = vadd.f32 %v2100, 0.05243302
        %v2102 = vmul.f32 %v2095, %v2101
        %v2103 = vadd.f32 %v2102, 0.18741608
        %v2104 = vmul.f32 %v2095, %v2103
        %v2105 = vadd.f32 %v2104, 1.1283791
        %v2106 = vmul.f32 %v1257, %v2105
        %v2107 = vmul.f32 %v2095, 3.8918573e-05
        %v2108 = vadd.f32 %v2107, 0.001143296
        %v2109 = vmul.f32 %v2095, %v2108
        %v2110 = vadd.f32 %v2109, 0.014752088
        %v2111 = vmul.f32 %v2095, %v2110
        %v2112 = vadd.f32 %v2111, 0.112945676
        %v2113 = vmul.f32 %v2095, %v2112
        %v2114 = vadd.f32 %v2113, 0.4994258
        %v2115 = vmul.f32 %v2095, %v2114
        %v2116 = vadd.f32 %v2115, 1.0
        %v2117 = vrcp.pop %v2116
        %v2118 = vmul.f32 %v2116, %v2117
        %v2119 = vsub.f32 1.0, %v2118
        %v2120 = vmul.f32 %v2117, %v2119
        %v2121 = vadd.f32 %v2117, %v2120
        %vm2122 = vweird.f32 %v2116
        %vm2123 = vweird.f32 %v2117
        %vm2124 = vmor %vm2122, %vm2123
        %v2125 = vsel %vm2124, %v2117, %v2121
        %v2126 = vand.u32 2147483647, %v2116
        %vm2127 = vcmp.eq.f32.partialorder %v2126, 8.507059e+37
        %v2128 = vand.u32 %v2116, 2147483648
        %v2129 = vor.u32 1.1754944e-38, %v2128
        %v2130 = vsel %vm2127, %v2129, %v2125
        %v2131 = vmul.f32 %v2106, %v2130
        %v2132 = vmin.f32 %v2131, 1.0
        %v2133 = vmax.f32 %v2132, -1.0
        %v2134 = vmul.f32 %v1258, %v1258
        %v2135 = vmin.f32 16.0, %v2134
        %v2136 = vmul.f32 %v2135, 2.1237322e-06
        %v2137 = vadd.f32 %v2136, 0.00028619796
        %v2138 = vmul.f32 %v2135, %v2137
        %v2139 = vadd.f32 %v2138, 0.0036580483
        %v2140 = vmul.f32 %v2135, %v2139
        %v2141 = vadd.f32 %v2140, 0.05243302
        %v2142 = vmul.f32 %v2135, %v2141
        %v2143 = vadd.f32 %v2142, 0.18741608
        %v2144 = vmul.f32 %v2135, %v2143
        %v2145 = vadd.f32 %v2144, 1.1283791
        %v2146 = vmul.f32 %v1258, %v2145
        %v2147 = vmul.f32 %v2135, 3.8918573e-05
        %v2148 = vadd.f32 %v2147, 0.001143296
        %v2149 = vmul.f32 %v2135, %v2148
        %v2150 = vadd.f32 %v2149, 0.014752088
        %v2151 = vmul.f32 %v2135, %v2150
        %v2152 = vadd.f32 %v2151, 0.112945676
        %v2153 = vmul.f32 %v2135, %v2152
        %v2154 = vadd.f32 %v2153, 0.4994258
        %v2155 = vmul.f32 %v2135, %v2154
        %v2156 = vadd.f32 %v2155, 1.0
        %v2157 = vrcp.pop %v2156
        %v2158 = vmul.f32 %v2156, %v2157
        %v2159 = vsub.f32 1.0, %v2158
        %v2160 = vmul.f32 %v2157, %v2159
        %v2161 = vadd.f32 %v2157, %v2160
        %vm2162 = vweird.f32 %v2156
        %vm2163 = vweird.f32 %v2157
        %vm2164 = vmor %vm2162, %vm2163
        %v2165 = vsel %vm2164, %v2157, %v2161
        %v2166 = vand.u32 2147483647, %v2156
        %vm2167 = vcmp.eq.f32.partialorder %v2166, 8.507059e+37
        %v2168 = vand.u32 %v2156, 2147483648
        %v2169 = vor.u32 1.1754944e-38, %v2168
        %v2170 = vsel %vm2167, %v2169, %v2165
        %v2171 = vmul.f32 %v2146, %v2170
        %v2172 = vmin.f32 %v2171, 1.0
        %v2173 = vmax.f32 %v2172, -1.0
        %v2174 = vmul.f32 %v1259, %v1259
        %v2175 = vmin.f32 16.0, %v2174
        %v2176 = vmul.f32 %v2175, 2.1237322e-06
        %v2177 = vadd.f32 %v2176, 0.00028619796
        %v2178 = vmul.f32 %v2175, %v2177
        %v2179 = vadd.f32 %v2178, 0.0036580483
        %v2180 = vmul.f32 %v2175, %v2179
        %v2181 = vadd.f32 %v2180, 0.05243302
        %v2182 = vmul.f32 %v2175, %v2181
        %v2183 = vadd.f32 %v2182, 0.18741608
        %v2184 = vmul.f32 %v2175, %v2183
        %v2185 = vadd.f32 %v2184, 1.1283791
        %v2186 = vmul.f32 %v1259, %v2185
        %v2187 = vmul.f32 %v2175, 3.8918573e-05
        %v2188 = vadd.f32 %v2187, 0.001143296
        %v2189 = vmul.f32 %v2175, %v2188
        %v2190 = vadd.f32 %v2189, 0.014752088
        %v2191 = vmul.f32 %v2175, %v2190
        %v2192 = vadd.f32 %v2191, 0.112945676
        %v2193 = vmul.f32 %v2175, %v2192
        %v2194 = vadd.f32 %v2193, 0.4994258
        %v2195 = vmul.f32 %v2175, %v2194
        %v2196 = vadd.f32 %v2195, 1.0
        %v2197 = vrcp.pop %v2196
        %v2198 = vmul.f32 %v2196, %v2197
        %v2199 = vsub.f32 1.0, %v2198
        %v2200 = vmul.f32 %v2197, %v2199
        %v2201 = vadd.f32 %v2197, %v2200
        %vm2202 = vweird.f32 %v2196
        %vm2203 = vweird.f32 %v2197
        %vm2204 = vmor %vm2202, %vm2203
        %v2205 = vsel %vm2204, %v2197, %v2201
        %v2206 = vand.u32 2147483647, %v2196
        %vm2207 = vcmp.eq.f32.partialorder %v2206, 8.507059e+37
        %v2208 = vand.u32 %v2196, 2147483648
        %v2209 = vor.u32 1.1754944e-38, %v2208
        %v2210 = vsel %vm2207, %v2209, %v2205
        %v2211 = vmul.f32 %v2186, %v2210
        %v2212 = vmin.f32 %v2211, 1.0
        %v2213 = vmax.f32 %v2212, -1.0
        %v2214 = vmul.f32 %v1260, %v1260
        %v2215 = vmin.f32 16.0, %v2214
        %v2216 = vmul.f32 %v2215, 2.1237322e-06
        %v2217 = vadd.f32 %v2216, 0.00028619796
        %v2218 = vmul.f32 %v2215, %v2217
        %v2219 = vadd.f32 %v2218, 0.0036580483
        %v2220 = vmul.f32 %v2215, %v2219
        %v2221 = vadd.f32 %v2220, 0.05243302
        %v2222 = vmul.f32 %v2215, %v2221
        %v2223 = vadd.f32 %v2222, 0.18741608
        %v2224 = vmul.f32 %v2215, %v2223
        %v2225 = vadd.f32 %v2224, 1.1283791
        %v2226 = vmul.f32 %v1260, %v2225
        %v2227 = vmul.f32 %v2215, 3.8918573e-05
        %v2228 = vadd.f32 %v2227, 0.001143296
        %v2229 = vmul.f32 %v2215, %v2228
        %v2230 = vadd.f32 %v2229, 0.014752088
        %v2231 = vmul.f32 %v2215, %v2230
        %v2232 = vadd.f32 %v2231, 0.112945676
        %v2233 = vmul.f32 %v2215, %v2232
        %v2234 = vadd.f32 %v2233, 0.4994258
        %v2235 = vmul.f32 %v2215, %v2234
        %v2236 = vadd.f32 %v2235, 1.0
        %v2237 = vrcp.pop %v2236
        %v2238 = vmul.f32 %v2236, %v2237
        %v2239 = vsub.f32 1.0, %v2238
        %v2240 = vmul.f32 %v2237, %v2239
        %v2241 = vadd.f32 %v2237, %v2240
        %vm2242 = vweird.f32 %v2236
        %vm2243 = vweird.f32 %v2237
        %vm2244 = vmor %vm2242, %vm2243
        %v2245 = vsel %vm2244, %v2237, %v2241
        %v2246 = vand.u32 2147483647, %v2236
        %vm2247 = vcmp.eq.f32.partialorder %v2246, 8.507059e+37
        %v2248 = vand.u32 %v2236, 2147483648
        %v2249 = vor.u32 1.1754944e-38, %v2248
        %v2250 = vsel %vm2247, %v2249, %v2245
        %v2251 = vmul.f32 %v2226, %v2250
        %v2252 = vmin.f32 %v2251, 1.0
        %v2253 = vmax.f32 %v2252, -1.0
        %v2254 = vmul.f32 %v1261, %v1261
        %v2255 = vmin.f32 16.0, %v2254
        %v2256 = vmul.f32 %v2255, 2.1237322e-06
        %v2257 = vadd.f32 %v2256, 0.00028619796
        %v2258 = vmul.f32 %v2255, %v2257
        %v2259 = vadd.f32 %v2258, 0.0036580483
        %v2260 = vmul.f32 %v2255, %v2259
        %v2261 = vadd.f32 %v2260, 0.05243302
        %v2262 = vmul.f32 %v2255, %v2261
        %v2263 = vadd.f32 %v2262, 0.18741608
        %v2264 = vmul.f32 %v2255, %v2263
        %v2265 = vadd.f32 %v2264, 1.1283791
        %v2266 = vmul.f32 %v1261, %v2265
        %v2267 = vmul.f32 %v2255, 3.8918573e-05
        %v2268 = vadd.f32 %v2267, 0.001143296
        %v2269 = vmul.f32 %v2255, %v2268
        %v2270 = vadd.f32 %v2269, 0.014752088
        %v2271 = vmul.f32 %v2255, %v2270
        %v2272 = vadd.f32 %v2271, 0.112945676
        %v2273 = vmul.f32 %v2255, %v2272
        %v2274 = vadd.f32 %v2273, 0.4994258
        %v2275 = vmul.f32 %v2255, %v2274
        %v2276 = vadd.f32 %v2275, 1.0
        %v2277 = vrcp.pop %v2276
        %v2278 = vmul.f32 %v2276, %v2277
        %v2279 = vsub.f32 1.0, %v2278
        %v2280 = vmul.f32 %v2277, %v2279
        %v2281 = vadd.f32 %v2277, %v2280
        %vm2282 = vweird.f32 %v2276
        %vm2283 = vweird.f32 %v2277
        %vm2284 = vmor %vm2282, %vm2283
        %v2285 = vsel %vm2284, %v2277, %v2281
        %v2286 = vand.u32 2147483647, %v2276
        %vm2287 = vcmp.eq.f32.partialorder %v2286, 8.507059e+37
        %v2288 = vand.u32 %v2276, 2147483648
        %v2289 = vor.u32 1.1754944e-38, %v2288
        %v2290 = vsel %vm2287, %v2289, %v2285
        %v2291 = vmul.f32 %v2266, %v2290
        %v2292 = vmin.f32 %v2291, 1.0
        %v2293 = vmax.f32 %v2292, -1.0
        %v2294 = vmul.f32 %v1262, %v1262
        %v2295 = vmin.f32 16.0, %v2294
        %v2296 = vmul.f32 %v2295, 2.1237322e-06
        %v2297 = vadd.f32 %v2296, 0.00028619796
        %v2298 = vmul.f32 %v2295, %v2297
        %v2299 = vadd.f32 %v2298, 0.0036580483
        %v2300 = vmul.f32 %v2295, %v2299
        %v2301 = vadd.f32 %v2300, 0.05243302
        %v2302 = vmul.f32 %v2295, %v2301
        %v2303 = vadd.f32 %v2302, 0.18741608
        %v2304 = vmul.f32 %v2295, %v2303
        %v2305 = vadd.f32 %v2304, 1.1283791
        %v2306 = vmul.f32 %v1262, %v2305
        %v2307 = vmul.f32 %v2295, 3.8918573e-05
        %v2308 = vadd.f32 %v2307, 0.001143296
        %v2309 = vmul.f32 %v2295, %v2308
        %v2310 = vadd.f32 %v2309, 0.014752088
        %v2311 = vmul.f32 %v2295, %v2310
        %v2312 = vadd.f32 %v2311, 0.112945676
        %v2313 = vmul.f32 %v2295, %v2312
        %v2314 = vadd.f32 %v2313, 0.4994258
        %v2315 = vmul.f32 %v2295, %v2314
        %v2316 = vadd.f32 %v2315, 1.0
        %v2317 = vrcp.pop %v2316
        %v2318 = vmul.f32 %v2316, %v2317
        %v2319 = vsub.f32 1.0, %v2318
        %v2320 = vmul.f32 %v2317, %v2319
        %v2321 = vadd.f32 %v2317, %v2320
        %vm2322 = vweird.f32 %v2316
        %vm2323 = vweird.f32 %v2317
        %vm2324 = vmor %vm2322, %vm2323
        %v2325 = vsel %vm2324, %v2317, %v2321
        %v2326 = vand.u32 2147483647, %v2316
        %vm2327 = vcmp.eq.f32.partialorder %v2326, 8.507059e+37
        %v2328 = vand.u32 %v2316, 2147483648
        %v2329 = vor.u32 1.1754944e-38, %v2328
        %v2330 = vsel %vm2327, %v2329, %v2325
        %v2331 = vmul.f32 %v2306, %v2330
        %v2332 = vmin.f32 %v2331, 1.0
        %v2333 = vmax.f32 %v2332, -1.0
        %v2334 = vmul.f32 %v1263, %v1263
        %v2335 = vmin.f32 16.0, %v2334
        %v2336 = vmul.f32 %v2335, 2.1237322e-06
        %v2337 = vadd.f32 %v2336, 0.00028619796
        %v2338 = vmul.f32 %v2335, %v2337
        %v2339 = vadd.f32 %v2338, 0.0036580483
        %v2340 = vmul.f32 %v2335, %v2339
        %v2341 = vadd.f32 %v2340, 0.05243302
        %v2342 = vmul.f32 %v2335, %v2341
        %v2343 = vadd.f32 %v2342, 0.18741608
        %v2344 = vmul.f32 %v2335, %v2343
        %v2345 = vadd.f32 %v2344, 1.1283791
        %v2346 = vmul.f32 %v1263, %v2345
        %v2347 = vmul.f32 %v2335, 3.8918573e-05
        %v2348 = vadd.f32 %v2347, 0.001143296
        %v2349 = vmul.f32 %v2335, %v2348
        %v2350 = vadd.f32 %v2349, 0.014752088
        %v2351 = vmul.f32 %v2335, %v2350
        %v2352 = vadd.f32 %v2351, 0.112945676
        %v2353 = vmul.f32 %v2335, %v2352
        %v2354 = vadd.f32 %v2353, 0.4994258
        %v2355 = vmul.f32 %v2335, %v2354
        %v2356 = vadd.f32 %v2355, 1.0
        %v2357 = vrcp.pop %v2356
        %v2358 = vmul.f32 %v2356, %v2357
        %v2359 = vsub.f32 1.0, %v2358
        %v2360 = vmul.f32 %v2357, %v2359
        %v2361 = vadd.f32 %v2357, %v2360
        %vm2362 = vweird.f32 %v2356
        %vm2363 = vweird.f32 %v2357
        %vm2364 = vmor %vm2362, %vm2363
        %v2365 = vsel %vm2364, %v2357, %v2361
        %v2366 = vand.u32 2147483647, %v2356
        %vm2367 = vcmp.eq.f32.partialorder %v2366, 8.507059e+37
        %v2368 = vand.u32 %v2356, 2147483648
        %v2369 = vor.u32 1.1754944e-38, %v2368
        %v2370 = vsel %vm2367, %v2369, %v2365
        %v2371 = vmul.f32 %v2346, %v2370
        %v2372 = vmin.f32 %v2371, 1.0
        %v2373 = vmax.f32 %v2372, -1.0
        %v2374 = vmul.f32 %v1264, %v1264
        %v2375 = vmin.f32 16.0, %v2374
        %v2376 = vmul.f32 %v2375, 2.1237322e-06
        %v2377 = vadd.f32 %v2376, 0.00028619796
        %v2378 = vmul.f32 %v2375, %v2377
        %v2379 = vadd.f32 %v2378, 0.0036580483
        %v2380 = vmul.f32 %v2375, %v2379
        %v2381 = vadd.f32 %v2380, 0.05243302
        %v2382 = vmul.f32 %v2375, %v2381
        %v2383 = vadd.f32 %v2382, 0.18741608
        %v2384 = vmul.f32 %v2375, %v2383
        %v2385 = vadd.f32 %v2384, 1.1283791
        %v2386 = vmul.f32 %v1264, %v2385
        %v2387 = vmul.f32 %v2375, 3.8918573e-05
        %v2388 = vadd.f32 %v2387, 0.001143296
        %v2389 = vmul.f32 %v2375, %v2388
        %v2390 = vadd.f32 %v2389, 0.014752088
        %v2391 = vmul.f32 %v2375, %v2390
        %v2392 = vadd.f32 %v2391, 0.112945676
        %v2393 = vmul.f32 %v2375, %v2392
        %v2394 = vadd.f32 %v2393, 0.4994258
        %v2395 = vmul.f32 %v2375, %v2394
        %v2396 = vadd.f32 %v2395, 1.0
        %v2397 = vrcp.pop %v2396
        %v2398 = vmul.f32 %v2396, %v2397
        %v2399 = vsub.f32 1.0, %v2398
        %v2400 = vmul.f32 %v2397, %v2399
        %v2401 = vadd.f32 %v2397, %v2400
        %vm2402 = vweird.f32 %v2396
        %vm2403 = vweird.f32 %v2397
        %vm2404 = vmor %vm2402, %vm2403
        %v2405 = vsel %vm2404, %v2397, %v2401
        %v2406 = vand.u32 2147483647, %v2396
        %vm2407 = vcmp.eq.f32.partialorder %v2406, 8.507059e+37
        %v2408 = vand.u32 %v2396, 2147483648
        %v2409 = vor.u32 1.1754944e-38, %v2408
        %v2410 = vsel %vm2407, %v2409, %v2405
        %v2411 = vmul.f32 %v2386, %v2410
        %v2412 = vmin.f32 %v2411, 1.0
        %v2413 = vmax.f32 %v2412, -1.0
        %v2414 = vmul.f32 %v1265, %v1265
        %v2415 = vmin.f32 16.0, %v2414
        %v2416 = vmul.f32 %v2415, 2.1237322e-06
        %v2417 = vadd.f32 %v2416, 0.00028619796
        %v2418 = vmul.f32 %v2415, %v2417
        %v2419 = vadd.f32 %v2418, 0.0036580483
        %v2420 = vmul.f32 %v2415, %v2419
        %v2421 = vadd.f32 %v2420, 0.05243302
        %v2422 = vmul.f32 %v2415, %v2421
        %v2423 = vadd.f32 %v2422, 0.18741608
        %v2424 = vmul.f32 %v2415, %v2423
        %v2425 = vadd.f32 %v2424, 1.1283791
        %v2426 = vmul.f32 %v1265, %v2425
        %v2427 = vmul.f32 %v2415, 3.8918573e-05
        %v2428 = vadd.f32 %v2427, 0.001143296
        %v2429 = vmul.f32 %v2415, %v2428
        %v2430 = vadd.f32 %v2429, 0.014752088
        %v2431 = vmul.f32 %v2415, %v2430
        %v2432 = vadd.f32 %v2431, 0.112945676
        %v2433 = vmul.f32 %v2415, %v2432
        %v2434 = vadd.f32 %v2433, 0.4994258
        %v2435 = vmul.f32 %v2415, %v2434
        %v2436 = vadd.f32 %v2435, 1.0
        %v2437 = vrcp.pop %v2436
        %v2438 = vmul.f32 %v2436, %v2437
        %v2439 = vsub.f32 1.0, %v2438
        %v2440 = vmul.f32 %v2437, %v2439
        %v2441 = vadd.f32 %v2437, %v2440
        %vm2442 = vweird.f32 %v2436
        %vm2443 = vweird.f32 %v2437
        %vm2444 = vmor %vm2442, %vm2443
        %v2445 = vsel %vm2444, %v2437, %v2441
        %v2446 = vand.u32 2147483647, %v2436
        %vm2447 = vcmp.eq.f32.partialorder %v2446, 8.507059e+37
        %v2448 = vand.u32 %v2436, 2147483648
        %v2449 = vor.u32 1.1754944e-38, %v2448
        %v2450 = vsel %vm2447, %v2449, %v2445
        %v2451 = vmul.f32 %v2426, %v2450
        %v2452 = vmin.f32 %v2451, 1.0
        %v2453 = vmax.f32 %v2452, -1.0
        %v2454 = vmul.f32 %v1266, %v1266
        %v2455 = vmin.f32 16.0, %v2454
        %v2456 = vmul.f32 %v2455, 2.1237322e-06
        %v2457 = vadd.f32 %v2456, 0.00028619796
        %v2458 = vmul.f32 %v2455, %v2457
        %v2459 = vadd.f32 %v2458, 0.0036580483
        %v2460 = vmul.f32 %v2455, %v2459
        %v2461 = vadd.f32 %v2460, 0.05243302
        %v2462 = vmul.f32 %v2455, %v2461
        %v2463 = vadd.f32 %v2462, 0.18741608
        %v2464 = vmul.f32 %v2455, %v2463
        %v2465 = vadd.f32 %v2464, 1.1283791
        %v2466 = vmul.f32 %v1266, %v2465
        %v2467 = vmul.f32 %v2455, 3.8918573e-05
        %v2468 = vadd.f32 %v2467, 0.001143296
        %v2469 = vmul.f32 %v2455, %v2468
        %v2470 = vadd.f32 %v2469, 0.014752088
        %v2471 = vmul.f32 %v2455, %v2470
        %v2472 = vadd.f32 %v2471, 0.112945676
        %v2473 = vmul.f32 %v2455, %v2472
        %v2474 = vadd.f32 %v2473, 0.4994258
        %v2475 = vmul.f32 %v2455, %v2474
        %v2476 = vadd.f32 %v2475, 1.0
        %v2477 = vrcp.pop %v2476
        %v2478 = vmul.f32 %v2476, %v2477
        %v2479 = vsub.f32 1.0, %v2478
        %v2480 = vmul.f32 %v2477, %v2479
        %v2481 = vadd.f32 %v2477, %v2480
        %vm2482 = vweird.f32 %v2476
        %vm2483 = vweird.f32 %v2477
        %vm2484 = vmor %vm2482, %vm2483
        %v2485 = vsel %vm2484, %v2477, %v2481
        %v2486 = vand.u32 2147483647, %v2476
        %vm2487 = vcmp.eq.f32.partialorder %v2486, 8.507059e+37
        %v2488 = vand.u32 %v2476, 2147483648
        %v2489 = vor.u32 1.1754944e-38, %v2488
        %v2490 = vsel %vm2487, %v2489, %v2485
        %v2491 = vmul.f32 %v2466, %v2490
        %v2492 = vmin.f32 %v2491, 1.0
        %v2493 = vmax.f32 %v2492, -1.0
        %v2494 = vmul.f32 %v1267, %v1267
        %v2495 = vmin.f32 16.0, %v2494
        %v2496 = vmul.f32 %v2495, 2.1237322e-06
        %v2497 = vadd.f32 %v2496, 0.00028619796
        %v2498 = vmul.f32 %v2495, %v2497
        %v2499 = vadd.f32 %v2498, 0.0036580483
        %v2500 = vmul.f32 %v2495, %v2499
        %v2501 = vadd.f32 %v2500, 0.05243302
        %v2502 = vmul.f32 %v2495, %v2501
        %v2503 = vadd.f32 %v2502, 0.18741608
        %v2504 = vmul.f32 %v2495, %v2503
        %v2505 = vadd.f32 %v2504, 1.1283791
        %v2506 = vmul.f32 %v1267, %v2505
        %v2507 = vmul.f32 %v2495, 3.8918573e-05
        %v2508 = vadd.f32 %v2507, 0.001143296
        %v2509 = vmul.f32 %v2495, %v2508
        %v2510 = vadd.f32 %v2509, 0.014752088
        %v2511 = vmul.f32 %v2495, %v2510
        %v2512 = vadd.f32 %v2511, 0.112945676
        %v2513 = vmul.f32 %v2495, %v2512
        %v2514 = vadd.f32 %v2513, 0.4994258
        %v2515 = vmul.f32 %v2495, %v2514
        %v2516 = vadd.f32 %v2515, 1.0
        %v2517 = vrcp.pop %v2516
        %v2518 = vmul.f32 %v2516, %v2517
        %v2519 = vsub.f32 1.0, %v2518
        %v2520 = vmul.f32 %v2517, %v2519
        %v2521 = vadd.f32 %v2517, %v2520
        %vm2522 = vweird.f32 %v2516
        %vm2523 = vweird.f32 %v2517
        %vm2524 = vmor %vm2522, %vm2523
        %v2525 = vsel %vm2524, %v2517, %v2521
        %v2526 = vand.u32 2147483647, %v2516
        %vm2527 = vcmp.eq.f32.partialorder %v2526, 8.507059e+37
        %v2528 = vand.u32 %v2516, 2147483648
        %v2529 = vor.u32 1.1754944e-38, %v2528
        %v2530 = vsel %vm2527, %v2529, %v2525
        %v2531 = vmul.f32 %v2506, %v2530
        %v2532 = vmin.f32 %v2531, 1.0
        %v2533 = vmax.f32 %v2532, -1.0
        %v2534 = vmul.f32 %v1268, %v1268
        %v2535 = vmin.f32 16.0, %v2534
        %v2536 = vmul.f32 %v2535, 2.1237322e-06
        %v2537 = vadd.f32 %v2536, 0.00028619796
        %v2538 = vmul.f32 %v2535, %v2537
        %v2539 = vadd.f32 %v2538, 0.0036580483
        %v2540 = vmul.f32 %v2535, %v2539
        %v2541 = vadd.f32 %v2540, 0.05243302
        %v2542 = vmul.f32 %v2535, %v2541
        %v2543 = vadd.f32 %v2542, 0.18741608
        %v2544 = vmul.f32 %v2535, %v2543
        %v2545 = vadd.f32 %v2544, 1.1283791
        %v2546 = vmul.f32 %v1268, %v2545
        %v2547 = vmul.f32 %v2535, 3.8918573e-05
        %v2548 = vadd.f32 %v2547, 0.001143296
        %v2549 = vmul.f32 %v2535, %v2548
        %v2550 = vadd.f32 %v2549, 0.014752088
        %v2551 = vmul.f32 %v2535, %v2550
        %v2552 = vadd.f32 %v2551, 0.112945676
        %v2553 = vmul.f32 %v2535, %v2552
        %v2554 = vadd.f32 %v2553, 0.4994258
        %v2555 = vmul.f32 %v2535, %v2554
        %v2556 = vadd.f32 %v2555, 1.0
        %v2557 = vrcp.pop %v2556
        %v2558 = vmul.f32 %v2556, %v2557
        %v2559 = vsub.f32 1.0, %v2558
        %v2560 = vmul.f32 %v2557, %v2559
        %v2561 = vadd.f32 %v2557, %v2560
        %vm2562 = vweird.f32 %v2556
        %vm2563 = vweird.f32 %v2557
        %vm2564 = vmor %vm2562, %vm2563
        %v2565 = vsel %vm2564, %v2557, %v2561
        %v2566 = vand.u32 2147483647, %v2556
        %vm2567 = vcmp.eq.f32.partialorder %v2566, 8.507059e+37
        %v2568 = vand.u32 %v2556, 2147483648
        %v2569 = vor.u32 1.1754944e-38, %v2568
        %v2570 = vsel %vm2567, %v2569, %v2565
        %v2571 = vmul.f32 %v2546, %v2570
        %v2572 = vmin.f32 %v2571, 1.0
        %v2573 = vmax.f32 %v2572, -1.0
        %v2574 = vmul.f32 %v1269, %v1269
        %v2575 = vmin.f32 16.0, %v2574
        %v2576 = vmul.f32 %v2575, 2.1237322e-06
        %v2577 = vadd.f32 %v2576, 0.00028619796
        %v2578 = vmul.f32 %v2575, %v2577
        %v2579 = vadd.f32 %v2578, 0.0036580483
        %v2580 = vmul.f32 %v2575, %v2579
        %v2581 = vadd.f32 %v2580, 0.05243302
        %v2582 = vmul.f32 %v2575, %v2581
        %v2583 = vadd.f32 %v2582, 0.18741608
        %v2584 = vmul.f32 %v2575, %v2583
        %v2585 = vadd.f32 %v2584, 1.1283791
        %v2586 = vmul.f32 %v1269, %v2585
        %v2587 = vmul.f32 %v2575, 3.8918573e-05
        %v2588 = vadd.f32 %v2587, 0.001143296
        %v2589 = vmul.f32 %v2575, %v2588
        %v2590 = vadd.f32 %v2589, 0.014752088
        %v2591 = vmul.f32 %v2575, %v2590
        %v2592 = vadd.f32 %v2591, 0.112945676
        %v2593 = vmul.f32 %v2575, %v2592
        %v2594 = vadd.f32 %v2593, 0.4994258
        %v2595 = vmul.f32 %v2575, %v2594
        %v2596 = vadd.f32 %v2595, 1.0
        %v2597 = vrcp.pop %v2596
        %v2598 = vmul.f32 %v2596, %v2597
        %v2599 = vsub.f32 1.0, %v2598
        %v2600 = vmul.f32 %v2597, %v2599
        %v2601 = vadd.f32 %v2597, %v2600
        %vm2602 = vweird.f32 %v2596
        %vm2603 = vweird.f32 %v2597
        %vm2604 = vmor %vm2602, %vm2603
        %v2605 = vsel %vm2604, %v2597, %v2601
        %v2606 = vand.u32 2147483647, %v2596
        %vm2607 = vcmp.eq.f32.partialorder %v2606, 8.507059e+37
        %v2608 = vand.u32 %v2596, 2147483648
        %v2609 = vor.u32 1.1754944e-38, %v2608
        %v2610 = vsel %vm2607, %v2609, %v2605
        %v2611 = vmul.f32 %v2586, %v2610
        %v2612 = vmin.f32 %v2611, 1.0
        %v2613 = vmax.f32 %v2612, -1.0
        %v2614 = vmul.f32 %v1270, %v1270
        %v2615 = vmin.f32 16.0, %v2614
        %v2616 = vmul.f32 %v2615, 2.1237322e-06
        %v2617 = vadd.f32 %v2616, 0.00028619796
        %v2618 = vmul.f32 %v2615, %v2617
        %v2619 = vadd.f32 %v2618, 0.0036580483
        %v2620 = vmul.f32 %v2615, %v2619
        %v2621 = vadd.f32 %v2620, 0.05243302
        %v2622 = vmul.f32 %v2615, %v2621
        %v2623 = vadd.f32 %v2622, 0.18741608
        %v2624 = vmul.f32 %v2615, %v2623
        %v2625 = vadd.f32 %v2624, 1.1283791
        %v2626 = vmul.f32 %v1270, %v2625
        %v2627 = vmul.f32 %v2615, 3.8918573e-05
        %v2628 = vadd.f32 %v2627, 0.001143296
        %v2629 = vmul.f32 %v2615, %v2628
        %v2630 = vadd.f32 %v2629, 0.014752088
        %v2631 = vmul.f32 %v2615, %v2630
        %v2632 = vadd.f32 %v2631, 0.112945676
        %v2633 = vmul.f32 %v2615, %v2632
        %v2634 = vadd.f32 %v2633, 0.4994258
        %v2635 = vmul.f32 %v2615, %v2634
        %v2636 = vadd.f32 %v2635, 1.0
        %v2637 = vrcp.pop %v2636
        %v2638 = vmul.f32 %v2636, %v2637
        %v2639 = vsub.f32 1.0, %v2638
        %v2640 = vmul.f32 %v2637, %v2639
        %v2641 = vadd.f32 %v2637, %v2640
        %vm2642 = vweird.f32 %v2636
        %vm2643 = vweird.f32 %v2637
        %vm2644 = vmor %vm2642, %vm2643
        %v2645 = vsel %vm2644, %v2637, %v2641
        %v2646 = vand.u32 2147483647, %v2636
        %vm2647 = vcmp.eq.f32.partialorder %v2646, 8.507059e+37
        %v2648 = vand.u32 %v2636, 2147483648
        %v2649 = vor.u32 1.1754944e-38, %v2648
        %v2650 = vsel %vm2647, %v2649, %v2645
        %v2651 = vmul.f32 %v2626, %v2650
        %v2652 = vmin.f32 %v2651, 1.0
        %v2653 = vmax.f32 %v2652, -1.0
        %v2654 = vmul.f32 %v1271, %v1271
        %v2655 = vmin.f32 16.0, %v2654
        %v2656 = vmul.f32 %v2655, 2.1237322e-06
        %v2657 = vadd.f32 %v2656, 0.00028619796
        %v2658 = vmul.f32 %v2655, %v2657
        %v2659 = vadd.f32 %v2658, 0.0036580483
        %v2660 = vmul.f32 %v2655, %v2659
        %v2661 = vadd.f32 %v2660, 0.05243302
        %v2662 = vmul.f32 %v2655, %v2661
        %v2663 = vadd.f32 %v2662, 0.18741608
        %v2664 = vmul.f32 %v2655, %v2663
        %v2665 = vadd.f32 %v2664, 1.1283791
        %v2666 = vmul.f32 %v1271, %v2665
        %v2667 = vmul.f32 %v2655, 3.8918573e-05
        %v2668 = vadd.f32 %v2667, 0.001143296
        %v2669 = vmul.f32 %v2655, %v2668
        %v2670 = vadd.f32 %v2669, 0.014752088
        %v2671 = vmul.f32 %v2655, %v2670
        %v2672 = vadd.f32 %v2671, 0.112945676
        %v2673 = vmul.f32 %v2655, %v2672
        %v2674 = vadd.f32 %v2673, 0.4994258
        %v2675 = vmul.f32 %v2655, %v2674
        %v2676 = vadd.f32 %v2675, 1.0
        %v2677 = vrcp.pop %v2676
        %v2678 = vmul.f32 %v2676, %v2677
        %v2679 = vsub.f32 1.0, %v2678
        %v2680 = vmul.f32 %v2677, %v2679
        %v2681 = vadd.f32 %v2677, %v2680
        %vm2682 = vweird.f32 %v2676
        %vm2683 = vweird.f32 %v2677
        %vm2684 = vmor %vm2682, %vm2683
        %v2685 = vsel %vm2684, %v2677, %v2681
        %v2686 = vand.u32 2147483647, %v2676
        %vm2687 = vcmp.eq.f32.partialorder %v2686, 8.507059e+37
        %v2688 = vand.u32 %v2676, 2147483648
        %v2689 = vor.u32 1.1754944e-38, %v2688
        %v2690 = vsel %vm2687, %v2689, %v2685
        %v2691 = vmul.f32 %v2666, %v2690
        %v2692 = vmin.f32 %v2691, 1.0
        %v2693 = vmax.f32 %v2692, -1.0
        %v2694 = vmul.f32 %v1272, %v1272
        %v2695 = vmin.f32 16.0, %v2694
        %v2696 = vmul.f32 %v2695, 2.1237322e-06
        %v2697 = vadd.f32 %v2696, 0.00028619796
        %v2698 = vmul.f32 %v2695, %v2697
        %v2699 = vadd.f32 %v2698, 0.0036580483
        %v2700 = vmul.f32 %v2695, %v2699
        %v2701 = vadd.f32 %v2700, 0.05243302
        %v2702 = vmul.f32 %v2695, %v2701
        %v2703 = vadd.f32 %v2702, 0.18741608
        %v2704 = vmul.f32 %v2695, %v2703
        %v2705 = vadd.f32 %v2704, 1.1283791
        %v2706 = vmul.f32 %v1272, %v2705
        %v2707 = vmul.f32 %v2695, 3.8918573e-05
        %v2708 = vadd.f32 %v2707, 0.001143296
        %v2709 = vmul.f32 %v2695, %v2708
        %v2710 = vadd.f32 %v2709, 0.014752088
        %v2711 = vmul.f32 %v2695, %v2710
        %v2712 = vadd.f32 %v2711, 0.112945676
        %v2713 = vmul.f32 %v2695, %v2712
        %v2714 = vadd.f32 %v2713, 0.4994258
        %v2715 = vmul.f32 %v2695, %v2714
        %v2716 = vadd.f32 %v2715, 1.0
        %v2717 = vrcp.pop %v2716
        %v2718 = vmul.f32 %v2716, %v2717
        %v2719 = vsub.f32 1.0, %v2718
        %v2720 = vmul.f32 %v2717, %v2719
        %v2721 = vadd.f32 %v2717, %v2720
        %vm2722 = vweird.f32 %v2716
        %vm2723 = vweird.f32 %v2717
        %vm2724 = vmor %vm2722, %vm2723
        %v2725 = vsel %vm2724, %v2717, %v2721
        %v2726 = vand.u32 2147483647, %v2716
        %vm2727 = vcmp.eq.f32.partialorder %v2726, 8.507059e+37
        %v2728 = vand.u32 %v2716, 2147483648
        %v2729 = vor.u32 1.1754944e-38, %v2728
        %v2730 = vsel %vm2727, %v2729, %v2725
        %v2731 = vmul.f32 %v2706, %v2730
        %v2732 = vmin.f32 %v2731, 1.0
        %v2733 = vmax.f32 %v2732, -1.0
        %v2734 = vmul.f32 %v1273, %v1273
        %v2735 = vmin.f32 16.0, %v2734
        %v2736 = vmul.f32 %v2735, 2.1237322e-06
        %v2737 = vadd.f32 %v2736, 0.00028619796
        %v2738 = vmul.f32 %v2735, %v2737
        %v2739 = vadd.f32 %v2738, 0.0036580483
        %v2740 = vmul.f32 %v2735, %v2739
        %v2741 = vadd.f32 %v2740, 0.05243302
        %v2742 = vmul.f32 %v2735, %v2741
        %v2743 = vadd.f32 %v2742, 0.18741608
        %v2744 = vmul.f32 %v2735, %v2743
        %v2745 = vadd.f32 %v2744, 1.1283791
        %v2746 = vmul.f32 %v1273, %v2745
        %v2747 = vmul.f32 %v2735, 3.8918573e-05
        %v2748 = vadd.f32 %v2747, 0.001143296
        %v2749 = vmul.f32 %v2735, %v2748
        %v2750 = vadd.f32 %v2749, 0.014752088
        %v2751 = vmul.f32 %v2735, %v2750
        %v2752 = vadd.f32 %v2751, 0.112945676
        %v2753 = vmul.f32 %v2735, %v2752
        %v2754 = vadd.f32 %v2753, 0.4994258
        %v2755 = vmul.f32 %v2735, %v2754
        %v2756 = vadd.f32 %v2755, 1.0
        %v2757 = vrcp.pop %v2756
        %v2758 = vmul.f32 %v2756, %v2757
        %v2759 = vsub.f32 1.0, %v2758
        %v2760 = vmul.f32 %v2757, %v2759
        %v2761 = vadd.f32 %v2757, %v2760
        %vm2762 = vweird.f32 %v2756
        %vm2763 = vweird.f32 %v2757
        %vm2764 = vmor %vm2762, %vm2763
        %v2765 = vsel %vm2764, %v2757, %v2761
        %v2766 = vand.u32 2147483647, %v2756
        %vm2767 = vcmp.eq.f32.partialorder %v2766, 8.507059e+37
        %v2768 = vand.u32 %v2756, 2147483648
        %v2769 = vor.u32 1.1754944e-38, %v2768
        %v2770 = vsel %vm2767, %v2769, %v2765
        %v2771 = vmul.f32 %v2746, %v2770
        %v2772 = vmin.f32 %v2771, 1.0
        %v2773 = vmax.f32 %v2772, -1.0
        %v2774 = vmul.f32 %v1274, %v1274
        %v2775 = vmin.f32 16.0, %v2774
        %v2776 = vmul.f32 %v2775, 2.1237322e-06
        %v2777 = vadd.f32 %v2776, 0.00028619796
        %v2778 = vmul.f32 %v2775, %v2777
        %v2779 = vadd.f32 %v2778, 0.0036580483
        %v2780 = vmul.f32 %v2775, %v2779
        %v2781 = vadd.f32 %v2780, 0.05243302
        %v2782 = vmul.f32 %v2775, %v2781
        %v2783 = vadd.f32 %v2782, 0.18741608
        %v2784 = vmul.f32 %v2775, %v2783
        %v2785 = vadd.f32 %v2784, 1.1283791
        %v2786 = vmul.f32 %v1274, %v2785
        %v2787 = vmul.f32 %v2775, 3.8918573e-05
        %v2788 = vadd.f32 %v2787, 0.001143296
        %v2789 = vmul.f32 %v2775, %v2788
        %v2790 = vadd.f32 %v2789, 0.014752088
        %v2791 = vmul.f32 %v2775, %v2790
        %v2792 = vadd.f32 %v2791, 0.112945676
        %v2793 = vmul.f32 %v2775, %v2792
        %v2794 = vadd.f32 %v2793, 0.4994258
        %v2795 = vmul.f32 %v2775, %v2794
        %v2796 = vadd.f32 %v2795, 1.0
        %v2797 = vrcp.pop %v2796
        %v2798 = vmul.f32 %v2796, %v2797
        %v2799 = vsub.f32 1.0, %v2798
        %v2800 = vmul.f32 %v2797, %v2799
        %v2801 = vadd.f32 %v2797, %v2800
        %vm2802 = vweird.f32 %v2796
        %vm2803 = vweird.f32 %v2797
        %vm2804 = vmor %vm2802, %vm2803
        %v2805 = vsel %vm2804, %v2797, %v2801
        %v2806 = vand.u32 2147483647, %v2796
        %vm2807 = vcmp.eq.f32.partialorder %v2806, 8.507059e+37
        %v2808 = vand.u32 %v2796, 2147483648
        %v2809 = vor.u32 1.1754944e-38, %v2808
        %v2810 = vsel %vm2807, %v2809, %v2805
        %v2811 = vmul.f32 %v2786, %v2810
        %v2812 = vmin.f32 %v2811, 1.0
        %v2813 = vmax.f32 %v2812, -1.0
        %v2814 = vmul.f32 %v1275, %v1275
        %v2815 = vmin.f32 16.0, %v2814
        %v2816 = vmul.f32 %v2815, 2.1237322e-06
        %v2817 = vadd.f32 %v2816, 0.00028619796
        %v2818 = vmul.f32 %v2815, %v2817
        %v2819 = vadd.f32 %v2818, 0.0036580483
        %v2820 = vmul.f32 %v2815, %v2819
        %v2821 = vadd.f32 %v2820, 0.05243302
        %v2822 = vmul.f32 %v2815, %v2821
        %v2823 = vadd.f32 %v2822, 0.18741608
        %v2824 = vmul.f32 %v2815, %v2823
        %v2825 = vadd.f32 %v2824, 1.1283791
        %v2826 = vmul.f32 %v1275, %v2825
        %v2827 = vmul.f32 %v2815, 3.8918573e-05
        %v2828 = vadd.f32 %v2827, 0.001143296
        %v2829 = vmul.f32 %v2815, %v2828
        %v2830 = vadd.f32 %v2829, 0.014752088
        %v2831 = vmul.f32 %v2815, %v2830
        %v2832 = vadd.f32 %v2831, 0.112945676
        %v2833 = vmul.f32 %v2815, %v2832
        %v2834 = vadd.f32 %v2833, 0.4994258
        %v2835 = vmul.f32 %v2815, %v2834
        %v2836 = vadd.f32 %v2835, 1.0
        %v2837 = vrcp.pop %v2836
        %v2838 = vmul.f32 %v2836, %v2837
        %v2839 = vsub.f32 1.0, %v2838
        %v2840 = vmul.f32 %v2837, %v2839
        %v2841 = vadd.f32 %v2837, %v2840
        %vm2842 = vweird.f32 %v2836
        %vm2843 = vweird.f32 %v2837
        %vm2844 = vmor %vm2842, %vm2843
        %v2845 = vsel %vm2844, %v2837, %v2841
        %v2846 = vand.u32 2147483647, %v2836
        %vm2847 = vcmp.eq.f32.partialorder %v2846, 8.507059e+37
        %v2848 = vand.u32 %v2836, 2147483648
        %v2849 = vor.u32 1.1754944e-38, %v2848
        %v2850 = vsel %vm2847, %v2849, %v2845
        %v2851 = vmul.f32 %v2826, %v2850
        %v2852 = vmin.f32 %v2851, 1.0
        %v2853 = vmax.f32 %v2852, -1.0
        %v2854 = vmul.f32 %v1276, %v1276
        %v2855 = vmin.f32 16.0, %v2854
        %v2856 = vmul.f32 %v2855, 2.1237322e-06
        %v2857 = vadd.f32 %v2856, 0.00028619796
        %v2858 = vmul.f32 %v2855, %v2857
        %v2859 = vadd.f32 %v2858, 0.0036580483
        %v2860 = vmul.f32 %v2855, %v2859
        %v2861 = vadd.f32 %v2860, 0.05243302
        %v2862 = vmul.f32 %v2855, %v2861
        %v2863 = vadd.f32 %v2862, 0.18741608
        %v2864 = vmul.f32 %v2855, %v2863
        %v2865 = vadd.f32 %v2864, 1.1283791
        %v2866 = vmul.f32 %v1276, %v2865
        %v2867 = vmul.f32 %v2855, 3.8918573e-05
        %v2868 = vadd.f32 %v2867, 0.001143296
        %v2869 = vmul.f32 %v2855, %v2868
        %v2870 = vadd.f32 %v2869, 0.014752088
        %v2871 = vmul.f32 %v2855, %v2870
        %v2872 = vadd.f32 %v2871, 0.112945676
        %v2873 = vmul.f32 %v2855, %v2872
        %v2874 = vadd.f32 %v2873, 0.4994258
        %v2875 = vmul.f32 %v2855, %v2874
        %v2876 = vadd.f32 %v2875, 1.0
        %v2877 = vrcp.pop %v2876
        %v2878 = vmul.f32 %v2876, %v2877
        %v2879 = vsub.f32 1.0, %v2878
        %v2880 = vmul.f32 %v2877, %v2879
        %v2881 = vadd.f32 %v2877, %v2880
        %vm2882 = vweird.f32 %v2876
        %vm2883 = vweird.f32 %v2877
        %vm2884 = vmor %vm2882, %vm2883
        %v2885 = vsel %vm2884, %v2877, %v2881
        %v2886 = vand.u32 2147483647, %v2876
        %vm2887 = vcmp.eq.f32.partialorder %v2886, 8.507059e+37
        %v2888 = vand.u32 %v2876, 2147483648
        %v2889 = vor.u32 1.1754944e-38, %v2888
        %v2890 = vsel %vm2887, %v2889, %v2885
        %v2891 = vmul.f32 %v2866, %v2890
        %v2892 = vmin.f32 %v2891, 1.0
        %v2893 = vmax.f32 %v2892, -1.0
        %v2894 = vmul.f32 %v1277, %v1277
        %v2895 = vmin.f32 16.0, %v2894
        %v2896 = vmul.f32 %v2895, 2.1237322e-06
        %v2897 = vadd.f32 %v2896, 0.00028619796
        %v2898 = vmul.f32 %v2895, %v2897
        %v2899 = vadd.f32 %v2898, 0.0036580483
        %v2900 = vmul.f32 %v2895, %v2899
        %v2901 = vadd.f32 %v2900, 0.05243302
        %v2902 = vmul.f32 %v2895, %v2901
        %v2903 = vadd.f32 %v2902, 0.18741608
        %v2904 = vmul.f32 %v2895, %v2903
        %v2905 = vadd.f32 %v2904, 1.1283791
        %v2906 = vmul.f32 %v1277, %v2905
        %v2907 = vmul.f32 %v2895, 3.8918573e-05
        %v2908 = vadd.f32 %v2907, 0.001143296
        %v2909 = vmul.f32 %v2895, %v2908
        %v2910 = vadd.f32 %v2909, 0.014752088
        %v2911 = vmul.f32 %v2895, %v2910
        %v2912 = vadd.f32 %v2911, 0.112945676
        %v2913 = vmul.f32 %v2895, %v2912
        %v2914 = vadd.f32 %v2913, 0.4994258
        %v2915 = vmul.f32 %v2895, %v2914
        %v2916 = vadd.f32 %v2915, 1.0
        %v2917 = vrcp.pop %v2916
        %v2918 = vmul.f32 %v2916, %v2917
        %v2919 = vsub.f32 1.0, %v2918
        %v2920 = vmul.f32 %v2917, %v2919
        %v2921 = vadd.f32 %v2917, %v2920
        %vm2922 = vweird.f32 %v2916
        %vm2923 = vweird.f32 %v2917
        %vm2924 = vmor %vm2922, %vm2923
        %v2925 = vsel %vm2924, %v2917, %v2921
        %v2926 = vand.u32 2147483647, %v2916
        %vm2927 = vcmp.eq.f32.partialorder %v2926, 8.507059e+37
        %v2928 = vand.u32 %v2916, 2147483648
        %v2929 = vor.u32 1.1754944e-38, %v2928
        %v2930 = vsel %vm2927, %v2929, %v2925
        %v2931 = vmul.f32 %v2906, %v2930
        %v2932 = vmin.f32 %v2931, 1.0
        %v2933 = vmax.f32 %v2932, -1.0
        %v2934 = vmul.f32 %v1278, %v1278
        %v2935 = vmin.f32 16.0, %v2934
        %v2936 = vmul.f32 %v2935, 2.1237322e-06
        %v2937 = vadd.f32 %v2936, 0.00028619796
        %v2938 = vmul.f32 %v2935, %v2937
        %v2939 = vadd.f32 %v2938, 0.0036580483
        %v2940 = vmul.f32 %v2935, %v2939
        %v2941 = vadd.f32 %v2940, 0.05243302
        %v2942 = vmul.f32 %v2935, %v2941
        %v2943 = vadd.f32 %v2942, 0.18741608
        %v2944 = vmul.f32 %v2935, %v2943
        %v2945 = vadd.f32 %v2944, 1.1283791
        %v2946 = vmul.f32 %v1278, %v2945
        %v2947 = vmul.f32 %v2935, 3.8918573e-05
        %v2948 = vadd.f32 %v2947, 0.001143296
        %v2949 = vmul.f32 %v2935, %v2948
        %v2950 = vadd.f32 %v2949, 0.014752088
        %v2951 = vmul.f32 %v2935, %v2950
        %v2952 = vadd.f32 %v2951, 0.112945676
        %v2953 = vmul.f32 %v2935, %v2952
        %v2954 = vadd.f32 %v2953, 0.4994258
        %v2955 = vmul.f32 %v2935, %v2954
        %v2956 = vadd.f32 %v2955, 1.0
        %v2957 = vrcp.pop %v2956
        %v2958 = vmul.f32 %v2956, %v2957
        %v2959 = vsub.f32 1.0, %v2958
        %v2960 = vmul.f32 %v2957, %v2959
        %v2961 = vadd.f32 %v2957, %v2960
        %vm2962 = vweird.f32 %v2956
        %vm2963 = vweird.f32 %v2957
        %vm2964 = vmor %vm2962, %vm2963
        %v2965 = vsel %vm2964, %v2957, %v2961
        %v2966 = vand.u32 2147483647, %v2956
        %vm2967 = vcmp.eq.f32.partialorder %v2966, 8.507059e+37
        %v2968 = vand.u32 %v2956, 2147483648
        %v2969 = vor.u32 1.1754944e-38, %v2968
        %v2970 = vsel %vm2967, %v2969, %v2965
        %v2971 = vmul.f32 %v2946, %v2970
        %v2972 = vmin.f32 %v2971, 1.0
        %v2973 = vmax.f32 %v2972, -1.0
        %v2974 = vmul.f32 %v1279, %v1279
        %v2975 = vmin.f32 16.0, %v2974
        %v2976 = vmul.f32 %v2975, 2.1237322e-06
        %v2977 = vadd.f32 %v2976, 0.00028619796
        %v2978 = vmul.f32 %v2975, %v2977
        %v2979 = vadd.f32 %v2978, 0.0036580483
        %v2980 = vmul.f32 %v2975, %v2979
        %v2981 = vadd.f32 %v2980, 0.05243302
        %v2982 = vmul.f32 %v2975, %v2981
        %v2983 = vadd.f32 %v2982, 0.18741608
        %v2984 = vmul.f32 %v2975, %v2983
        %v2985 = vadd.f32 %v2984, 1.1283791
        %v2986 = vmul.f32 %v1279, %v2985
        %v2987 = vmul.f32 %v2975, 3.8918573e-05
        %v2988 = vadd.f32 %v2987, 0.001143296
        %v2989 = vmul.f32 %v2975, %v2988
        %v2990 = vadd.f32 %v2989, 0.014752088
        %v2991 = vmul.f32 %v2975, %v2990
        %v2992 = vadd.f32 %v2991, 0.112945676
        %v2993 = vmul.f32 %v2975, %v2992
        %v2994 = vadd.f32 %v2993, 0.4994258
        %v2995 = vmul.f32 %v2975, %v2994
        %v2996 = vadd.f32 %v2995, 1.0
        %v2997 = vrcp.pop %v2996
        %v2998 = vmul.f32 %v2996, %v2997
        %v2999 = vsub.f32 1.0, %v2998
        %v3000 = vmul.f32 %v2997, %v2999
        %v3001 = vadd.f32 %v2997, %v3000
        %vm3002 = vweird.f32 %v2996
        %vm3003 = vweird.f32 %v2997
        %vm3004 = vmor %vm3002, %vm3003
        %v3005 = vsel %vm3004, %v2997, %v3001
        %v3006 = vand.u32 2147483647, %v2996
        %vm3007 = vcmp.eq.f32.partialorder %v3006, 8.507059e+37
        %v3008 = vand.u32 %v2996, 2147483648
        %v3009 = vor.u32 1.1754944e-38, %v3008
        %v3010 = vsel %vm3007, %v3009, %v3005
        %v3011 = vmul.f32 %v2986, %v3010
        %v3012 = vmin.f32 %v3011, 1.0
        %v3013 = vmax.f32 %v3012, -1.0
        %v3014 = vmul.f32 %v1280, %v1280
        %v3015 = vmin.f32 16.0, %v3014
        %v3016 = vmul.f32 %v3015, 2.1237322e-06
        %v3017 = vadd.f32 %v3016, 0.00028619796
        %v3018 = vmul.f32 %v3015, %v3017
        %v3019 = vadd.f32 %v3018, 0.0036580483
        %v3020 = vmul.f32 %v3015, %v3019
        %v3021 = vadd.f32 %v3020, 0.05243302
        %v3022 = vmul.f32 %v3015, %v3021
        %v3023 = vadd.f32 %v3022, 0.18741608
        %v3024 = vmul.f32 %v3015, %v3023
        %v3025 = vadd.f32 %v3024, 1.1283791
        %v3026 = vmul.f32 %v1280, %v3025
        %v3027 = vmul.f32 %v3015, 3.8918573e-05
        %v3028 = vadd.f32 %v3027, 0.001143296
        %v3029 = vmul.f32 %v3015, %v3028
        %v3030 = vadd.f32 %v3029, 0.014752088
        %v3031 = vmul.f32 %v3015, %v3030
        %v3032 = vadd.f32 %v3031, 0.112945676
        %v3033 = vmul.f32 %v3015, %v3032
        %v3034 = vadd.f32 %v3033, 0.4994258
        %v3035 = vmul.f32 %v3015, %v3034
        %v3036 = vadd.f32 %v3035, 1.0
        %v3037 = vrcp.pop %v3036
        %v3038 = vmul.f32 %v3036, %v3037
        %v3039 = vsub.f32 1.0, %v3038
        %v3040 = vmul.f32 %v3037, %v3039
        %v3041 = vadd.f32 %v3037, %v3040
        %vm3042 = vweird.f32 %v3036
        %vm3043 = vweird.f32 %v3037
        %vm3044 = vmor %vm3042, %vm3043
        %v3045 = vsel %vm3044, %v3037, %v3041
        %v3046 = vand.u32 2147483647, %v3036
        %vm3047 = vcmp.eq.f32.partialorder %v3046, 8.507059e+37
        %v3048 = vand.u32 %v3036, 2147483648
        %v3049 = vor.u32 1.1754944e-38, %v3048
        %v3050 = vsel %vm3047, %v3049, %v3045
        %v3051 = vmul.f32 %v3026, %v3050
        %v3052 = vmin.f32 %v3051, 1.0
        %v3053 = vmax.f32 %v3052, -1.0
        %v3054 = vmul.f32 %v1281, %v1281
        %v3055 = vmin.f32 16.0, %v3054
        %v3056 = vmul.f32 %v3055, 2.1237322e-06
        %v3057 = vadd.f32 %v3056, 0.00028619796
        %v3058 = vmul.f32 %v3055, %v3057
        %v3059 = vadd.f32 %v3058, 0.0036580483
        %v3060 = vmul.f32 %v3055, %v3059
        %v3061 = vadd.f32 %v3060, 0.05243302
        %v3062 = vmul.f32 %v3055, %v3061
        %v3063 = vadd.f32 %v3062, 0.18741608
        %v3064 = vmul.f32 %v3055, %v3063
        %v3065 = vadd.f32 %v3064, 1.1283791
        %v3066 = vmul.f32 %v1281, %v3065
        %v3067 = vmul.f32 %v3055, 3.8918573e-05
        %v3068 = vadd.f32 %v3067, 0.001143296
        %v3069 = vmul.f32 %v3055, %v3068
        %v3070 = vadd.f32 %v3069, 0.014752088
        %v3071 = vmul.f32 %v3055, %v3070
        %v3072 = vadd.f32 %v3071, 0.112945676
        %v3073 = vmul.f32 %v3055, %v3072
        %v3074 = vadd.f32 %v3073, 0.4994258
        %v3075 = vmul.f32 %v3055, %v3074
        %v3076 = vadd.f32 %v3075, 1.0
        %v3077 = vrcp.pop %v3076
        %v3078 = vmul.f32 %v3076, %v3077
        %v3079 = vsub.f32 1.0, %v3078
        %v3080 = vmul.f32 %v3077, %v3079
        %v3081 = vadd.f32 %v3077, %v3080
        %vm3082 = vweird.f32 %v3076
        %vm3083 = vweird.f32 %v3077
        %vm3084 = vmor %vm3082, %vm3083
        %v3085 = vsel %vm3084, %v3077, %v3081
        %v3086 = vand.u32 2147483647, %v3076
        %vm3087 = vcmp.eq.f32.partialorder %v3086, 8.507059e+37
        %v3088 = vand.u32 %v3076, 2147483648
        %v3089 = vor.u32 1.1754944e-38, %v3088
        %v3090 = vsel %vm3087, %v3089, %v3085
        %v3091 = vmul.f32 %v3066, %v3090
        %v3092 = vmin.f32 %v3091, 1.0
        %v3093 = vmax.f32 %v3092, -1.0
        %v3094 = vmul.f32 %v1282, %v1282
        %v3095 = vmin.f32 16.0, %v3094
        %v3096 = vmul.f32 %v3095, 2.1237322e-06
        %v3097 = vadd.f32 %v3096, 0.00028619796
        %v3098 = vmul.f32 %v3095, %v3097
        %v3099 = vadd.f32 %v3098, 0.0036580483
        %v3100 = vmul.f32 %v3095, %v3099
        %v3101 = vadd.f32 %v3100, 0.05243302
        %v3102 = vmul.f32 %v3095, %v3101
        %v3103 = vadd.f32 %v3102, 0.18741608
        %v3104 = vmul.f32 %v3095, %v3103
        %v3105 = vadd.f32 %v3104, 1.1283791
        %v3106 = vmul.f32 %v1282, %v3105
        %v3107 = vmul.f32 %v3095, 3.8918573e-05
        %v3108 = vadd.f32 %v3107, 0.001143296
        %v3109 = vmul.f32 %v3095, %v3108
        %v3110 = vadd.f32 %v3109, 0.014752088
        %v3111 = vmul.f32 %v3095, %v3110
        %v3112 = vadd.f32 %v3111, 0.112945676
        %v3113 = vmul.f32 %v3095, %v3112
        %v3114 = vadd.f32 %v3113, 0.4994258
        %v3115 = vmul.f32 %v3095, %v3114
        %v3116 = vadd.f32 %v3115, 1.0
        %v3117 = vrcp.pop %v3116
        %v3118 = vmul.f32 %v3116, %v3117
        %v3119 = vsub.f32 1.0, %v3118
        %v3120 = vmul.f32 %v3117, %v3119
        %v3121 = vadd.f32 %v3117, %v3120
        %vm3122 = vweird.f32 %v3116
        %vm3123 = vweird.f32 %v3117
        %vm3124 = vmor %vm3122, %vm3123
        %v3125 = vsel %vm3124, %v3117, %v3121
        %v3126 = vand.u32 2147483647, %v3116
        %vm3127 = vcmp.eq.f32.partialorder %v3126, 8.507059e+37
        %v3128 = vand.u32 %v3116, 2147483648
        %v3129 = vor.u32 1.1754944e-38, %v3128
        %v3130 = vsel %vm3127, %v3129, %v3125
        %v3131 = vmul.f32 %v3106, %v3130
        %v3132 = vmin.f32 %v3131, 1.0
        %v3133 = vmax.f32 %v3132, -1.0
        %v3134 = vmul.f32 %v1283, %v1283
        %v3135 = vmin.f32 16.0, %v3134
        %v3136 = vmul.f32 %v3135, 2.1237322e-06
        %v3137 = vadd.f32 %v3136, 0.00028619796
        %v3138 = vmul.f32 %v3135, %v3137
        %v3139 = vadd.f32 %v3138, 0.0036580483
        %v3140 = vmul.f32 %v3135, %v3139
        %v3141 = vadd.f32 %v3140, 0.05243302
        %v3142 = vmul.f32 %v3135, %v3141
        %v3143 = vadd.f32 %v3142, 0.18741608
        %v3144 = vmul.f32 %v3135, %v3143
        %v3145 = vadd.f32 %v3144, 1.1283791
        %v3146 = vmul.f32 %v1283, %v3145
        %v3147 = vmul.f32 %v3135, 3.8918573e-05
        %v3148 = vadd.f32 %v3147, 0.001143296
        %v3149 = vmul.f32 %v3135, %v3148
        %v3150 = vadd.f32 %v3149, 0.014752088
        %v3151 = vmul.f32 %v3135, %v3150
        %v3152 = vadd.f32 %v3151, 0.112945676
        %v3153 = vmul.f32 %v3135, %v3152
        %v3154 = vadd.f32 %v3153, 0.4994258
        %v3155 = vmul.f32 %v3135, %v3154
        %v3156 = vadd.f32 %v3155, 1.0
        %v3157 = vrcp.pop %v3156
        %v3158 = vmul.f32 %v3156, %v3157
        %v3159 = vsub.f32 1.0, %v3158
        %v3160 = vmul.f32 %v3157, %v3159
        %v3161 = vadd.f32 %v3157, %v3160
        %vm3162 = vweird.f32 %v3156
        %vm3163 = vweird.f32 %v3157
        %vm3164 = vmor %vm3162, %vm3163
        %v3165 = vsel %vm3164, %v3157, %v3161
        %v3166 = vand.u32 2147483647, %v3156
        %vm3167 = vcmp.eq.f32.partialorder %v3166, 8.507059e+37
        %v3168 = vand.u32 %v3156, 2147483648
        %v3169 = vor.u32 1.1754944e-38, %v3168
        %v3170 = vsel %vm3167, %v3169, %v3165
        %v3171 = vmul.f32 %v3146, %v3170
        %v3172 = vmin.f32 %v3171, 1.0
        %v3173 = vmax.f32 %v3172, -1.0
        %v3174 = vmul.f32 %v1284, %v1284
        %v3175 = vmin.f32 16.0, %v3174
        %v3176 = vmul.f32 %v3175, 2.1237322e-06
        %v3177 = vadd.f32 %v3176, 0.00028619796
        %v3178 = vmul.f32 %v3175, %v3177
        %v3179 = vadd.f32 %v3178, 0.0036580483
        %v3180 = vmul.f32 %v3175, %v3179
        %v3181 = vadd.f32 %v3180, 0.05243302
        %v3182 = vmul.f32 %v3175, %v3181
        %v3183 = vadd.f32 %v3182, 0.18741608
        %v3184 = vmul.f32 %v3175, %v3183
        %v3185 = vadd.f32 %v3184, 1.1283791
        %v3186 = vmul.f32 %v1284, %v3185
        %v3187 = vmul.f32 %v3175, 3.8918573e-05
        %v3188 = vadd.f32 %v3187, 0.001143296
        %v3189 = vmul.f32 %v3175, %v3188
        %v3190 = vadd.f32 %v3189, 0.014752088
        %v3191 = vmul.f32 %v3175, %v3190
        %v3192 = vadd.f32 %v3191, 0.112945676
        %v3193 = vmul.f32 %v3175, %v3192
        %v3194 = vadd.f32 %v3193, 0.4994258
        %v3195 = vmul.f32 %v3175, %v3194
        %v3196 = vadd.f32 %v3195, 1.0
        %v3197 = vrcp.pop %v3196
        %v3198 = vmul.f32 %v3196, %v3197
        %v3199 = vsub.f32 1.0, %v3198
        %v3200 = vmul.f32 %v3197, %v3199
        %v3201 = vadd.f32 %v3197, %v3200
        %vm3202 = vweird.f32 %v3196
        %vm3203 = vweird.f32 %v3197
        %vm3204 = vmor %vm3202, %vm3203
        %v3205 = vsel %vm3204, %v3197, %v3201
        %v3206 = vand.u32 2147483647, %v3196
        %vm3207 = vcmp.eq.f32.partialorder %v3206, 8.507059e+37
        %v3208 = vand.u32 %v3196, 2147483648
        %v3209 = vor.u32 1.1754944e-38, %v3208
        %v3210 = vsel %vm3207, %v3209, %v3205
        %v3211 = vmul.f32 %v3186, %v3210
        %v3212 = vmin.f32 %v3211, 1.0
        %v3213 = vmax.f32 %v3212, -1.0
        %v3214 = vmul.f32 %v1285, %v1285
        %v3215 = vmin.f32 16.0, %v3214
        %v3216 = vmul.f32 %v3215, 2.1237322e-06
        %v3217 = vadd.f32 %v3216, 0.00028619796
        %v3218 = vmul.f32 %v3215, %v3217
        %v3219 = vadd.f32 %v3218, 0.0036580483
        %v3220 = vmul.f32 %v3215, %v3219
        %v3221 = vadd.f32 %v3220, 0.05243302
        %v3222 = vmul.f32 %v3215, %v3221
        %v3223 = vadd.f32 %v3222, 0.18741608
        %v3224 = vmul.f32 %v3215, %v3223
        %v3225 = vadd.f32 %v3224, 1.1283791
        %v3226 = vmul.f32 %v1285, %v3225
        %v3227 = vmul.f32 %v3215, 3.8918573e-05
        %v3228 = vadd.f32 %v3227, 0.001143296
        %v3229 = vmul.f32 %v3215, %v3228
        %v3230 = vadd.f32 %v3229, 0.014752088
        %v3231 = vmul.f32 %v3215, %v3230
        %v3232 = vadd.f32 %v3231, 0.112945676
        %v3233 = vmul.f32 %v3215, %v3232
        %v3234 = vadd.f32 %v3233, 0.4994258
        %v3235 = vmul.f32 %v3215, %v3234
        %v3236 = vadd.f32 %v3235, 1.0
        %v3237 = vrcp.pop %v3236
        %v3238 = vmul.f32 %v3236, %v3237
        %v3239 = vsub.f32 1.0, %v3238
        %v3240 = vmul.f32 %v3237, %v3239
        %v3241 = vadd.f32 %v3237, %v3240
        %vm3242 = vweird.f32 %v3236
        %vm3243 = vweird.f32 %v3237
        %vm3244 = vmor %vm3242, %vm3243
        %v3245 = vsel %vm3244, %v3237, %v3241
        %v3246 = vand.u32 2147483647, %v3236
        %vm3247 = vcmp.eq.f32.partialorder %v3246, 8.507059e+37
        %v3248 = vand.u32 %v3236, 2147483648
        %v3249 = vor.u32 1.1754944e-38, %v3248
        %v3250 = vsel %vm3247, %v3249, %v3245
        %v3251 = vmul.f32 %v3226, %v3250
        %v3252 = vmin.f32 %v3251, 1.0
        %v3253 = vmax.f32 %v3252, -1.0
        %v3254 = vmul.f32 %v1286, %v1286
        %v3255 = vmin.f32 16.0, %v3254
        %v3256 = vmul.f32 %v3255, 2.1237322e-06
        %v3257 = vadd.f32 %v3256, 0.00028619796
        %v3258 = vmul.f32 %v3255, %v3257
        %v3259 = vadd.f32 %v3258, 0.0036580483
        %v3260 = vmul.f32 %v3255, %v3259
        %v3261 = vadd.f32 %v3260, 0.05243302
        %v3262 = vmul.f32 %v3255, %v3261
        %v3263 = vadd.f32 %v3262, 0.18741608
        %v3264 = vmul.f32 %v3255, %v3263
        %v3265 = vadd.f32 %v3264, 1.1283791
        %v3266 = vmul.f32 %v1286, %v3265
        %v3267 = vmul.f32 %v3255, 3.8918573e-05
        %v3268 = vadd.f32 %v3267, 0.001143296
        %v3269 = vmul.f32 %v3255, %v3268
        %v3270 = vadd.f32 %v3269, 0.014752088
        %v3271 = vmul.f32 %v3255, %v3270
        %v3272 = vadd.f32 %v3271, 0.112945676
        %v3273 = vmul.f32 %v3255, %v3272
        %v3274 = vadd.f32 %v3273, 0.4994258
        %v3275 = vmul.f32 %v3255, %v3274
        %v3276 = vadd.f32 %v3275, 1.0
        %v3277 = vrcp.pop %v3276
        %v3278 = vmul.f32 %v3276, %v3277
        %v3279 = vsub.f32 1.0, %v3278
        %v3280 = vmul.f32 %v3277, %v3279
        %v3281 = vadd.f32 %v3277, %v3280
        %vm3282 = vweird.f32 %v3276
        %vm3283 = vweird.f32 %v3277
        %vm3284 = vmor %vm3282, %vm3283
        %v3285 = vsel %vm3284, %v3277, %v3281
        %v3286 = vand.u32 2147483647, %v3276
        %vm3287 = vcmp.eq.f32.partialorder %v3286, 8.507059e+37
        %v3288 = vand.u32 %v3276, 2147483648
        %v3289 = vor.u32 1.1754944e-38, %v3288
        %v3290 = vsel %vm3287, %v3289, %v3285
        %v3291 = vmul.f32 %v3266, %v3290
        %v3292 = vmin.f32 %v3291, 1.0
        %v3293 = vmax.f32 %v3292, -1.0
        %v3294 = vmul.f32 %v1287, %v1287
        %v3295 = vmin.f32 16.0, %v3294
        %v3296 = vmul.f32 %v3295, 2.1237322e-06
        %v3297 = vadd.f32 %v3296, 0.00028619796
        %v3298 = vmul.f32 %v3295, %v3297
        %v3299 = vadd.f32 %v3298, 0.0036580483
        %v3300 = vmul.f32 %v3295, %v3299
        %v3301 = vadd.f32 %v3300, 0.05243302
        %v3302 = vmul.f32 %v3295, %v3301
        %v3303 = vadd.f32 %v3302, 0.18741608
        %v3304 = vmul.f32 %v3295, %v3303
        %v3305 = vadd.f32 %v3304, 1.1283791
        %v3306 = vmul.f32 %v1287, %v3305
        %v3307 = vmul.f32 %v3295, 3.8918573e-05
        %v3308 = vadd.f32 %v3307, 0.001143296
        %v3309 = vmul.f32 %v3295, %v3308
        %v3310 = vadd.f32 %v3309, 0.014752088
        %v3311 = vmul.f32 %v3295, %v3310
        %v3312 = vadd.f32 %v3311, 0.112945676
        %v3313 = vmul.f32 %v3295, %v3312
        %v3314 = vadd.f32 %v3313, 0.4994258
        %v3315 = vmul.f32 %v3295, %v3314
        %v3316 = vadd.f32 %v3315, 1.0
        %v3317 = vrcp.pop %v3316
        %v3318 = vmul.f32 %v3316, %v3317
        %v3319 = vsub.f32 1.0, %v3318
        %v3320 = vmul.f32 %v3317, %v3319
        %v3321 = vadd.f32 %v3317, %v3320
        %vm3322 = vweird.f32 %v3316
        %vm3323 = vweird.f32 %v3317
        %vm3324 = vmor %vm3322, %vm3323
        %v3325 = vsel %vm3324, %v3317, %v3321
        %v3326 = vand.u32 2147483647, %v3316
        %vm3327 = vcmp.eq.f32.partialorder %v3326, 8.507059e+37
        %v3328 = vand.u32 %v3316, 2147483648
        %v3329 = vor.u32 1.1754944e-38, %v3328
        %v3330 = vsel %vm3327, %v3329, %v3325
        %v3331 = vmul.f32 %v3306, %v3330
        %v3332 = vmin.f32 %v3331, 1.0
        %v3333 = vmax.f32 %v3332, -1.0
        %v3334 = vmul.f32 %v1288, %v1288
        %v3335 = vmin.f32 16.0, %v3334
        %v3336 = vmul.f32 %v3335, 2.1237322e-06
        %v3337 = vadd.f32 %v3336, 0.00028619796
        %v3338 = vmul.f32 %v3335, %v3337
        %v3339 = vadd.f32 %v3338, 0.0036580483
        %v3340 = vmul.f32 %v3335, %v3339
        %v3341 = vadd.f32 %v3340, 0.05243302
        %v3342 = vmul.f32 %v3335, %v3341
        %v3343 = vadd.f32 %v3342, 0.18741608
        %v3344 = vmul.f32 %v3335, %v3343
        %v3345 = vadd.f32 %v3344, 1.1283791
        %v3346 = vmul.f32 %v1288, %v3345
        %v3347 = vmul.f32 %v3335, 3.8918573e-05
        %v3348 = vadd.f32 %v3347, 0.001143296
        %v3349 = vmul.f32 %v3335, %v3348
        %v3350 = vadd.f32 %v3349, 0.014752088
        %v3351 = vmul.f32 %v3335, %v3350
        %v3352 = vadd.f32 %v3351, 0.112945676
        %v3353 = vmul.f32 %v3335, %v3352
        %v3354 = vadd.f32 %v3353, 0.4994258
        %v3355 = vmul.f32 %v3335, %v3354
        %v3356 = vadd.f32 %v3355, 1.0
        %v3357 = vrcp.pop %v3356
        %v3358 = vmul.f32 %v3356, %v3357
        %v3359 = vsub.f32 1.0, %v3358
        %v3360 = vmul.f32 %v3357, %v3359
        %v3361 = vadd.f32 %v3357, %v3360
        %vm3362 = vweird.f32 %v3356
        %vm3363 = vweird.f32 %v3357
        %vm3364 = vmor %vm3362, %vm3363
        %v3365 = vsel %vm3364, %v3357, %v3361
        %v3366 = vand.u32 2147483647, %v3356
        %vm3367 = vcmp.eq.f32.partialorder %v3366, 8.507059e+37
        %v3368 = vand.u32 %v3356, 2147483648
        %v3369 = vor.u32 1.1754944e-38, %v3368
        %v3370 = vsel %vm3367, %v3369, %v3365
        %v3371 = vmul.f32 %v3346, %v3370
        %v3372 = vmin.f32 %v3371, 1.0
        %v3373 = vmax.f32 %v3372, -1.0
        %v3374 = vmul.f32 %v1289, %v1289
        %v3375 = vmin.f32 16.0, %v3374
        %v3376 = vmul.f32 %v3375, 2.1237322e-06
        %v3377 = vadd.f32 %v3376, 0.00028619796
        %v3378 = vmul.f32 %v3375, %v3377
        %v3379 = vadd.f32 %v3378, 0.0036580483
        %v3380 = vmul.f32 %v3375, %v3379
        %v3381 = vadd.f32 %v3380, 0.05243302
        %v3382 = vmul.f32 %v3375, %v3381
        %v3383 = vadd.f32 %v3382, 0.18741608
        %v3384 = vmul.f32 %v3375, %v3383
        %v3385 = vadd.f32 %v3384, 1.1283791
        %v3386 = vmul.f32 %v1289, %v3385
        %v3387 = vmul.f32 %v3375, 3.8918573e-05
        %v3388 = vadd.f32 %v3387, 0.001143296
        %v3389 = vmul.f32 %v3375, %v3388
        %v3390 = vadd.f32 %v3389, 0.014752088
        %v3391 = vmul.f32 %v3375, %v3390
        %v3392 = vadd.f32 %v3391, 0.112945676
        %v3393 = vmul.f32 %v3375, %v3392
        %v3394 = vadd.f32 %v3393, 0.4994258
        %v3395 = vmul.f32 %v3375, %v3394
        %v3396 = vadd.f32 %v3395, 1.0
        %v3397 = vrcp.pop %v3396
        %v3398 = vmul.f32 %v3396, %v3397
        %v3399 = vsub.f32 1.0, %v3398
        %v3400 = vmul.f32 %v3397, %v3399
        %v3401 = vadd.f32 %v3397, %v3400
        %vm3402 = vweird.f32 %v3396
        %vm3403 = vweird.f32 %v3397
        %vm3404 = vmor %vm3402, %vm3403
        %v3405 = vsel %vm3404, %v3397, %v3401
        %v3406 = vand.u32 2147483647, %v3396
        %vm3407 = vcmp.eq.f32.partialorder %v3406, 8.507059e+37
        %v3408 = vand.u32 %v3396, 2147483648
        %v3409 = vor.u32 1.1754944e-38, %v3408
        %v3410 = vsel %vm3407, %v3409, %v3405
        %v3411 = vmul.f32 %v3386, %v3410
        %v3412 = vmin.f32 %v3411, 1.0
        %v3413 = vmax.f32 %v3412, -1.0
        %v3414 = vmul.f32 %v1290, %v1290
        %v3415 = vmin.f32 16.0, %v3414
        %v3416 = vmul.f32 %v3415, 2.1237322e-06
        %v3417 = vadd.f32 %v3416, 0.00028619796
        %v3418 = vmul.f32 %v3415, %v3417
        %v3419 = vadd.f32 %v3418, 0.0036580483
        %v3420 = vmul.f32 %v3415, %v3419
        %v3421 = vadd.f32 %v3420, 0.05243302
        %v3422 = vmul.f32 %v3415, %v3421
        %v3423 = vadd.f32 %v3422, 0.18741608
        %v3424 = vmul.f32 %v3415, %v3423
        %v3425 = vadd.f32 %v3424, 1.1283791
        %v3426 = vmul.f32 %v1290, %v3425
        %v3427 = vmul.f32 %v3415, 3.8918573e-05
        %v3428 = vadd.f32 %v3427, 0.001143296
        %v3429 = vmul.f32 %v3415, %v3428
        %v3430 = vadd.f32 %v3429, 0.014752088
        %v3431 = vmul.f32 %v3415, %v3430
        %v3432 = vadd.f32 %v3431, 0.112945676
        %v3433 = vmul.f32 %v3415, %v3432
        %v3434 = vadd.f32 %v3433, 0.4994258
        %v3435 = vmul.f32 %v3415, %v3434
        %v3436 = vadd.f32 %v3435, 1.0
        %v3437 = vrcp.pop %v3436
        %v3438 = vmul.f32 %v3436, %v3437
        %v3439 = vsub.f32 1.0, %v3438
        %v3440 = vmul.f32 %v3437, %v3439
        %v3441 = vadd.f32 %v3437, %v3440
        %vm3442 = vweird.f32 %v3436
        %vm3443 = vweird.f32 %v3437
        %vm3444 = vmor %vm3442, %vm3443
        %v3445 = vsel %vm3444, %v3437, %v3441
        %v3446 = vand.u32 2147483647, %v3436
        %vm3447 = vcmp.eq.f32.partialorder %v3446, 8.507059e+37
        %v3448 = vand.u32 %v3436, 2147483648
        %v3449 = vor.u32 1.1754944e-38, %v3448
        %v3450 = vsel %vm3447, %v3449, %v3445
        %v3451 = vmul.f32 %v3426, %v3450
        %v3452 = vmin.f32 %v3451, 1.0
        %v3453 = vmax.f32 %v3452, -1.0
        %v3454 = vmul.f32 %v1291, %v1291
        %v3455 = vmin.f32 16.0, %v3454
        %v3456 = vmul.f32 %v3455, 2.1237322e-06
        %v3457 = vadd.f32 %v3456, 0.00028619796
        %v3458 = vmul.f32 %v3455, %v3457
        %v3459 = vadd.f32 %v3458, 0.0036580483
        %v3460 = vmul.f32 %v3455, %v3459
        %v3461 = vadd.f32 %v3460, 0.05243302
        %v3462 = vmul.f32 %v3455, %v3461
        %v3463 = vadd.f32 %v3462, 0.18741608
        %v3464 = vmul.f32 %v3455, %v3463
        %v3465 = vadd.f32 %v3464, 1.1283791
        %v3466 = vmul.f32 %v1291, %v3465
        %v3467 = vmul.f32 %v3455, 3.8918573e-05
        %v3468 = vadd.f32 %v3467, 0.001143296
        %v3469 = vmul.f32 %v3455, %v3468
        %v3470 = vadd.f32 %v3469, 0.014752088
        %v3471 = vmul.f32 %v3455, %v3470
        %v3472 = vadd.f32 %v3471, 0.112945676
        %v3473 = vmul.f32 %v3455, %v3472
        %v3474 = vadd.f32 %v3473, 0.4994258
        %v3475 = vmul.f32 %v3455, %v3474
        %v3476 = vadd.f32 %v3475, 1.0
        %v3477 = vrcp.pop %v3476
        %v3478 = vmul.f32 %v3476, %v3477
        %v3479 = vsub.f32 1.0, %v3478
        %v3480 = vmul.f32 %v3477, %v3479
        %v3481 = vadd.f32 %v3477, %v3480
        %vm3482 = vweird.f32 %v3476
        %vm3483 = vweird.f32 %v3477
        %vm3484 = vmor %vm3482, %vm3483
        %v3485 = vsel %vm3484, %v3477, %v3481
        %v3486 = vand.u32 2147483647, %v3476
        %vm3487 = vcmp.eq.f32.partialorder %v3486, 8.507059e+37
        %v3488 = vand.u32 %v3476, 2147483648
        %v3489 = vor.u32 1.1754944e-38, %v3488
        %v3490 = vsel %vm3487, %v3489, %v3485
        %v3491 = vmul.f32 %v3466, %v3490
        %v3492 = vmin.f32 %v3491, 1.0
        %v3493 = vmax.f32 %v3492, -1.0
        %v3494 = vmul.f32 %v1292, %v1292
        %v3495 = vmin.f32 16.0, %v3494
        %v3496 = vmul.f32 %v3495, 2.1237322e-06
        %v3497 = vadd.f32 %v3496, 0.00028619796
        %v3498 = vmul.f32 %v3495, %v3497
        %v3499 = vadd.f32 %v3498, 0.0036580483
        %v3500 = vmul.f32 %v3495, %v3499
        %v3501 = vadd.f32 %v3500, 0.05243302
        %v3502 = vmul.f32 %v3495, %v3501
        %v3503 = vadd.f32 %v3502, 0.18741608
        %v3504 = vmul.f32 %v3495, %v3503
        %v3505 = vadd.f32 %v3504, 1.1283791
        %v3506 = vmul.f32 %v1292, %v3505
        %v3507 = vmul.f32 %v3495, 3.8918573e-05
        %v3508 = vadd.f32 %v3507, 0.001143296
        %v3509 = vmul.f32 %v3495, %v3508
        %v3510 = vadd.f32 %v3509, 0.014752088
        %v3511 = vmul.f32 %v3495, %v3510
        %v3512 = vadd.f32 %v3511, 0.112945676
        %v3513 = vmul.f32 %v3495, %v3512
        %v3514 = vadd.f32 %v3513, 0.4994258
        %v3515 = vmul.f32 %v3495, %v3514
        %v3516 = vadd.f32 %v3515, 1.0
        %v3517 = vrcp.pop %v3516
        %v3518 = vmul.f32 %v3516, %v3517
        %v3519 = vsub.f32 1.0, %v3518
        %v3520 = vmul.f32 %v3517, %v3519
        %v3521 = vadd.f32 %v3517, %v3520
        %vm3522 = vweird.f32 %v3516
        %vm3523 = vweird.f32 %v3517
        %vm3524 = vmor %vm3522, %vm3523
        %v3525 = vsel %vm3524, %v3517, %v3521
        %v3526 = vand.u32 2147483647, %v3516
        %vm3527 = vcmp.eq.f32.partialorder %v3526, 8.507059e+37
        %v3528 = vand.u32 %v3516, 2147483648
        %v3529 = vor.u32 1.1754944e-38, %v3528
        %v3530 = vsel %vm3527, %v3529, %v3525
        %v3531 = vmul.f32 %v3506, %v3530
        %v3532 = vmin.f32 %v3531, 1.0
        %v3533 = vmax.f32 %v3532, -1.0
        %v3534 = vmul.f32 %v1293, %v1293
        %v3535 = vmin.f32 16.0, %v3534
        %v3536 = vmul.f32 %v3535, 2.1237322e-06
        %v3537 = vadd.f32 %v3536, 0.00028619796
        %v3538 = vmul.f32 %v3535, %v3537
        %v3539 = vadd.f32 %v3538, 0.0036580483
        %v3540 = vmul.f32 %v3535, %v3539
        %v3541 = vadd.f32 %v3540, 0.05243302
        %v3542 = vmul.f32 %v3535, %v3541
        %v3543 = vadd.f32 %v3542, 0.18741608
        %v3544 = vmul.f32 %v3535, %v3543
        %v3545 = vadd.f32 %v3544, 1.1283791
        %v3546 = vmul.f32 %v1293, %v3545
        %v3547 = vmul.f32 %v3535, 3.8918573e-05
        %v3548 = vadd.f32 %v3547, 0.001143296
        %v3549 = vmul.f32 %v3535, %v3548
        %v3550 = vadd.f32 %v3549, 0.014752088
        %v3551 = vmul.f32 %v3535, %v3550
        %v3552 = vadd.f32 %v3551, 0.112945676
        %v3553 = vmul.f32 %v3535, %v3552
        %v3554 = vadd.f32 %v3553, 0.4994258
        %v3555 = vmul.f32 %v3535, %v3554
        %v3556 = vadd.f32 %v3555, 1.0
        %v3557 = vrcp.pop %v3556
        %v3558 = vmul.f32 %v3556, %v3557
        %v3559 = vsub.f32 1.0, %v3558
        %v3560 = vmul.f32 %v3557, %v3559
        %v3561 = vadd.f32 %v3557, %v3560
        %vm3562 = vweird.f32 %v3556
        %vm3563 = vweird.f32 %v3557
        %vm3564 = vmor %vm3562, %vm3563
        %v3565 = vsel %vm3564, %v3557, %v3561
        %v3566 = vand.u32 2147483647, %v3556
        %vm3567 = vcmp.eq.f32.partialorder %v3566, 8.507059e+37
        %v3568 = vand.u32 %v3556, 2147483648
        %v3569 = vor.u32 1.1754944e-38, %v3568
        %v3570 = vsel %vm3567, %v3569, %v3565
        %v3571 = vmul.f32 %v3546, %v3570
        %v3572 = vmin.f32 %v3571, 1.0
        %v3573 = vmax.f32 %v3572, -1.0
        %v3574 = vmul.f32 %v1294, %v1294
        %v3575 = vmin.f32 16.0, %v3574
        %v3576 = vmul.f32 %v3575, 2.1237322e-06
        %v3577 = vadd.f32 %v3576, 0.00028619796
        %v3578 = vmul.f32 %v3575, %v3577
        %v3579 = vadd.f32 %v3578, 0.0036580483
        %v3580 = vmul.f32 %v3575, %v3579
        %v3581 = vadd.f32 %v3580, 0.05243302
        %v3582 = vmul.f32 %v3575, %v3581
        %v3583 = vadd.f32 %v3582, 0.18741608
        %v3584 = vmul.f32 %v3575, %v3583
        %v3585 = vadd.f32 %v3584, 1.1283791
        %v3586 = vmul.f32 %v1294, %v3585
        %v3587 = vmul.f32 %v3575, 3.8918573e-05
        %v3588 = vadd.f32 %v3587, 0.001143296
        %v3589 = vmul.f32 %v3575, %v3588
        %v3590 = vadd.f32 %v3589, 0.014752088
        %v3591 = vmul.f32 %v3575, %v3590
        %v3592 = vadd.f32 %v3591, 0.112945676
        %v3593 = vmul.f32 %v3575, %v3592
        %v3594 = vadd.f32 %v3593, 0.4994258
        %v3595 = vmul.f32 %v3575, %v3594
        %v3596 = vadd.f32 %v3595, 1.0
        %v3597 = vrcp.pop %v3596
        %v3598 = vmul.f32 %v3596, %v3597
        %v3599 = vsub.f32 1.0, %v3598
        %v3600 = vmul.f32 %v3597, %v3599
        %v3601 = vadd.f32 %v3597, %v3600
        %vm3602 = vweird.f32 %v3596
        %vm3603 = vweird.f32 %v3597
        %vm3604 = vmor %vm3602, %vm3603
        %v3605 = vsel %vm3604, %v3597, %v3601
        %v3606 = vand.u32 2147483647, %v3596
        %vm3607 = vcmp.eq.f32.partialorder %v3606, 8.507059e+37
        %v3608 = vand.u32 %v3596, 2147483648
        %v3609 = vor.u32 1.1754944e-38, %v3608
        %v3610 = vsel %vm3607, %v3609, %v3605
        %v3611 = vmul.f32 %v3586, %v3610
        %v3612 = vmin.f32 %v3611, 1.0
        %v3613 = vmax.f32 %v3612, -1.0
        %v3614 = vmul.f32 %v1295, %v1295
        %v3615 = vmin.f32 16.0, %v3614
        %v3616 = vmul.f32 %v3615, 2.1237322e-06
        %v3617 = vadd.f32 %v3616, 0.00028619796
        %v3618 = vmul.f32 %v3615, %v3617
        %v3619 = vadd.f32 %v3618, 0.0036580483
        %v3620 = vmul.f32 %v3615, %v3619
        %v3621 = vadd.f32 %v3620, 0.05243302
        %v3622 = vmul.f32 %v3615, %v3621
        %v3623 = vadd.f32 %v3622, 0.18741608
        %v3624 = vmul.f32 %v3615, %v3623
        %v3625 = vadd.f32 %v3624, 1.1283791
        %v3626 = vmul.f32 %v1295, %v3625
        %v3627 = vmul.f32 %v3615, 3.8918573e-05
        %v3628 = vadd.f32 %v3627, 0.001143296
        %v3629 = vmul.f32 %v3615, %v3628
        %v3630 = vadd.f32 %v3629, 0.014752088
        %v3631 = vmul.f32 %v3615, %v3630
        %v3632 = vadd.f32 %v3631, 0.112945676
        %v3633 = vmul.f32 %v3615, %v3632
        %v3634 = vadd.f32 %v3633, 0.4994258
        %v3635 = vmul.f32 %v3615, %v3634
        %v3636 = vadd.f32 %v3635, 1.0
        %v3637 = vrcp.pop %v3636
        %v3638 = vmul.f32 %v3636, %v3637
        %v3639 = vsub.f32 1.0, %v3638
        %v3640 = vmul.f32 %v3637, %v3639
        %v3641 = vadd.f32 %v3637, %v3640
        %vm3642 = vweird.f32 %v3636
        %vm3643 = vweird.f32 %v3637
        %vm3644 = vmor %vm3642, %vm3643
        %v3645 = vsel %vm3644, %v3637, %v3641
        %v3646 = vand.u32 2147483647, %v3636
        %vm3647 = vcmp.eq.f32.partialorder %v3646, 8.507059e+37
        %v3648 = vand.u32 %v3636, 2147483648
        %v3649 = vor.u32 1.1754944e-38, %v3648
        %v3650 = vsel %vm3647, %v3649, %v3645
        %v3651 = vmul.f32 %v3626, %v3650
        %v3652 = vmin.f32 %v3651, 1.0
        %v3653 = vmax.f32 %v3652, -1.0
        %v3654 = vmul.f32 %v1296, %v1296
        %v3655 = vmin.f32 16.0, %v3654
        %v3656 = vmul.f32 %v3655, 2.1237322e-06
        %v3657 = vadd.f32 %v3656, 0.00028619796
        %v3658 = vmul.f32 %v3655, %v3657
        %v3659 = vadd.f32 %v3658, 0.0036580483
        %v3660 = vmul.f32 %v3655, %v3659
        %v3661 = vadd.f32 %v3660, 0.05243302
        %v3662 = vmul.f32 %v3655, %v3661
        %v3663 = vadd.f32 %v3662, 0.18741608
        %v3664 = vmul.f32 %v3655, %v3663
        %v3665 = vadd.f32 %v3664, 1.1283791
        %v3666 = vmul.f32 %v1296, %v3665
        %v3667 = vmul.f32 %v3655, 3.8918573e-05
        %v3668 = vadd.f32 %v3667, 0.001143296
        %v3669 = vmul.f32 %v3655, %v3668
        %v3670 = vadd.f32 %v3669, 0.014752088
        %v3671 = vmul.f32 %v3655, %v3670
        %v3672 = vadd.f32 %v3671, 0.112945676
        %v3673 = vmul.f32 %v3655, %v3672
        %v3674 = vadd.f32 %v3673, 0.4994258
        %v3675 = vmul.f32 %v3655, %v3674
        %v3676 = vadd.f32 %v3675, 1.0
        %v3677 = vrcp.pop %v3676
        %v3678 = vmul.f32 %v3676, %v3677
        %v3679 = vsub.f32 1.0, %v3678
        %v3680 = vmul.f32 %v3677, %v3679
        %v3681 = vadd.f32 %v3677, %v3680
        %vm3682 = vweird.f32 %v3676
        %vm3683 = vweird.f32 %v3677
        %vm3684 = vmor %vm3682, %vm3683
        %v3685 = vsel %vm3684, %v3677, %v3681
        %v3686 = vand.u32 2147483647, %v3676
        %vm3687 = vcmp.eq.f32.partialorder %v3686, 8.507059e+37
        %v3688 = vand.u32 %v3676, 2147483648
        %v3689 = vor.u32 1.1754944e-38, %v3688
        %v3690 = vsel %vm3687, %v3689, %v3685
        %v3691 = vmul.f32 %v3666, %v3690
        %v3692 = vmin.f32 %v3691, 1.0
        %v3693 = vmax.f32 %v3692, -1.0
        %v3694 = vmul.f32 %v1297, %v1297
        %v3695 = vmin.f32 16.0, %v3694
        %v3696 = vmul.f32 %v3695, 2.1237322e-06
        %v3697 = vadd.f32 %v3696, 0.00028619796
        %v3698 = vmul.f32 %v3695, %v3697
        %v3699 = vadd.f32 %v3698, 0.0036580483
        %v3700 = vmul.f32 %v3695, %v3699
        %v3701 = vadd.f32 %v3700, 0.05243302
        %v3702 = vmul.f32 %v3695, %v3701
        %v3703 = vadd.f32 %v3702, 0.18741608
        %v3704 = vmul.f32 %v3695, %v3703
        %v3705 = vadd.f32 %v3704, 1.1283791
        %v3706 = vmul.f32 %v1297, %v3705
        %v3707 = vmul.f32 %v3695, 3.8918573e-05
        %v3708 = vadd.f32 %v3707, 0.001143296
        %v3709 = vmul.f32 %v3695, %v3708
        %v3710 = vadd.f32 %v3709, 0.014752088
        %v3711 = vmul.f32 %v3695, %v3710
        %v3712 = vadd.f32 %v3711, 0.112945676
        %v3713 = vmul.f32 %v3695, %v3712
        %v3714 = vadd.f32 %v3713, 0.4994258
        %v3715 = vmul.f32 %v3695, %v3714
        %v3716 = vadd.f32 %v3715, 1.0
        %v3717 = vrcp.pop %v3716
        %v3718 = vmul.f32 %v3716, %v3717
        %v3719 = vsub.f32 1.0, %v3718
        %v3720 = vmul.f32 %v3717, %v3719
        %v3721 = vadd.f32 %v3717, %v3720
        %vm3722 = vweird.f32 %v3716
        %vm3723 = vweird.f32 %v3717
        %vm3724 = vmor %vm3722, %vm3723
        %v3725 = vsel %vm3724, %v3717, %v3721
        %v3726 = vand.u32 2147483647, %v3716
        %vm3727 = vcmp.eq.f32.partialorder %v3726, 8.507059e+37
        %v3728 = vand.u32 %v3716, 2147483648
        %v3729 = vor.u32 1.1754944e-38, %v3728
        %v3730 = vsel %vm3727, %v3729, %v3725
        %v3731 = vmul.f32 %v3706, %v3730
        %v3732 = vmin.f32 %v3731, 1.0
        %v3733 = vmax.f32 %v3732, -1.0
        %v3734 = vmul.f32 %v1298, %v1298
        %v3735 = vmin.f32 16.0, %v3734
        %v3736 = vmul.f32 %v3735, 2.1237322e-06
        %v3737 = vadd.f32 %v3736, 0.00028619796
        %v3738 = vmul.f32 %v3735, %v3737
        %v3739 = vadd.f32 %v3738, 0.0036580483
        %v3740 = vmul.f32 %v3735, %v3739
        %v3741 = vadd.f32 %v3740, 0.05243302
        %v3742 = vmul.f32 %v3735, %v3741
        %v3743 = vadd.f32 %v3742, 0.18741608
        %v3744 = vmul.f32 %v3735, %v3743
        %v3745 = vadd.f32 %v3744, 1.1283791
        %v3746 = vmul.f32 %v1298, %v3745
        %v3747 = vmul.f32 %v3735, 3.8918573e-05
        %v3748 = vadd.f32 %v3747, 0.001143296
        %v3749 = vmul.f32 %v3735, %v3748
        %v3750 = vadd.f32 %v3749, 0.014752088
        %v3751 = vmul.f32 %v3735, %v3750
        %v3752 = vadd.f32 %v3751, 0.112945676
        %v3753 = vmul.f32 %v3735, %v3752
        %v3754 = vadd.f32 %v3753, 0.4994258
        %v3755 = vmul.f32 %v3735, %v3754
        %v3756 = vadd.f32 %v3755, 1.0
        %v3757 = vrcp.pop %v3756
        %v3758 = vmul.f32 %v3756, %v3757
        %v3759 = vsub.f32 1.0, %v3758
        %v3760 = vmul.f32 %v3757, %v3759
        %v3761 = vadd.f32 %v3757, %v3760
        %vm3762 = vweird.f32 %v3756
        %vm3763 = vweird.f32 %v3757
        %vm3764 = vmor %vm3762, %vm3763
        %v3765 = vsel %vm3764, %v3757, %v3761
        %v3766 = vand.u32 2147483647, %v3756
        %vm3767 = vcmp.eq.f32.partialorder %v3766, 8.507059e+37
        %v3768 = vand.u32 %v3756, 2147483648
        %v3769 = vor.u32 1.1754944e-38, %v3768
        %v3770 = vsel %vm3767, %v3769, %v3765
        %v3771 = vmul.f32 %v3746, %v3770
        %v3772 = vmin.f32 %v3771, 1.0
        %v3773 = vmax.f32 %v3772, -1.0
        %v3774 = vmul.f32 %v1299, %v1299
        %v3775 = vmin.f32 16.0, %v3774
        %v3776 = vmul.f32 %v3775, 2.1237322e-06
        %v3777 = vadd.f32 %v3776, 0.00028619796
        %v3778 = vmul.f32 %v3775, %v3777
        %v3779 = vadd.f32 %v3778, 0.0036580483
        %v3780 = vmul.f32 %v3775, %v3779
        %v3781 = vadd.f32 %v3780, 0.05243302
        %v3782 = vmul.f32 %v3775, %v3781
        %v3783 = vadd.f32 %v3782, 0.18741608
        %v3784 = vmul.f32 %v3775, %v3783
        %v3785 = vadd.f32 %v3784, 1.1283791
        %v3786 = vmul.f32 %v1299, %v3785
        %v3787 = vmul.f32 %v3775, 3.8918573e-05
        %v3788 = vadd.f32 %v3787, 0.001143296
        %v3789 = vmul.f32 %v3775, %v3788
        %v3790 = vadd.f32 %v3789, 0.014752088
        %v3791 = vmul.f32 %v3775, %v3790
        %v3792 = vadd.f32 %v3791, 0.112945676
        %v3793 = vmul.f32 %v3775, %v3792
        %v3794 = vadd.f32 %v3793, 0.4994258
        %v3795 = vmul.f32 %v3775, %v3794
        %v3796 = vadd.f32 %v3795, 1.0
        %v3797 = vrcp.pop %v3796
        %v3798 = vmul.f32 %v3796, %v3797
        %v3799 = vsub.f32 1.0, %v3798
        %v3800 = vmul.f32 %v3797, %v3799
        %v3801 = vadd.f32 %v3797, %v3800
        %vm3802 = vweird.f32 %v3796
        %vm3803 = vweird.f32 %v3797
        %vm3804 = vmor %vm3802, %vm3803
        %v3805 = vsel %vm3804, %v3797, %v3801
        %v3806 = vand.u32 2147483647, %v3796
        %vm3807 = vcmp.eq.f32.partialorder %v3806, 8.507059e+37
        %v3808 = vand.u32 %v3796, 2147483648
        %v3809 = vor.u32 1.1754944e-38, %v3808
        %v3810 = vsel %vm3807, %v3809, %v3805
        %v3811 = vmul.f32 %v3786, %v3810
        %v3812 = vmin.f32 %v3811, 1.0
        %v3813 = vmax.f32 %v3812, -1.0
        %v3814 = vmul.f32 %v1300, %v1300
        %v3815 = vmin.f32 16.0, %v3814
        %v3816 = vmul.f32 %v3815, 2.1237322e-06
        %v3817 = vadd.f32 %v3816, 0.00028619796
        %v3818 = vmul.f32 %v3815, %v3817
        %v3819 = vadd.f32 %v3818, 0.0036580483
        %v3820 = vmul.f32 %v3815, %v3819
        %v3821 = vadd.f32 %v3820, 0.05243302
        %v3822 = vmul.f32 %v3815, %v3821
        %v3823 = vadd.f32 %v3822, 0.18741608
        %v3824 = vmul.f32 %v3815, %v3823
        %v3825 = vadd.f32 %v3824, 1.1283791
        %v3826 = vmul.f32 %v1300, %v3825
        %v3827 = vmul.f32 %v3815, 3.8918573e-05
        %v3828 = vadd.f32 %v3827, 0.001143296
        %v3829 = vmul.f32 %v3815, %v3828
        %v3830 = vadd.f32 %v3829, 0.014752088
        %v3831 = vmul.f32 %v3815, %v3830
        %v3832 = vadd.f32 %v3831, 0.112945676
        %v3833 = vmul.f32 %v3815, %v3832
        %v3834 = vadd.f32 %v3833, 0.4994258
        %v3835 = vmul.f32 %v3815, %v3834
        %v3836 = vadd.f32 %v3835, 1.0
        %v3837 = vrcp.pop %v3836
        %v3838 = vmul.f32 %v3836, %v3837
        %v3839 = vsub.f32 1.0, %v3838
        %v3840 = vmul.f32 %v3837, %v3839
        %v3841 = vadd.f32 %v3837, %v3840
        %vm3842 = vweird.f32 %v3836
        %vm3843 = vweird.f32 %v3837
        %vm3844 = vmor %vm3842, %vm3843
        %v3845 = vsel %vm3844, %v3837, %v3841
        %v3846 = vand.u32 2147483647, %v3836
        %vm3847 = vcmp.eq.f32.partialorder %v3846, 8.507059e+37
        %v3848 = vand.u32 %v3836, 2147483648
        %v3849 = vor.u32 1.1754944e-38, %v3848
        %v3850 = vsel %vm3847, %v3849, %v3845
        %v3851 = vmul.f32 %v3826, %v3850
        %v3852 = vmin.f32 %v3851, 1.0
        %v3853 = vmax.f32 %v3852, -1.0
        %v3854 = vmul.f32 %v1301, %v1301
        %v3855 = vmin.f32 16.0, %v3854
        %v3856 = vmul.f32 %v3855, 2.1237322e-06
        %v3857 = vadd.f32 %v3856, 0.00028619796
        %v3858 = vmul.f32 %v3855, %v3857
        %v3859 = vadd.f32 %v3858, 0.0036580483
        %v3860 = vmul.f32 %v3855, %v3859
        %v3861 = vadd.f32 %v3860, 0.05243302
        %v3862 = vmul.f32 %v3855, %v3861
        %v3863 = vadd.f32 %v3862, 0.18741608
        %v3864 = vmul.f32 %v3855, %v3863
        %v3865 = vadd.f32 %v3864, 1.1283791
        %v3866 = vmul.f32 %v1301, %v3865
        %v3867 = vmul.f32 %v3855, 3.8918573e-05
        %v3868 = vadd.f32 %v3867, 0.001143296
        %v3869 = vmul.f32 %v3855, %v3868
        %v3870 = vadd.f32 %v3869, 0.014752088
        %v3871 = vmul.f32 %v3855, %v3870
        %v3872 = vadd.f32 %v3871, 0.112945676
        %v3873 = vmul.f32 %v3855, %v3872
        %v3874 = vadd.f32 %v3873, 0.4994258
        %v3875 = vmul.f32 %v3855, %v3874
        %v3876 = vadd.f32 %v3875, 1.0
        %v3877 = vrcp.pop %v3876
        %v3878 = vmul.f32 %v3876, %v3877
        %v3879 = vsub.f32 1.0, %v3878
        %v3880 = vmul.f32 %v3877, %v3879
        %v3881 = vadd.f32 %v3877, %v3880
        %vm3882 = vweird.f32 %v3876
        %vm3883 = vweird.f32 %v3877
        %vm3884 = vmor %vm3882, %vm3883
        %v3885 = vsel %vm3884, %v3877, %v3881
        %v3886 = vand.u32 2147483647, %v3876
        %vm3887 = vcmp.eq.f32.partialorder %v3886, 8.507059e+37
        %v3888 = vand.u32 %v3876, 2147483648
        %v3889 = vor.u32 1.1754944e-38, %v3888
        %v3890 = vsel %vm3887, %v3889, %v3885
        %v3891 = vmul.f32 %v3866, %v3890
        %v3892 = vmin.f32 %v3891, 1.0
        %v3893 = vmax.f32 %v3892, -1.0
        %v3894 = vmul.f32 %v1302, %v1302
        %v3895 = vmin.f32 16.0, %v3894
        %v3896 = vmul.f32 %v3895, 2.1237322e-06
        %v3897 = vadd.f32 %v3896, 0.00028619796
        %v3898 = vmul.f32 %v3895, %v3897
        %v3899 = vadd.f32 %v3898, 0.0036580483
        %v3900 = vmul.f32 %v3895, %v3899
        %v3901 = vadd.f32 %v3900, 0.05243302
        %v3902 = vmul.f32 %v3895, %v3901
        %v3903 = vadd.f32 %v3902, 0.18741608
        %v3904 = vmul.f32 %v3895, %v3903
        %v3905 = vadd.f32 %v3904, 1.1283791
        %v3906 = vmul.f32 %v1302, %v3905
        %v3907 = vmul.f32 %v3895, 3.8918573e-05
        %v3908 = vadd.f32 %v3907, 0.001143296
        %v3909 = vmul.f32 %v3895, %v3908
        %v3910 = vadd.f32 %v3909, 0.014752088
        %v3911 = vmul.f32 %v3895, %v3910
        %v3912 = vadd.f32 %v3911, 0.112945676
        %v3913 = vmul.f32 %v3895, %v3912
        %v3914 = vadd.f32 %v3913, 0.4994258
        %v3915 = vmul.f32 %v3895, %v3914
        %v3916 = vadd.f32 %v3915, 1.0
        %v3917 = vrcp.pop %v3916
        %v3918 = vmul.f32 %v3916, %v3917
        %v3919 = vsub.f32 1.0, %v3918
        %v3920 = vmul.f32 %v3917, %v3919
        %v3921 = vadd.f32 %v3917, %v3920
        %vm3922 = vweird.f32 %v3916
        %vm3923 = vweird.f32 %v3917
        %vm3924 = vmor %vm3922, %vm3923
        %v3925 = vsel %vm3924, %v3917, %v3921
        %v3926 = vand.u32 2147483647, %v3916
        %vm3927 = vcmp.eq.f32.partialorder %v3926, 8.507059e+37
        %v3928 = vand.u32 %v3916, 2147483648
        %v3929 = vor.u32 1.1754944e-38, %v3928
        %v3930 = vsel %vm3927, %v3929, %v3925
        %v3931 = vmul.f32 %v3906, %v3930
        %v3932 = vmin.f32 %v3931, 1.0
        %v3933 = vmax.f32 %v3932, -1.0
        %v3934 = vmul.f32 %v1303, %v1303
        %v3935 = vmin.f32 16.0, %v3934
        %v3936 = vmul.f32 %v3935, 2.1237322e-06
        %v3937 = vadd.f32 %v3936, 0.00028619796
        %v3938 = vmul.f32 %v3935, %v3937
        %v3939 = vadd.f32 %v3938, 0.0036580483
        %v3940 = vmul.f32 %v3935, %v3939
        %v3941 = vadd.f32 %v3940, 0.05243302
        %v3942 = vmul.f32 %v3935, %v3941
        %v3943 = vadd.f32 %v3942, 0.18741608
        %v3944 = vmul.f32 %v3935, %v3943
        %v3945 = vadd.f32 %v3944, 1.1283791
        %v3946 = vmul.f32 %v1303, %v3945
        %v3947 = vmul.f32 %v3935, 3.8918573e-05
        %v3948 = vadd.f32 %v3947, 0.001143296
        %v3949 = vmul.f32 %v3935, %v3948
        %v3950 = vadd.f32 %v3949, 0.014752088
        %v3951 = vmul.f32 %v3935, %v3950
        %v3952 = vadd.f32 %v3951, 0.112945676
        %v3953 = vmul.f32 %v3935, %v3952
        %v3954 = vadd.f32 %v3953, 0.4994258
        %v3955 = vmul.f32 %v3935, %v3954
        %v3956 = vadd.f32 %v3955, 1.0
        %v3957 = vrcp.pop %v3956
        %v3958 = vmul.f32 %v3956, %v3957
        %v3959 = vsub.f32 1.0, %v3958
        %v3960 = vmul.f32 %v3957, %v3959
        %v3961 = vadd.f32 %v3957, %v3960
        %vm3962 = vweird.f32 %v3956
        %vm3963 = vweird.f32 %v3957
        %vm3964 = vmor %vm3962, %vm3963
        %v3965 = vsel %vm3964, %v3957, %v3961
        %v3966 = vand.u32 2147483647, %v3956
        %vm3967 = vcmp.eq.f32.partialorder %v3966, 8.507059e+37
        %v3968 = vand.u32 %v3956, 2147483648
        %v3969 = vor.u32 1.1754944e-38, %v3968
        %v3970 = vsel %vm3967, %v3969, %v3965
        %v3971 = vmul.f32 %v3946, %v3970
        %v3972 = vmin.f32 %v3971, 1.0
        %v3973 = vmax.f32 %v3972, -1.0
        %v3974 = vmul.f32 %v1304, %v1304
        %v3975 = vmin.f32 16.0, %v3974
        %v3976 = vmul.f32 %v3975, 2.1237322e-06
        %v3977 = vadd.f32 %v3976, 0.00028619796
        %v3978 = vmul.f32 %v3975, %v3977
        %v3979 = vadd.f32 %v3978, 0.0036580483
        %v3980 = vmul.f32 %v3975, %v3979
        %v3981 = vadd.f32 %v3980, 0.05243302
        %v3982 = vmul.f32 %v3975, %v3981
        %v3983 = vadd.f32 %v3982, 0.18741608
        %v3984 = vmul.f32 %v3975, %v3983
        %v3985 = vadd.f32 %v3984, 1.1283791
        %v3986 = vmul.f32 %v1304, %v3985
        %v3987 = vmul.f32 %v3975, 3.8918573e-05
        %v3988 = vadd.f32 %v3987, 0.001143296
        %v3989 = vmul.f32 %v3975, %v3988
        %v3990 = vadd.f32 %v3989, 0.014752088
        %v3991 = vmul.f32 %v3975, %v3990
        %v3992 = vadd.f32 %v3991, 0.112945676
        %v3993 = vmul.f32 %v3975, %v3992
        %v3994 = vadd.f32 %v3993, 0.4994258
        %v3995 = vmul.f32 %v3975, %v3994
        %v3996 = vadd.f32 %v3995, 1.0
        %v3997 = vrcp.pop %v3996
        %v3998 = vmul.f32 %v3996, %v3997
        %v3999 = vsub.f32 1.0, %v3998
        %v4000 = vmul.f32 %v3997, %v3999
        %v4001 = vadd.f32 %v3997, %v4000
        %vm4002 = vweird.f32 %v3996
        %vm4003 = vweird.f32 %v3997
        %vm4004 = vmor %vm4002, %vm4003
        %v4005 = vsel %vm4004, %v3997, %v4001
        %v4006 = vand.u32 2147483647, %v3996
        %vm4007 = vcmp.eq.f32.partialorder %v4006, 8.507059e+37
        %v4008 = vand.u32 %v3996, 2147483648
        %v4009 = vor.u32 1.1754944e-38, %v4008
        %v4010 = vsel %vm4007, %v4009, %v4005
        %v4011 = vmul.f32 %v3986, %v4010
        %v4012 = vmin.f32 %v4011, 1.0
        %v4013 = vmax.f32 %v4012, -1.0
        %v4014 = vmul.f32 %v1305, %v1305
        %v4015 = vmin.f32 16.0, %v4014
        %v4016 = vmul.f32 %v4015, 2.1237322e-06
        %v4017 = vadd.f32 %v4016, 0.00028619796
        %v4018 = vmul.f32 %v4015, %v4017
        %v4019 = vadd.f32 %v4018, 0.0036580483
        %v4020 = vmul.f32 %v4015, %v4019
        %v4021 = vadd.f32 %v4020, 0.05243302
        %v4022 = vmul.f32 %v4015, %v4021
        %v4023 = vadd.f32 %v4022, 0.18741608
        %v4024 = vmul.f32 %v4015, %v4023
        %v4025 = vadd.f32 %v4024, 1.1283791
        %v4026 = vmul.f32 %v1305, %v4025
        %v4027 = vmul.f32 %v4015, 3.8918573e-05
        %v4028 = vadd.f32 %v4027, 0.001143296
        %v4029 = vmul.f32 %v4015, %v4028
        %v4030 = vadd.f32 %v4029, 0.014752088
        %v4031 = vmul.f32 %v4015, %v4030
        %v4032 = vadd.f32 %v4031, 0.112945676
        %v4033 = vmul.f32 %v4015, %v4032
        %v4034 = vadd.f32 %v4033, 0.4994258
        %v4035 = vmul.f32 %v4015, %v4034
        %v4036 = vadd.f32 %v4035, 1.0
        %v4037 = vrcp.pop %v4036
        %v4038 = vmul.f32 %v4036, %v4037
        %v4039 = vsub.f32 1.0, %v4038
        %v4040 = vmul.f32 %v4037, %v4039
        %v4041 = vadd.f32 %v4037, %v4040
        %vm4042 = vweird.f32 %v4036
        %vm4043 = vweird.f32 %v4037
        %vm4044 = vmor %vm4042, %vm4043
        %v4045 = vsel %vm4044, %v4037, %v4041
        %v4046 = vand.u32 2147483647, %v4036
        %vm4047 = vcmp.eq.f32.partialorder %v4046, 8.507059e+37
        %v4048 = vand.u32 %v4036, 2147483648
        %v4049 = vor.u32 1.1754944e-38, %v4048
        %v4050 = vsel %vm4047, %v4049, %v4045
        %v4051 = vmul.f32 %v4026, %v4050
        %v4052 = vmin.f32 %v4051, 1.0
        %v4053 = vmax.f32 %v4052, -1.0
        %v4054 = vmul.f32 %v1306, %v1306
        %v4055 = vmin.f32 16.0, %v4054
        %v4056 = vmul.f32 %v4055, 2.1237322e-06
        %v4057 = vadd.f32 %v4056, 0.00028619796
        %v4058 = vmul.f32 %v4055, %v4057
        %v4059 = vadd.f32 %v4058, 0.0036580483
        %v4060 = vmul.f32 %v4055, %v4059
        %v4061 = vadd.f32 %v4060, 0.05243302
        %v4062 = vmul.f32 %v4055, %v4061
        %v4063 = vadd.f32 %v4062, 0.18741608
        %v4064 = vmul.f32 %v4055, %v4063
        %v4065 = vadd.f32 %v4064, 1.1283791
        %v4066 = vmul.f32 %v1306, %v4065
        %v4067 = vmul.f32 %v4055, 3.8918573e-05
        %v4068 = vadd.f32 %v4067, 0.001143296
        %v4069 = vmul.f32 %v4055, %v4068
        %v4070 = vadd.f32 %v4069, 0.014752088
        %v4071 = vmul.f32 %v4055, %v4070
        %v4072 = vadd.f32 %v4071, 0.112945676
        %v4073 = vmul.f32 %v4055, %v4072
        %v4074 = vadd.f32 %v4073, 0.4994258
        %v4075 = vmul.f32 %v4055, %v4074
        %v4076 = vadd.f32 %v4075, 1.0
        %v4077 = vrcp.pop %v4076
        %v4078 = vmul.f32 %v4076, %v4077
        %v4079 = vsub.f32 1.0, %v4078
        %v4080 = vmul.f32 %v4077, %v4079
        %v4081 = vadd.f32 %v4077, %v4080
        %vm4082 = vweird.f32 %v4076
        %vm4083 = vweird.f32 %v4077
        %vm4084 = vmor %vm4082, %vm4083
        %v4085 = vsel %vm4084, %v4077, %v4081
        %v4086 = vand.u32 2147483647, %v4076
        %vm4087 = vcmp.eq.f32.partialorder %v4086, 8.507059e+37
        %v4088 = vand.u32 %v4076, 2147483648
        %v4089 = vor.u32 1.1754944e-38, %v4088
        %v4090 = vsel %vm4087, %v4089, %v4085
        %v4091 = vmul.f32 %v4066, %v4090
        %v4092 = vmin.f32 %v4091, 1.0
        %v4093 = vmax.f32 %v4092, -1.0
        %v4094 = vmul.f32 %v1307, %v1307
        %v4095 = vmin.f32 16.0, %v4094
        %v4096 = vmul.f32 %v4095, 2.1237322e-06
        %v4097 = vadd.f32 %v4096, 0.00028619796
        %v4098 = vmul.f32 %v4095, %v4097
        %v4099 = vadd.f32 %v4098, 0.0036580483
        %v4100 = vmul.f32 %v4095, %v4099
        %v4101 = vadd.f32 %v4100, 0.05243302
        %v4102 = vmul.f32 %v4095, %v4101
        %v4103 = vadd.f32 %v4102, 0.18741608
        %v4104 = vmul.f32 %v4095, %v4103
        %v4105 = vadd.f32 %v4104, 1.1283791
        %v4106 = vmul.f32 %v1307, %v4105
        %v4107 = vmul.f32 %v4095, 3.8918573e-05
        %v4108 = vadd.f32 %v4107, 0.001143296
        %v4109 = vmul.f32 %v4095, %v4108
        %v4110 = vadd.f32 %v4109, 0.014752088
        %v4111 = vmul.f32 %v4095, %v4110
        %v4112 = vadd.f32 %v4111, 0.112945676
        %v4113 = vmul.f32 %v4095, %v4112
        %v4114 = vadd.f32 %v4113, 0.4994258
        %v4115 = vmul.f32 %v4095, %v4114
        %v4116 = vadd.f32 %v4115, 1.0
        %v4117 = vrcp.pop %v4116
        %v4118 = vmul.f32 %v4116, %v4117
        %v4119 = vsub.f32 1.0, %v4118
        %v4120 = vmul.f32 %v4117, %v4119
        %v4121 = vadd.f32 %v4117, %v4120
        %vm4122 = vweird.f32 %v4116
        %vm4123 = vweird.f32 %v4117
        %vm4124 = vmor %vm4122, %vm4123
        %v4125 = vsel %vm4124, %v4117, %v4121
        %v4126 = vand.u32 2147483647, %v4116
        %vm4127 = vcmp.eq.f32.partialorder %v4126, 8.507059e+37
        %v4128 = vand.u32 %v4116, 2147483648
        %v4129 = vor.u32 1.1754944e-38, %v4128
        %v4130 = vsel %vm4127, %v4129, %v4125
        %v4131 = vmul.f32 %v4106, %v4130
        %v4132 = vmin.f32 %v4131, 1.0
        %v4133 = vmax.f32 %v4132, -1.0
        %v4134 = vmul.f32 %v1308, %v1308
        %v4135 = vmin.f32 16.0, %v4134
        %v4136 = vmul.f32 %v4135, 2.1237322e-06
        %v4137 = vadd.f32 %v4136, 0.00028619796
        %v4138 = vmul.f32 %v4135, %v4137
        %v4139 = vadd.f32 %v4138, 0.0036580483
        %v4140 = vmul.f32 %v4135, %v4139
        %v4141 = vadd.f32 %v4140, 0.05243302
        %v4142 = vmul.f32 %v4135, %v4141
        %v4143 = vadd.f32 %v4142, 0.18741608
        %v4144 = vmul.f32 %v4135, %v4143
        %v4145 = vadd.f32 %v4144, 1.1283791
        %v4146 = vmul.f32 %v1308, %v4145
        %v4147 = vmul.f32 %v4135, 3.8918573e-05
        %v4148 = vadd.f32 %v4147, 0.001143296
        %v4149 = vmul.f32 %v4135, %v4148
        %v4150 = vadd.f32 %v4149, 0.014752088
        %v4151 = vmul.f32 %v4135, %v4150
        %v4152 = vadd.f32 %v4151, 0.112945676
        %v4153 = vmul.f32 %v4135, %v4152
        %v4154 = vadd.f32 %v4153, 0.4994258
        %v4155 = vmul.f32 %v4135, %v4154
        %v4156 = vadd.f32 %v4155, 1.0
        %v4157 = vrcp.pop %v4156
        %v4158 = vmul.f32 %v4156, %v4157
        %v4159 = vsub.f32 1.0, %v4158
        %v4160 = vmul.f32 %v4157, %v4159
        %v4161 = vadd.f32 %v4157, %v4160
        %vm4162 = vweird.f32 %v4156
        %vm4163 = vweird.f32 %v4157
        %vm4164 = vmor %vm4162, %vm4163
        %v4165 = vsel %vm4164, %v4157, %v4161
        %v4166 = vand.u32 2147483647, %v4156
        %vm4167 = vcmp.eq.f32.partialorder %v4166, 8.507059e+37
        %v4168 = vand.u32 %v4156, 2147483648
        %v4169 = vor.u32 1.1754944e-38, %v4168
        %v4170 = vsel %vm4167, %v4169, %v4165
        %v4171 = vmul.f32 %v4146, %v4170
        %v4172 = vmin.f32 %v4171, 1.0
        %v4173 = vmax.f32 %v4172, -1.0
        %v4174 = vmul.f32 %v1309, %v1309
        %v4175 = vmin.f32 16.0, %v4174
        %v4176 = vmul.f32 %v4175, 2.1237322e-06
        %v4177 = vadd.f32 %v4176, 0.00028619796
        %v4178 = vmul.f32 %v4175, %v4177
        %v4179 = vadd.f32 %v4178, 0.0036580483
        %v4180 = vmul.f32 %v4175, %v4179
        %v4181 = vadd.f32 %v4180, 0.05243302
        %v4182 = vmul.f32 %v4175, %v4181
        %v4183 = vadd.f32 %v4182, 0.18741608
        %v4184 = vmul.f32 %v4175, %v4183
        %v4185 = vadd.f32 %v4184, 1.1283791
        %v4186 = vmul.f32 %v1309, %v4185
        %v4187 = vmul.f32 %v4175, 3.8918573e-05
        %v4188 = vadd.f32 %v4187, 0.001143296
        %v4189 = vmul.f32 %v4175, %v4188
        %v4190 = vadd.f32 %v4189, 0.014752088
        %v4191 = vmul.f32 %v4175, %v4190
        %v4192 = vadd.f32 %v4191, 0.112945676
        %v4193 = vmul.f32 %v4175, %v4192
        %v4194 = vadd.f32 %v4193, 0.4994258
        %v4195 = vmul.f32 %v4175, %v4194
        %v4196 = vadd.f32 %v4195, 1.0
        %v4197 = vrcp.pop %v4196
        %v4198 = vmul.f32 %v4196, %v4197
        %v4199 = vsub.f32 1.0, %v4198
        %v4200 = vmul.f32 %v4197, %v4199
        %v4201 = vadd.f32 %v4197, %v4200
        %vm4202 = vweird.f32 %v4196
        %vm4203 = vweird.f32 %v4197
        %vm4204 = vmor %vm4202, %vm4203
        %v4205 = vsel %vm4204, %v4197, %v4201
        %v4206 = vand.u32 2147483647, %v4196
        %vm4207 = vcmp.eq.f32.partialorder %v4206, 8.507059e+37
        %v4208 = vand.u32 %v4196, 2147483648
        %v4209 = vor.u32 1.1754944e-38, %v4208
        %v4210 = vsel %vm4207, %v4209, %v4205
        %v4211 = vmul.f32 %v4186, %v4210
        %v4212 = vmin.f32 %v4211, 1.0
        %v4213 = vmax.f32 %v4212, -1.0
        %v4214 = vmul.f32 %v1310, %v1310
        %v4215 = vmin.f32 16.0, %v4214
        %v4216 = vmul.f32 %v4215, 2.1237322e-06
        %v4217 = vadd.f32 %v4216, 0.00028619796
        %v4218 = vmul.f32 %v4215, %v4217
        %v4219 = vadd.f32 %v4218, 0.0036580483
        %v4220 = vmul.f32 %v4215, %v4219
        %v4221 = vadd.f32 %v4220, 0.05243302
        %v4222 = vmul.f32 %v4215, %v4221
        %v4223 = vadd.f32 %v4222, 0.18741608
        %v4224 = vmul.f32 %v4215, %v4223
        %v4225 = vadd.f32 %v4224, 1.1283791
        %v4226 = vmul.f32 %v1310, %v4225
        %v4227 = vmul.f32 %v4215, 3.8918573e-05
        %v4228 = vadd.f32 %v4227, 0.001143296
        %v4229 = vmul.f32 %v4215, %v4228
        %v4230 = vadd.f32 %v4229, 0.014752088
        %v4231 = vmul.f32 %v4215, %v4230
        %v4232 = vadd.f32 %v4231, 0.112945676
        %v4233 = vmul.f32 %v4215, %v4232
        %v4234 = vadd.f32 %v4233, 0.4994258
        %v4235 = vmul.f32 %v4215, %v4234
        %v4236 = vadd.f32 %v4235, 1.0
        %v4237 = vrcp.pop %v4236
        %v4238 = vmul.f32 %v4236, %v4237
        %v4239 = vsub.f32 1.0, %v4238
        %v4240 = vmul.f32 %v4237, %v4239
        %v4241 = vadd.f32 %v4237, %v4240
        %vm4242 = vweird.f32 %v4236
        %vm4243 = vweird.f32 %v4237
        %vm4244 = vmor %vm4242, %vm4243
        %v4245 = vsel %vm4244, %v4237, %v4241
        %v4246 = vand.u32 2147483647, %v4236
        %vm4247 = vcmp.eq.f32.partialorder %v4246, 8.507059e+37
        %v4248 = vand.u32 %v4236, 2147483648
        %v4249 = vor.u32 1.1754944e-38, %v4248
        %v4250 = vsel %vm4247, %v4249, %v4245
        %v4251 = vmul.f32 %v4226, %v4250
        %v4252 = vmin.f32 %v4251, 1.0
        %v4253 = vmax.f32 %v4252, -1.0
        %v4254 = vmul.f32 %v1311, %v1311
        %v4255 = vmin.f32 16.0, %v4254
        %v4256 = vmul.f32 %v4255, 2.1237322e-06
        %v4257 = vadd.f32 %v4256, 0.00028619796
        %v4258 = vmul.f32 %v4255, %v4257
        %v4259 = vadd.f32 %v4258, 0.0036580483
        %v4260 = vmul.f32 %v4255, %v4259
        %v4261 = vadd.f32 %v4260, 0.05243302
        %v4262 = vmul.f32 %v4255, %v4261
        %v4263 = vadd.f32 %v4262, 0.18741608
        %v4264 = vmul.f32 %v4255, %v4263
        %v4265 = vadd.f32 %v4264, 1.1283791
        %v4266 = vmul.f32 %v1311, %v4265
        %v4267 = vmul.f32 %v4255, 3.8918573e-05
        %v4268 = vadd.f32 %v4267, 0.001143296
        %v4269 = vmul.f32 %v4255, %v4268
        %v4270 = vadd.f32 %v4269, 0.014752088
        %v4271 = vmul.f32 %v4255, %v4270
        %v4272 = vadd.f32 %v4271, 0.112945676
        %v4273 = vmul.f32 %v4255, %v4272
        %v4274 = vadd.f32 %v4273, 0.4994258
        %v4275 = vmul.f32 %v4255, %v4274
        %v4276 = vadd.f32 %v4275, 1.0
        %v4277 = vrcp.pop %v4276
        %v4278 = vmul.f32 %v4276, %v4277
        %v4279 = vsub.f32 1.0, %v4278
        %v4280 = vmul.f32 %v4277, %v4279
        %v4281 = vadd.f32 %v4277, %v4280
        %vm4282 = vweird.f32 %v4276
        %vm4283 = vweird.f32 %v4277
        %vm4284 = vmor %vm4282, %vm4283
        %v4285 = vsel %vm4284, %v4277, %v4281
        %v4286 = vand.u32 2147483647, %v4276
        %vm4287 = vcmp.eq.f32.partialorder %v4286, 8.507059e+37
        %v4288 = vand.u32 %v4276, 2147483648
        %v4289 = vor.u32 1.1754944e-38, %v4288
        %v4290 = vsel %vm4287, %v4289, %v4285
        %v4291 = vmul.f32 %v4266, %v4290
        %v4292 = vmin.f32 %v4291, 1.0
        %v4293 = vmax.f32 %v4292, -1.0
        %v4294 = vmul.f32 %v1312, %v1312
        %v4295 = vmin.f32 16.0, %v4294
        %v4296 = vmul.f32 %v4295, 2.1237322e-06
        %v4297 = vadd.f32 %v4296, 0.00028619796
        %v4298 = vmul.f32 %v4295, %v4297
        %v4299 = vadd.f32 %v4298, 0.0036580483
        %v4300 = vmul.f32 %v4295, %v4299
        %v4301 = vadd.f32 %v4300, 0.05243302
        %v4302 = vmul.f32 %v4295, %v4301
        %v4303 = vadd.f32 %v4302, 0.18741608
        %v4304 = vmul.f32 %v4295, %v4303
        %v4305 = vadd.f32 %v4304, 1.1283791
        %v4306 = vmul.f32 %v1312, %v4305
        %v4307 = vmul.f32 %v4295, 3.8918573e-05
        %v4308 = vadd.f32 %v4307, 0.001143296
        %v4309 = vmul.f32 %v4295, %v4308
        %v4310 = vadd.f32 %v4309, 0.014752088
        %v4311 = vmul.f32 %v4295, %v4310
        %v4312 = vadd.f32 %v4311, 0.112945676
        %v4313 = vmul.f32 %v4295, %v4312
        %v4314 = vadd.f32 %v4313, 0.4994258
        %v4315 = vmul.f32 %v4295, %v4314
        %v4316 = vadd.f32 %v4315, 1.0
        %v4317 = vrcp.pop %v4316
        %v4318 = vmul.f32 %v4316, %v4317
        %v4319 = vsub.f32 1.0, %v4318
        %v4320 = vmul.f32 %v4317, %v4319
        %v4321 = vadd.f32 %v4317, %v4320
        %vm4322 = vweird.f32 %v4316
        %vm4323 = vweird.f32 %v4317
        %vm4324 = vmor %vm4322, %vm4323
        %v4325 = vsel %vm4324, %v4317, %v4321
        %v4326 = vand.u32 2147483647, %v4316
        %vm4327 = vcmp.eq.f32.partialorder %v4326, 8.507059e+37
        %v4328 = vand.u32 %v4316, 2147483648
        %v4329 = vor.u32 1.1754944e-38, %v4328
        %v4330 = vsel %vm4327, %v4329, %v4325
        %v4331 = vmul.f32 %v4306, %v4330
        %v4332 = vmin.f32 %v4331, 1.0
        %v4333 = vmax.f32 %v4332, -1.0
        %v4334 = vmul.f32 %v1313, %v1313
        %v4335 = vmin.f32 16.0, %v4334
        %v4336 = vmul.f32 %v4335, 2.1237322e-06
        %v4337 = vadd.f32 %v4336, 0.00028619796
        %v4338 = vmul.f32 %v4335, %v4337
        %v4339 = vadd.f32 %v4338, 0.0036580483
        %v4340 = vmul.f32 %v4335, %v4339
        %v4341 = vadd.f32 %v4340, 0.05243302
        %v4342 = vmul.f32 %v4335, %v4341
        %v4343 = vadd.f32 %v4342, 0.18741608
        %v4344 = vmul.f32 %v4335, %v4343
        %v4345 = vadd.f32 %v4344, 1.1283791
        %v4346 = vmul.f32 %v1313, %v4345
        %v4347 = vmul.f32 %v4335, 3.8918573e-05
        %v4348 = vadd.f32 %v4347, 0.001143296
        %v4349 = vmul.f32 %v4335, %v4348
        %v4350 = vadd.f32 %v4349, 0.014752088
        %v4351 = vmul.f32 %v4335, %v4350
        %v4352 = vadd.f32 %v4351, 0.112945676
        %v4353 = vmul.f32 %v4335, %v4352
        %v4354 = vadd.f32 %v4353, 0.4994258
        %v4355 = vmul.f32 %v4335, %v4354
        %v4356 = vadd.f32 %v4355, 1.0
        %v4357 = vrcp.pop %v4356
        %v4358 = vmul.f32 %v4356, %v4357
        %v4359 = vsub.f32 1.0, %v4358
        %v4360 = vmul.f32 %v4357, %v4359
        %v4361 = vadd.f32 %v4357, %v4360
        %vm4362 = vweird.f32 %v4356
        %vm4363 = vweird.f32 %v4357
        %vm4364 = vmor %vm4362, %vm4363
        %v4365 = vsel %vm4364, %v4357, %v4361
        %v4366 = vand.u32 2147483647, %v4356
        %vm4367 = vcmp.eq.f32.partialorder %v4366, 8.507059e+37
        %v4368 = vand.u32 %v4356, 2147483648
        %v4369 = vor.u32 1.1754944e-38, %v4368
        %v4370 = vsel %vm4367, %v4369, %v4365
        %v4371 = vmul.f32 %v4346, %v4370
        %v4372 = vmin.f32 %v4371, 1.0
        %v4373 = vmax.f32 %v4372, -1.0
        %v4374 = vmul.f32 %v1314, %v1314
        %v4375 = vmin.f32 16.0, %v4374
        %v4376 = vmul.f32 %v4375, 2.1237322e-06
        %v4377 = vadd.f32 %v4376, 0.00028619796
        %v4378 = vmul.f32 %v4375, %v4377
        %v4379 = vadd.f32 %v4378, 0.0036580483
        %v4380 = vmul.f32 %v4375, %v4379
        %v4381 = vadd.f32 %v4380, 0.05243302
        %v4382 = vmul.f32 %v4375, %v4381
        %v4383 = vadd.f32 %v4382, 0.18741608
        %v4384 = vmul.f32 %v4375, %v4383
        %v4385 = vadd.f32 %v4384, 1.1283791
        %v4386 = vmul.f32 %v1314, %v4385
        %v4387 = vmul.f32 %v4375, 3.8918573e-05
        %v4388 = vadd.f32 %v4387, 0.001143296
        %v4389 = vmul.f32 %v4375, %v4388
        %v4390 = vadd.f32 %v4389, 0.014752088
        %v4391 = vmul.f32 %v4375, %v4390
        %v4392 = vadd.f32 %v4391, 0.112945676
        %v4393 = vmul.f32 %v4375, %v4392
        %v4394 = vadd.f32 %v4393, 0.4994258
        %v4395 = vmul.f32 %v4375, %v4394
        %v4396 = vadd.f32 %v4395, 1.0
        %v4397 = vrcp.pop %v4396
        %v4398 = vmul.f32 %v4396, %v4397
        %v4399 = vsub.f32 1.0, %v4398
        %v4400 = vmul.f32 %v4397, %v4399
        %v4401 = vadd.f32 %v4397, %v4400
        %vm4402 = vweird.f32 %v4396
        %vm4403 = vweird.f32 %v4397
        %vm4404 = vmor %vm4402, %vm4403
        %v4405 = vsel %vm4404, %v4397, %v4401
        %v4406 = vand.u32 2147483647, %v4396
        %vm4407 = vcmp.eq.f32.partialorder %v4406, 8.507059e+37
        %v4408 = vand.u32 %v4396, 2147483648
        %v4409 = vor.u32 1.1754944e-38, %v4408
        %v4410 = vsel %vm4407, %v4409, %v4405
        %v4411 = vmul.f32 %v4386, %v4410
        %v4412 = vmin.f32 %v4411, 1.0
        %v4413 = vmax.f32 %v4412, -1.0
        %v4414 = vmul.f32 %v1315, %v1315
        %v4415 = vmin.f32 16.0, %v4414
        %v4416 = vmul.f32 %v4415, 2.1237322e-06
        %v4417 = vadd.f32 %v4416, 0.00028619796
        %v4418 = vmul.f32 %v4415, %v4417
        %v4419 = vadd.f32 %v4418, 0.0036580483
        %v4420 = vmul.f32 %v4415, %v4419
        %v4421 = vadd.f32 %v4420, 0.05243302
        %v4422 = vmul.f32 %v4415, %v4421
        %v4423 = vadd.f32 %v4422, 0.18741608
        %v4424 = vmul.f32 %v4415, %v4423
        %v4425 = vadd.f32 %v4424, 1.1283791
        %v4426 = vmul.f32 %v1315, %v4425
        %v4427 = vmul.f32 %v4415, 3.8918573e-05
        %v4428 = vadd.f32 %v4427, 0.001143296
        %v4429 = vmul.f32 %v4415, %v4428
        %v4430 = vadd.f32 %v4429, 0.014752088
        %v4431 = vmul.f32 %v4415, %v4430
        %v4432 = vadd.f32 %v4431, 0.112945676
        %v4433 = vmul.f32 %v4415, %v4432
        %v4434 = vadd.f32 %v4433, 0.4994258
        %v4435 = vmul.f32 %v4415, %v4434
        %v4436 = vadd.f32 %v4435, 1.0
        %v4437 = vrcp.pop %v4436
        %v4438 = vmul.f32 %v4436, %v4437
        %v4439 = vsub.f32 1.0, %v4438
        %v4440 = vmul.f32 %v4437, %v4439
        %v4441 = vadd.f32 %v4437, %v4440
        %vm4442 = vweird.f32 %v4436
        %vm4443 = vweird.f32 %v4437
        %vm4444 = vmor %vm4442, %vm4443
        %v4445 = vsel %vm4444, %v4437, %v4441
        %v4446 = vand.u32 2147483647, %v4436
        %vm4447 = vcmp.eq.f32.partialorder %v4446, 8.507059e+37
        %v4448 = vand.u32 %v4436, 2147483648
        %v4449 = vor.u32 1.1754944e-38, %v4448
        %v4450 = vsel %vm4447, %v4449, %v4445
        %v4451 = vmul.f32 %v4426, %v4450
        %v4452 = vmin.f32 %v4451, 1.0
        %v4453 = vmax.f32 %v4452, -1.0
        %v4454 = vmul.f32 %v1316, %v1316
        %v4455 = vmin.f32 16.0, %v4454
        %v4456 = vmul.f32 %v4455, 2.1237322e-06
        %v4457 = vadd.f32 %v4456, 0.00028619796
        %v4458 = vmul.f32 %v4455, %v4457
        %v4459 = vadd.f32 %v4458, 0.0036580483
        %v4460 = vmul.f32 %v4455, %v4459
        %v4461 = vadd.f32 %v4460, 0.05243302
        %v4462 = vmul.f32 %v4455, %v4461
        %v4463 = vadd.f32 %v4462, 0.18741608
        %v4464 = vmul.f32 %v4455, %v4463
        %v4465 = vadd.f32 %v4464, 1.1283791
        %v4466 = vmul.f32 %v1316, %v4465
        %v4467 = vmul.f32 %v4455, 3.8918573e-05
        %v4468 = vadd.f32 %v4467, 0.001143296
        %v4469 = vmul.f32 %v4455, %v4468
        %v4470 = vadd.f32 %v4469, 0.014752088
        %v4471 = vmul.f32 %v4455, %v4470
        %v4472 = vadd.f32 %v4471, 0.112945676
        %v4473 = vmul.f32 %v4455, %v4472
        %v4474 = vadd.f32 %v4473, 0.4994258
        %v4475 = vmul.f32 %v4455, %v4474
        %v4476 = vadd.f32 %v4475, 1.0
        %v4477 = vrcp.pop %v4476
        %v4478 = vmul.f32 %v4476, %v4477
        %v4479 = vsub.f32 1.0, %v4478
        %v4480 = vmul.f32 %v4477, %v4479
        %v4481 = vadd.f32 %v4477, %v4480
        %vm4482 = vweird.f32 %v4476
        %vm4483 = vweird.f32 %v4477
        %vm4484 = vmor %vm4482, %vm4483
        %v4485 = vsel %vm4484, %v4477, %v4481
        %v4486 = vand.u32 2147483647, %v4476
        %vm4487 = vcmp.eq.f32.partialorder %v4486, 8.507059e+37
        %v4488 = vand.u32 %v4476, 2147483648
        %v4489 = vor.u32 1.1754944e-38, %v4488
        %v4490 = vsel %vm4487, %v4489, %v4485
        %v4491 = vmul.f32 %v4466, %v4490
        %v4492 = vmin.f32 %v4491, 1.0
        %v4493 = vmax.f32 %v4492, -1.0
        %v4494 = vmul.f32 %v1317, %v1317
        %v4495 = vmin.f32 16.0, %v4494
        %v4496 = vmul.f32 %v4495, 2.1237322e-06
        %v4497 = vadd.f32 %v4496, 0.00028619796
        %v4498 = vmul.f32 %v4495, %v4497
        %v4499 = vadd.f32 %v4498, 0.0036580483
        %v4500 = vmul.f32 %v4495, %v4499
        %v4501 = vadd.f32 %v4500, 0.05243302
        %v4502 = vmul.f32 %v4495, %v4501
        %v4503 = vadd.f32 %v4502, 0.18741608
        %v4504 = vmul.f32 %v4495, %v4503
        %v4505 = vadd.f32 %v4504, 1.1283791
        %v4506 = vmul.f32 %v1317, %v4505
        %v4507 = vmul.f32 %v4495, 3.8918573e-05
        %v4508 = vadd.f32 %v4507, 0.001143296
        %v4509 = vmul.f32 %v4495, %v4508
        %v4510 = vadd.f32 %v4509, 0.014752088
        %v4511 = vmul.f32 %v4495, %v4510
        %v4512 = vadd.f32 %v4511, 0.112945676
        %v4513 = vmul.f32 %v4495, %v4512
        %v4514 = vadd.f32 %v4513, 0.4994258
        %v4515 = vmul.f32 %v4495, %v4514
        %v4516 = vadd.f32 %v4515, 1.0
        %v4517 = vrcp.pop %v4516
        %v4518 = vmul.f32 %v4516, %v4517
        %v4519 = vsub.f32 1.0, %v4518
        %v4520 = vmul.f32 %v4517, %v4519
        %v4521 = vadd.f32 %v4517, %v4520
        %vm4522 = vweird.f32 %v4516
        %vm4523 = vweird.f32 %v4517
        %vm4524 = vmor %vm4522, %vm4523
        %v4525 = vsel %vm4524, %v4517, %v4521
        %v4526 = vand.u32 2147483647, %v4516
        %vm4527 = vcmp.eq.f32.partialorder %v4526, 8.507059e+37
        %v4528 = vand.u32 %v4516, 2147483648
        %v4529 = vor.u32 1.1754944e-38, %v4528
        %v4530 = vsel %vm4527, %v4529, %v4525
        %v4531 = vmul.f32 %v4506, %v4530
        %v4532 = vmin.f32 %v4531, 1.0
        %v4533 = vmax.f32 %v4532, -1.0
        %v4534 = vmul.f32 %v1318, %v1318
        %v4535 = vmin.f32 16.0, %v4534
        %v4536 = vmul.f32 %v4535, 2.1237322e-06
        %v4537 = vadd.f32 %v4536, 0.00028619796
        %v4538 = vmul.f32 %v4535, %v4537
        %v4539 = vadd.f32 %v4538, 0.0036580483
        %v4540 = vmul.f32 %v4535, %v4539
        %v4541 = vadd.f32 %v4540, 0.05243302
        %v4542 = vmul.f32 %v4535, %v4541
        %v4543 = vadd.f32 %v4542, 0.18741608
        %v4544 = vmul.f32 %v4535, %v4543
        %v4545 = vadd.f32 %v4544, 1.1283791
        %v4546 = vmul.f32 %v1318, %v4545
        %v4547 = vmul.f32 %v4535, 3.8918573e-05
        %v4548 = vadd.f32 %v4547, 0.001143296
        %v4549 = vmul.f32 %v4535, %v4548
        %v4550 = vadd.f32 %v4549, 0.014752088
        %v4551 = vmul.f32 %v4535, %v4550
        %v4552 = vadd.f32 %v4551, 0.112945676
        %v4553 = vmul.f32 %v4535, %v4552
        %v4554 = vadd.f32 %v4553, 0.4994258
        %v4555 = vmul.f32 %v4535, %v4554
        %v4556 = vadd.f32 %v4555, 1.0
        %v4557 = vrcp.pop %v4556
        %v4558 = vmul.f32 %v4556, %v4557
        %v4559 = vsub.f32 1.0, %v4558
        %v4560 = vmul.f32 %v4557, %v4559
        %v4561 = vadd.f32 %v4557, %v4560
        %vm4562 = vweird.f32 %v4556
        %vm4563 = vweird.f32 %v4557
        %vm4564 = vmor %vm4562, %vm4563
        %v4565 = vsel %vm4564, %v4557, %v4561
        %v4566 = vand.u32 2147483647, %v4556
        %vm4567 = vcmp.eq.f32.partialorder %v4566, 8.507059e+37
        %v4568 = vand.u32 %v4556, 2147483648
        %v4569 = vor.u32 1.1754944e-38, %v4568
        %v4570 = vsel %vm4567, %v4569, %v4565
        %v4571 = vmul.f32 %v4546, %v4570
        %v4572 = vmin.f32 %v4571, 1.0
        %v4573 = vmax.f32 %v4572, -1.0
        %v4574 = vmul.f32 %v1319, %v1319
        %v4575 = vmin.f32 16.0, %v4574
        %v4576 = vmul.f32 %v4575, 2.1237322e-06
        %v4577 = vadd.f32 %v4576, 0.00028619796
        %v4578 = vmul.f32 %v4575, %v4577
        %v4579 = vadd.f32 %v4578, 0.0036580483
        %v4580 = vmul.f32 %v4575, %v4579
        %v4581 = vadd.f32 %v4580, 0.05243302
        %v4582 = vmul.f32 %v4575, %v4581
        %v4583 = vadd.f32 %v4582, 0.18741608
        %v4584 = vmul.f32 %v4575, %v4583
        %v4585 = vadd.f32 %v4584, 1.1283791
        %v4586 = vmul.f32 %v1319, %v4585
        %v4587 = vmul.f32 %v4575, 3.8918573e-05
        %v4588 = vadd.f32 %v4587, 0.001143296
        %v4589 = vmul.f32 %v4575, %v4588
        %v4590 = vadd.f32 %v4589, 0.014752088
        %v4591 = vmul.f32 %v4575, %v4590
        %v4592 = vadd.f32 %v4591, 0.112945676
        %v4593 = vmul.f32 %v4575, %v4592
        %v4594 = vadd.f32 %v4593, 0.4994258
        %v4595 = vmul.f32 %v4575, %v4594
        %v4596 = vadd.f32 %v4595, 1.0
        %v4597 = vrcp.pop %v4596
        %v4598 = vmul.f32 %v4596, %v4597
        %v4599 = vsub.f32 1.0, %v4598
        %v4600 = vmul.f32 %v4597, %v4599
        %v4601 = vadd.f32 %v4597, %v4600
        %vm4602 = vweird.f32 %v4596
        %vm4603 = vweird.f32 %v4597
        %vm4604 = vmor %vm4602, %vm4603
        %v4605 = vsel %vm4604, %v4597, %v4601
        %v4606 = vand.u32 2147483647, %v4596
        %vm4607 = vcmp.eq.f32.partialorder %v4606, 8.507059e+37
        %v4608 = vand.u32 %v4596, 2147483648
        %v4609 = vor.u32 1.1754944e-38, %v4608
        %v4610 = vsel %vm4607, %v4609, %v4605
        %v4611 = vmul.f32 %v4586, %v4610
        %v4612 = vmin.f32 %v4611, 1.0
        %v4613 = vmax.f32 %v4612, -1.0
        %v4614 = vmul.f32 %v1320, %v1320
        %v4615 = vmin.f32 16.0, %v4614
        %v4616 = vmul.f32 %v4615, 2.1237322e-06
        %v4617 = vadd.f32 %v4616, 0.00028619796
        %v4618 = vmul.f32 %v4615, %v4617
        %v4619 = vadd.f32 %v4618, 0.0036580483
        %v4620 = vmul.f32 %v4615, %v4619
        %v4621 = vadd.f32 %v4620, 0.05243302
        %v4622 = vmul.f32 %v4615, %v4621
        %v4623 = vadd.f32 %v4622, 0.18741608
        %v4624 = vmul.f32 %v4615, %v4623
        %v4625 = vadd.f32 %v4624, 1.1283791
        %v4626 = vmul.f32 %v1320, %v4625
        %v4627 = vmul.f32 %v4615, 3.8918573e-05
        %v4628 = vadd.f32 %v4627, 0.001143296
        %v4629 = vmul.f32 %v4615, %v4628
        %v4630 = vadd.f32 %v4629, 0.014752088
        %v4631 = vmul.f32 %v4615, %v4630
        %v4632 = vadd.f32 %v4631, 0.112945676
        %v4633 = vmul.f32 %v4615, %v4632
        %v4634 = vadd.f32 %v4633, 0.4994258
        %v4635 = vmul.f32 %v4615, %v4634
        %v4636 = vadd.f32 %v4635, 1.0
        %v4637 = vrcp.pop %v4636
        %v4638 = vmul.f32 %v4636, %v4637
        %v4639 = vsub.f32 1.0, %v4638
        %v4640 = vmul.f32 %v4637, %v4639
        %v4641 = vadd.f32 %v4637, %v4640
        %vm4642 = vweird.f32 %v4636
        %vm4643 = vweird.f32 %v4637
        %vm4644 = vmor %vm4642, %vm4643
        %v4645 = vsel %vm4644, %v4637, %v4641
        %v4646 = vand.u32 2147483647, %v4636
        %vm4647 = vcmp.eq.f32.partialorder %v4646, 8.507059e+37
        %v4648 = vand.u32 %v4636, 2147483648
        %v4649 = vor.u32 1.1754944e-38, %v4648
        %v4650 = vsel %vm4647, %v4649, %v4645
        %v4651 = vmul.f32 %v4626, %v4650
        %v4652 = vmin.f32 %v4651, 1.0
        %v4653 = vmax.f32 %v4652, -1.0
        %v4654 = vmul.f32 %v1321, %v1321
        %v4655 = vmin.f32 16.0, %v4654
        %v4656 = vmul.f32 %v4655, 2.1237322e-06
        %v4657 = vadd.f32 %v4656, 0.00028619796
        %v4658 = vmul.f32 %v4655, %v4657
        %v4659 = vadd.f32 %v4658, 0.0036580483
        %v4660 = vmul.f32 %v4655, %v4659
        %v4661 = vadd.f32 %v4660, 0.05243302
        %v4662 = vmul.f32 %v4655, %v4661
        %v4663 = vadd.f32 %v4662, 0.18741608
        %v4664 = vmul.f32 %v4655, %v4663
        %v4665 = vadd.f32 %v4664, 1.1283791
        %v4666 = vmul.f32 %v1321, %v4665
        %v4667 = vmul.f32 %v4655, 3.8918573e-05
        %v4668 = vadd.f32 %v4667, 0.001143296
        %v4669 = vmul.f32 %v4655, %v4668
        %v4670 = vadd.f32 %v4669, 0.014752088
        %v4671 = vmul.f32 %v4655, %v4670
        %v4672 = vadd.f32 %v4671, 0.112945676
        %v4673 = vmul.f32 %v4655, %v4672
        %v4674 = vadd.f32 %v4673, 0.4994258
        %v4675 = vmul.f32 %v4655, %v4674
        %v4676 = vadd.f32 %v4675, 1.0
        %v4677 = vrcp.pop %v4676
        %v4678 = vmul.f32 %v4676, %v4677
        %v4679 = vsub.f32 1.0, %v4678
        %v4680 = vmul.f32 %v4677, %v4679
        %v4681 = vadd.f32 %v4677, %v4680
        %vm4682 = vweird.f32 %v4676
        %vm4683 = vweird.f32 %v4677
        %vm4684 = vmor %vm4682, %vm4683
        %v4685 = vsel %vm4684, %v4677, %v4681
        %v4686 = vand.u32 2147483647, %v4676
        %vm4687 = vcmp.eq.f32.partialorder %v4686, 8.507059e+37
        %v4688 = vand.u32 %v4676, 2147483648
        %v4689 = vor.u32 1.1754944e-38, %v4688
        %v4690 = vsel %vm4687, %v4689, %v4685
        %v4691 = vmul.f32 %v4666, %v4690
        %v4692 = vmin.f32 %v4691, 1.0
        %v4693 = vmax.f32 %v4692, -1.0
        %v4694 = vmul.f32 %v1322, %v1322
        %v4695 = vmin.f32 16.0, %v4694
        %v4696 = vmul.f32 %v4695, 2.1237322e-06
        %v4697 = vadd.f32 %v4696, 0.00028619796
        %v4698 = vmul.f32 %v4695, %v4697
        %v4699 = vadd.f32 %v4698, 0.0036580483
        %v4700 = vmul.f32 %v4695, %v4699
        %v4701 = vadd.f32 %v4700, 0.05243302
        %v4702 = vmul.f32 %v4695, %v4701
        %v4703 = vadd.f32 %v4702, 0.18741608
        %v4704 = vmul.f32 %v4695, %v4703
        %v4705 = vadd.f32 %v4704, 1.1283791
        %v4706 = vmul.f32 %v1322, %v4705
        %v4707 = vmul.f32 %v4695, 3.8918573e-05
        %v4708 = vadd.f32 %v4707, 0.001143296
        %v4709 = vmul.f32 %v4695, %v4708
        %v4710 = vadd.f32 %v4709, 0.014752088
        %v4711 = vmul.f32 %v4695, %v4710
        %v4712 = vadd.f32 %v4711, 0.112945676
        %v4713 = vmul.f32 %v4695, %v4712
        %v4714 = vadd.f32 %v4713, 0.4994258
        %v4715 = vmul.f32 %v4695, %v4714
        %v4716 = vadd.f32 %v4715, 1.0
        %v4717 = vrcp.pop %v4716
        %v4718 = vmul.f32 %v4716, %v4717
        %v4719 = vsub.f32 1.0, %v4718
        %v4720 = vmul.f32 %v4717, %v4719
        %v4721 = vadd.f32 %v4717, %v4720
        %vm4722 = vweird.f32 %v4716
        %vm4723 = vweird.f32 %v4717
        %vm4724 = vmor %vm4722, %vm4723
        %v4725 = vsel %vm4724, %v4717, %v4721
        %v4726 = vand.u32 2147483647, %v4716
        %vm4727 = vcmp.eq.f32.partialorder %v4726, 8.507059e+37
        %v4728 = vand.u32 %v4716, 2147483648
        %v4729 = vor.u32 1.1754944e-38, %v4728
        %v4730 = vsel %vm4727, %v4729, %v4725
        %v4731 = vmul.f32 %v4706, %v4730
        %v4732 = vmin.f32 %v4731, 1.0
        %v4733 = vmax.f32 %v4732, -1.0
        %v4734 = vmul.f32 %v1323, %v1323
        %v4735 = vmin.f32 16.0, %v4734
        %v4736 = vmul.f32 %v4735, 2.1237322e-06
        %v4737 = vadd.f32 %v4736, 0.00028619796
        %v4738 = vmul.f32 %v4735, %v4737
        %v4739 = vadd.f32 %v4738, 0.0036580483
        %v4740 = vmul.f32 %v4735, %v4739
        %v4741 = vadd.f32 %v4740, 0.05243302
        %v4742 = vmul.f32 %v4735, %v4741
        %v4743 = vadd.f32 %v4742, 0.18741608
        %v4744 = vmul.f32 %v4735, %v4743
        %v4745 = vadd.f32 %v4744, 1.1283791
        %v4746 = vmul.f32 %v1323, %v4745
        %v4747 = vmul.f32 %v4735, 3.8918573e-05
        %v4748 = vadd.f32 %v4747, 0.001143296
        %v4749 = vmul.f32 %v4735, %v4748
        %v4750 = vadd.f32 %v4749, 0.014752088
        %v4751 = vmul.f32 %v4735, %v4750
        %v4752 = vadd.f32 %v4751, 0.112945676
        %v4753 = vmul.f32 %v4735, %v4752
        %v4754 = vadd.f32 %v4753, 0.4994258
        %v4755 = vmul.f32 %v4735, %v4754
        %v4756 = vadd.f32 %v4755, 1.0
        %v4757 = vrcp.pop %v4756
        %v4758 = vmul.f32 %v4756, %v4757
        %v4759 = vsub.f32 1.0, %v4758
        %v4760 = vmul.f32 %v4757, %v4759
        %v4761 = vadd.f32 %v4757, %v4760
        %vm4762 = vweird.f32 %v4756
        %vm4763 = vweird.f32 %v4757
        %vm4764 = vmor %vm4762, %vm4763
        %v4765 = vsel %vm4764, %v4757, %v4761
        %v4766 = vand.u32 2147483647, %v4756
        %vm4767 = vcmp.eq.f32.partialorder %v4766, 8.507059e+37
        %v4768 = vand.u32 %v4756, 2147483648
        %v4769 = vor.u32 1.1754944e-38, %v4768
        %v4770 = vsel %vm4767, %v4769, %v4765
        %v4771 = vmul.f32 %v4746, %v4770
        %v4772 = vmin.f32 %v4771, 1.0
        %v4773 = vmax.f32 %v4772, -1.0
        %v4774 = vmul.f32 %v1324, %v1324
        %v4775 = vmin.f32 16.0, %v4774
        %v4776 = vmul.f32 %v4775, 2.1237322e-06
        %v4777 = vadd.f32 %v4776, 0.00028619796
        %v4778 = vmul.f32 %v4775, %v4777
        %v4779 = vadd.f32 %v4778, 0.0036580483
        %v4780 = vmul.f32 %v4775, %v4779
        %v4781 = vadd.f32 %v4780, 0.05243302
        %v4782 = vmul.f32 %v4775, %v4781
        %v4783 = vadd.f32 %v4782, 0.18741608
        %v4784 = vmul.f32 %v4775, %v4783
        %v4785 = vadd.f32 %v4784, 1.1283791
        %v4786 = vmul.f32 %v1324, %v4785
        %v4787 = vmul.f32 %v4775, 3.8918573e-05
        %v4788 = vadd.f32 %v4787, 0.001143296
        %v4789 = vmul.f32 %v4775, %v4788
        %v4790 = vadd.f32 %v4789, 0.014752088
        %v4791 = vmul.f32 %v4775, %v4790
        %v4792 = vadd.f32 %v4791, 0.112945676
        %v4793 = vmul.f32 %v4775, %v4792
        %v4794 = vadd.f32 %v4793, 0.4994258
        %v4795 = vmul.f32 %v4775, %v4794
        %v4796 = vadd.f32 %v4795, 1.0
        %v4797 = vrcp.pop %v4796
        %v4798 = vmul.f32 %v4796, %v4797
        %v4799 = vsub.f32 1.0, %v4798
        %v4800 = vmul.f32 %v4797, %v4799
        %v4801 = vadd.f32 %v4797, %v4800
        %vm4802 = vweird.f32 %v4796
        %vm4803 = vweird.f32 %v4797
        %vm4804 = vmor %vm4802, %vm4803
        %v4805 = vsel %vm4804, %v4797, %v4801
        %v4806 = vand.u32 2147483647, %v4796
        %vm4807 = vcmp.eq.f32.partialorder %v4806, 8.507059e+37
        %v4808 = vand.u32 %v4796, 2147483648
        %v4809 = vor.u32 1.1754944e-38, %v4808
        %v4810 = vsel %vm4807, %v4809, %v4805
        %v4811 = vmul.f32 %v4786, %v4810
        %v4812 = vmin.f32 %v4811, 1.0
        %v4813 = vmax.f32 %v4812, -1.0
        %v4814 = vmul.f32 %v1325, %v1325
        %v4815 = vmin.f32 16.0, %v4814
        %v4816 = vmul.f32 %v4815, 2.1237322e-06
        %v4817 = vadd.f32 %v4816, 0.00028619796
        %v4818 = vmul.f32 %v4815, %v4817
        %v4819 = vadd.f32 %v4818, 0.0036580483
        %v4820 = vmul.f32 %v4815, %v4819
        %v4821 = vadd.f32 %v4820, 0.05243302
        %v4822 = vmul.f32 %v4815, %v4821
        %v4823 = vadd.f32 %v4822, 0.18741608
        %v4824 = vmul.f32 %v4815, %v4823
        %v4825 = vadd.f32 %v4824, 1.1283791
        %v4826 = vmul.f32 %v1325, %v4825
        %v4827 = vmul.f32 %v4815, 3.8918573e-05
        %v4828 = vadd.f32 %v4827, 0.001143296
        %v4829 = vmul.f32 %v4815, %v4828
        %v4830 = vadd.f32 %v4829, 0.014752088
        %v4831 = vmul.f32 %v4815, %v4830
        %v4832 = vadd.f32 %v4831, 0.112945676
        %v4833 = vmul.f32 %v4815, %v4832
        %v4834 = vadd.f32 %v4833, 0.4994258
        %v4835 = vmul.f32 %v4815, %v4834
        %v4836 = vadd.f32 %v4835, 1.0
        %v4837 = vrcp.pop %v4836
        %v4838 = vmul.f32 %v4836, %v4837
        %v4839 = vsub.f32 1.0, %v4838
        %v4840 = vmul.f32 %v4837, %v4839
        %v4841 = vadd.f32 %v4837, %v4840
        %vm4842 = vweird.f32 %v4836
        %vm4843 = vweird.f32 %v4837
        %vm4844 = vmor %vm4842, %vm4843
        %v4845 = vsel %vm4844, %v4837, %v4841
        %v4846 = vand.u32 2147483647, %v4836
        %vm4847 = vcmp.eq.f32.partialorder %v4846, 8.507059e+37
        %v4848 = vand.u32 %v4836, 2147483648
        %v4849 = vor.u32 1.1754944e-38, %v4848
        %v4850 = vsel %vm4847, %v4849, %v4845
        %v4851 = vmul.f32 %v4826, %v4850
        %v4852 = vmin.f32 %v4851, 1.0
        %v4853 = vmax.f32 %v4852, -1.0
        %v4854 = vmul.f32 %v1326, %v1326
        %v4855 = vmin.f32 16.0, %v4854
        %v4856 = vmul.f32 %v4855, 2.1237322e-06
        %v4857 = vadd.f32 %v4856, 0.00028619796
        %v4858 = vmul.f32 %v4855, %v4857
        %v4859 = vadd.f32 %v4858, 0.0036580483
        %v4860 = vmul.f32 %v4855, %v4859
        %v4861 = vadd.f32 %v4860, 0.05243302
        %v4862 = vmul.f32 %v4855, %v4861
        %v4863 = vadd.f32 %v4862, 0.18741608
        %v4864 = vmul.f32 %v4855, %v4863
        %v4865 = vadd.f32 %v4864, 1.1283791
        %v4866 = vmul.f32 %v1326, %v4865
        %v4867 = vmul.f32 %v4855, 3.8918573e-05
        %v4868 = vadd.f32 %v4867, 0.001143296
        %v4869 = vmul.f32 %v4855, %v4868
        %v4870 = vadd.f32 %v4869, 0.014752088
        %v4871 = vmul.f32 %v4855, %v4870
        %v4872 = vadd.f32 %v4871, 0.112945676
        %v4873 = vmul.f32 %v4855, %v4872
        %v4874 = vadd.f32 %v4873, 0.4994258
        %v4875 = vmul.f32 %v4855, %v4874
        %v4876 = vadd.f32 %v4875, 1.0
        %v4877 = vrcp.pop %v4876
        %v4878 = vmul.f32 %v4876, %v4877
        %v4879 = vsub.f32 1.0, %v4878
        %v4880 = vmul.f32 %v4877, %v4879
        %v4881 = vadd.f32 %v4877, %v4880
        %vm4882 = vweird.f32 %v4876
        %vm4883 = vweird.f32 %v4877
        %vm4884 = vmor %vm4882, %vm4883
        %v4885 = vsel %vm4884, %v4877, %v4881
        %v4886 = vand.u32 2147483647, %v4876
        %vm4887 = vcmp.eq.f32.partialorder %v4886, 8.507059e+37
        %v4888 = vand.u32 %v4876, 2147483648
        %v4889 = vor.u32 1.1754944e-38, %v4888
        %v4890 = vsel %vm4887, %v4889, %v4885
        %v4891 = vmul.f32 %v4866, %v4890
        %v4892 = vmin.f32 %v4891, 1.0
        %v4893 = vmax.f32 %v4892, -1.0
        %v4894 = vmul.f32 %v1327, %v1327
        %v4895 = vmin.f32 16.0, %v4894
        %v4896 = vmul.f32 %v4895, 2.1237322e-06
        %v4897 = vadd.f32 %v4896, 0.00028619796
        %v4898 = vmul.f32 %v4895, %v4897
        %v4899 = vadd.f32 %v4898, 0.0036580483
        %v4900 = vmul.f32 %v4895, %v4899
        %v4901 = vadd.f32 %v4900, 0.05243302
        %v4902 = vmul.f32 %v4895, %v4901
        %v4903 = vadd.f32 %v4902, 0.18741608
        %v4904 = vmul.f32 %v4895, %v4903
        %v4905 = vadd.f32 %v4904, 1.1283791
        %v4906 = vmul.f32 %v1327, %v4905
        %v4907 = vmul.f32 %v4895, 3.8918573e-05
        %v4908 = vadd.f32 %v4907, 0.001143296
        %v4909 = vmul.f32 %v4895, %v4908
        %v4910 = vadd.f32 %v4909, 0.014752088
        %v4911 = vmul.f32 %v4895, %v4910
        %v4912 = vadd.f32 %v4911, 0.112945676
        %v4913 = vmul.f32 %v4895, %v4912
        %v4914 = vadd.f32 %v4913, 0.4994258
        %v4915 = vmul.f32 %v4895, %v4914
        %v4916 = vadd.f32 %v4915, 1.0
        %v4917 = vrcp.pop %v4916
        %v4918 = vmul.f32 %v4916, %v4917
        %v4919 = vsub.f32 1.0, %v4918
        %v4920 = vmul.f32 %v4917, %v4919
        %v4921 = vadd.f32 %v4917, %v4920
        %vm4922 = vweird.f32 %v4916
        %vm4923 = vweird.f32 %v4917
        %vm4924 = vmor %vm4922, %vm4923
        %v4925 = vsel %vm4924, %v4917, %v4921
        %v4926 = vand.u32 2147483647, %v4916
        %vm4927 = vcmp.eq.f32.partialorder %v4926, 8.507059e+37
        %v4928 = vand.u32 %v4916, 2147483648
        %v4929 = vor.u32 1.1754944e-38, %v4928
        %v4930 = vsel %vm4927, %v4929, %v4925
        %v4931 = vmul.f32 %v4906, %v4930
        %v4932 = vmin.f32 %v4931, 1.0
        %v4933 = vmax.f32 %v4932, -1.0
        %v4934 = vmul.f32 %v1328, %v1328
        %v4935 = vmin.f32 16.0, %v4934
        %v4936 = vmul.f32 %v4935, 2.1237322e-06
        %v4937 = vadd.f32 %v4936, 0.00028619796
        %v4938 = vmul.f32 %v4935, %v4937
        %v4939 = vadd.f32 %v4938, 0.0036580483
        %v4940 = vmul.f32 %v4935, %v4939
        %v4941 = vadd.f32 %v4940, 0.05243302
        %v4942 = vmul.f32 %v4935, %v4941
        %v4943 = vadd.f32 %v4942, 0.18741608
        %v4944 = vmul.f32 %v4935, %v4943
        %v4945 = vadd.f32 %v4944, 1.1283791
        %v4946 = vmul.f32 %v1328, %v4945
        %v4947 = vmul.f32 %v4935, 3.8918573e-05
        %v4948 = vadd.f32 %v4947, 0.001143296
        %v4949 = vmul.f32 %v4935, %v4948
        %v4950 = vadd.f32 %v4949, 0.014752088
        %v4951 = vmul.f32 %v4935, %v4950
        %v4952 = vadd.f32 %v4951, 0.112945676
        %v4953 = vmul.f32 %v4935, %v4952
        %v4954 = vadd.f32 %v4953, 0.4994258
        %v4955 = vmul.f32 %v4935, %v4954
        %v4956 = vadd.f32 %v4955, 1.0
        %v4957 = vrcp.pop %v4956
        %v4958 = vmul.f32 %v4956, %v4957
        %v4959 = vsub.f32 1.0, %v4958
        %v4960 = vmul.f32 %v4957, %v4959
        %v4961 = vadd.f32 %v4957, %v4960
        %vm4962 = vweird.f32 %v4956
        %vm4963 = vweird.f32 %v4957
        %vm4964 = vmor %vm4962, %vm4963
        %v4965 = vsel %vm4964, %v4957, %v4961
        %v4966 = vand.u32 2147483647, %v4956
        %vm4967 = vcmp.eq.f32.partialorder %v4966, 8.507059e+37
        %v4968 = vand.u32 %v4956, 2147483648
        %v4969 = vor.u32 1.1754944e-38, %v4968
        %v4970 = vsel %vm4967, %v4969, %v4965
        %v4971 = vmul.f32 %v4946, %v4970
        %v4972 = vmin.f32 %v4971, 1.0
        %v4973 = vmax.f32 %v4972, -1.0
        %v4974 = vmul.f32 %v1329, %v1329
        %v4975 = vmin.f32 16.0, %v4974
        %v4976 = vmul.f32 %v4975, 2.1237322e-06
        %v4977 = vadd.f32 %v4976, 0.00028619796
        %v4978 = vmul.f32 %v4975, %v4977
        %v4979 = vadd.f32 %v4978, 0.0036580483
        %v4980 = vmul.f32 %v4975, %v4979
        %v4981 = vadd.f32 %v4980, 0.05243302
        %v4982 = vmul.f32 %v4975, %v4981
        %v4983 = vadd.f32 %v4982, 0.18741608
        %v4984 = vmul.f32 %v4975, %v4983
        %v4985 = vadd.f32 %v4984, 1.1283791
        %v4986 = vmul.f32 %v1329, %v4985
        %v4987 = vmul.f32 %v4975, 3.8918573e-05
        %v4988 = vadd.f32 %v4987, 0.001143296
        %v4989 = vmul.f32 %v4975, %v4988
        %v4990 = vadd.f32 %v4989, 0.014752088
        %v4991 = vmul.f32 %v4975, %v4990
        %v4992 = vadd.f32 %v4991, 0.112945676
        %v4993 = vmul.f32 %v4975, %v4992
        %v4994 = vadd.f32 %v4993, 0.4994258
        %v4995 = vmul.f32 %v4975, %v4994
        %v4996 = vadd.f32 %v4995, 1.0
        %v4997 = vrcp.pop %v4996
        %v4998 = vmul.f32 %v4996, %v4997
        %v4999 = vsub.f32 1.0, %v4998
        %v5000 = vmul.f32 %v4997, %v4999
        %v5001 = vadd.f32 %v4997, %v5000
        %vm5002 = vweird.f32 %v4996
        %vm5003 = vweird.f32 %v4997
        %vm5004 = vmor %vm5002, %vm5003
        %v5005 = vsel %vm5004, %v4997, %v5001
        %v5006 = vand.u32 2147483647, %v4996
        %vm5007 = vcmp.eq.f32.partialorder %v5006, 8.507059e+37
        %v5008 = vand.u32 %v4996, 2147483648
        %v5009 = vor.u32 1.1754944e-38, %v5008
        %v5010 = vsel %vm5007, %v5009, %v5005
        %v5011 = vmul.f32 %v4986, %v5010
        %v5012 = vmin.f32 %v5011, 1.0
        %v5013 = vmax.f32 %v5012, -1.0
        %v5014 = vmul.f32 %v1330, %v1330
        %v5015 = vmin.f32 16.0, %v5014
        %v5016 = vmul.f32 %v5015, 2.1237322e-06
        %v5017 = vadd.f32 %v5016, 0.00028619796
        %v5018 = vmul.f32 %v5015, %v5017
        %v5019 = vadd.f32 %v5018, 0.0036580483
        %v5020 = vmul.f32 %v5015, %v5019
        %v5021 = vadd.f32 %v5020, 0.05243302
        %v5022 = vmul.f32 %v5015, %v5021
        %v5023 = vadd.f32 %v5022, 0.18741608
        %v5024 = vmul.f32 %v5015, %v5023
        %v5025 = vadd.f32 %v5024, 1.1283791
        %v5026 = vmul.f32 %v1330, %v5025
        %v5027 = vmul.f32 %v5015, 3.8918573e-05
        %v5028 = vadd.f32 %v5027, 0.001143296
        %v5029 = vmul.f32 %v5015, %v5028
        %v5030 = vadd.f32 %v5029, 0.014752088
        %v5031 = vmul.f32 %v5015, %v5030
        %v5032 = vadd.f32 %v5031, 0.112945676
        %v5033 = vmul.f32 %v5015, %v5032
        %v5034 = vadd.f32 %v5033, 0.4994258
        %v5035 = vmul.f32 %v5015, %v5034
        %v5036 = vadd.f32 %v5035, 1.0
        %v5037 = vrcp.pop %v5036
        %v5038 = vmul.f32 %v5036, %v5037
        %v5039 = vsub.f32 1.0, %v5038
        %v5040 = vmul.f32 %v5037, %v5039
        %v5041 = vadd.f32 %v5037, %v5040
        %vm5042 = vweird.f32 %v5036
        %vm5043 = vweird.f32 %v5037
        %vm5044 = vmor %vm5042, %vm5043
        %v5045 = vsel %vm5044, %v5037, %v5041
        %v5046 = vand.u32 2147483647, %v5036
        %vm5047 = vcmp.eq.f32.partialorder %v5046, 8.507059e+37
        %v5048 = vand.u32 %v5036, 2147483648
        %v5049 = vor.u32 1.1754944e-38, %v5048
        %v5050 = vsel %vm5047, %v5049, %v5045
        %v5051 = vmul.f32 %v5026, %v5050
        %v5052 = vmin.f32 %v5051, 1.0
        %v5053 = vmax.f32 %v5052, -1.0
        %v5054 = vmul.f32 %v1331, %v1331
        %v5055 = vmin.f32 16.0, %v5054
        %v5056 = vmul.f32 %v5055, 2.1237322e-06
        %v5057 = vadd.f32 %v5056, 0.00028619796
        %v5058 = vmul.f32 %v5055, %v5057
        %v5059 = vadd.f32 %v5058, 0.0036580483
        %v5060 = vmul.f32 %v5055, %v5059
        %v5061 = vadd.f32 %v5060, 0.05243302
        %v5062 = vmul.f32 %v5055, %v5061
        %v5063 = vadd.f32 %v5062, 0.18741608
        %v5064 = vmul.f32 %v5055, %v5063
        %v5065 = vadd.f32 %v5064, 1.1283791
        %v5066 = vmul.f32 %v1331, %v5065
        %v5067 = vmul.f32 %v5055, 3.8918573e-05
        %v5068 = vadd.f32 %v5067, 0.001143296
        %v5069 = vmul.f32 %v5055, %v5068
        %v5070 = vadd.f32 %v5069, 0.014752088
        %v5071 = vmul.f32 %v5055, %v5070
        %v5072 = vadd.f32 %v5071, 0.112945676
        %v5073 = vmul.f32 %v5055, %v5072
        %v5074 = vadd.f32 %v5073, 0.4994258
        %v5075 = vmul.f32 %v5055, %v5074
        %v5076 = vadd.f32 %v5075, 1.0
        %v5077 = vrcp.pop %v5076
        %v5078 = vmul.f32 %v5076, %v5077
        %v5079 = vsub.f32 1.0, %v5078
        %v5080 = vmul.f32 %v5077, %v5079
        %v5081 = vadd.f32 %v5077, %v5080
        %vm5082 = vweird.f32 %v5076
        %vm5083 = vweird.f32 %v5077
        %vm5084 = vmor %vm5082, %vm5083
        %v5085 = vsel %vm5084, %v5077, %v5081
        %v5086 = vand.u32 2147483647, %v5076
        %vm5087 = vcmp.eq.f32.partialorder %v5086, 8.507059e+37
        %v5088 = vand.u32 %v5076, 2147483648
        %v5089 = vor.u32 1.1754944e-38, %v5088
        %v5090 = vsel %vm5087, %v5089, %v5085
        %v5091 = vmul.f32 %v5066, %v5090
        %v5092 = vmin.f32 %v5091, 1.0
        %v5093 = vmax.f32 %v5092, -1.0
        %v5094 = vmul.f32 %v1332, %v1332
        %v5095 = vmin.f32 16.0, %v5094
        %v5096 = vmul.f32 %v5095, 2.1237322e-06
        %v5097 = vadd.f32 %v5096, 0.00028619796
        %v5098 = vmul.f32 %v5095, %v5097
        %v5099 = vadd.f32 %v5098, 0.0036580483
        %v5100 = vmul.f32 %v5095, %v5099
        %v5101 = vadd.f32 %v5100, 0.05243302
        %v5102 = vmul.f32 %v5095, %v5101
        %v5103 = vadd.f32 %v5102, 0.18741608
        %v5104 = vmul.f32 %v5095, %v5103
        %v5105 = vadd.f32 %v5104, 1.1283791
        %v5106 = vmul.f32 %v1332, %v5105
        %v5107 = vmul.f32 %v5095, 3.8918573e-05
        %v5108 = vadd.f32 %v5107, 0.001143296
        %v5109 = vmul.f32 %v5095, %v5108
        %v5110 = vadd.f32 %v5109, 0.014752088
        %v5111 = vmul.f32 %v5095, %v5110
        %v5112 = vadd.f32 %v5111, 0.112945676
        %v5113 = vmul.f32 %v5095, %v5112
        %v5114 = vadd.f32 %v5113, 0.4994258
        %v5115 = vmul.f32 %v5095, %v5114
        %v5116 = vadd.f32 %v5115, 1.0
        %v5117 = vrcp.pop %v5116
        %v5118 = vmul.f32 %v5116, %v5117
        %v5119 = vsub.f32 1.0, %v5118
        %v5120 = vmul.f32 %v5117, %v5119
        %v5121 = vadd.f32 %v5117, %v5120
        %vm5122 = vweird.f32 %v5116
        %vm5123 = vweird.f32 %v5117
        %vm5124 = vmor %vm5122, %vm5123
        %v5125 = vsel %vm5124, %v5117, %v5121
        %v5126 = vand.u32 2147483647, %v5116
        %vm5127 = vcmp.eq.f32.partialorder %v5126, 8.507059e+37
        %v5128 = vand.u32 %v5116, 2147483648
        %v5129 = vor.u32 1.1754944e-38, %v5128
        %v5130 = vsel %vm5127, %v5129, %v5125
        %v5131 = vmul.f32 %v5106, %v5130
        %v5132 = vmin.f32 %v5131, 1.0
        %v5133 = vmax.f32 %v5132, -1.0
        %v5134 = vmul.f32 %v1333, %v1333
        %v5135 = vmin.f32 16.0, %v5134
        %v5136 = vmul.f32 %v5135, 2.1237322e-06
        %v5137 = vadd.f32 %v5136, 0.00028619796
        %v5138 = vmul.f32 %v5135, %v5137
        %v5139 = vadd.f32 %v5138, 0.0036580483
        %v5140 = vmul.f32 %v5135, %v5139
        %v5141 = vadd.f32 %v5140, 0.05243302
        %v5142 = vmul.f32 %v5135, %v5141
        %v5143 = vadd.f32 %v5142, 0.18741608
        %v5144 = vmul.f32 %v5135, %v5143
        %v5145 = vadd.f32 %v5144, 1.1283791
        %v5146 = vmul.f32 %v1333, %v5145
        %v5147 = vmul.f32 %v5135, 3.8918573e-05
        %v5148 = vadd.f32 %v5147, 0.001143296
        %v5149 = vmul.f32 %v5135, %v5148
        %v5150 = vadd.f32 %v5149, 0.014752088
        %v5151 = vmul.f32 %v5135, %v5150
        %v5152 = vadd.f32 %v5151, 0.112945676
        %v5153 = vmul.f32 %v5135, %v5152
        %v5154 = vadd.f32 %v5153, 0.4994258
        %v5155 = vmul.f32 %v5135, %v5154
        %v5156 = vadd.f32 %v5155, 1.0
        %v5157 = vrcp.pop %v5156
        %v5158 = vmul.f32 %v5156, %v5157
        %v5159 = vsub.f32 1.0, %v5158
        %v5160 = vmul.f32 %v5157, %v5159
        %v5161 = vadd.f32 %v5157, %v5160
        %vm5162 = vweird.f32 %v5156
        %vm5163 = vweird.f32 %v5157
        %vm5164 = vmor %vm5162, %vm5163
        %v5165 = vsel %vm5164, %v5157, %v5161
        %v5166 = vand.u32 2147483647, %v5156
        %vm5167 = vcmp.eq.f32.partialorder %v5166, 8.507059e+37
        %v5168 = vand.u32 %v5156, 2147483648
        %v5169 = vor.u32 1.1754944e-38, %v5168
        %v5170 = vsel %vm5167, %v5169, %v5165
        %v5171 = vmul.f32 %v5146, %v5170
        %v5172 = vmin.f32 %v5171, 1.0
        %v5173 = vmax.f32 %v5172, -1.0
        %v5174 = vadd.f32 %v1373, 1.0
        %v5175 = vadd.f32 %v1413, 1.0
        %v5176 = vadd.f32 %v1453, 1.0
        %v5177 = vadd.f32 %v1493, 1.0
        %v5178 = vadd.f32 %v1533, 1.0
        %v5179 = vadd.f32 %v1573, 1.0
        %v5180 = vadd.f32 %v1613, 1.0
        %v5181 = vadd.f32 %v1653, 1.0
        %v5182 = vadd.f32 %v1693, 1.0
        %v5183 = vadd.f32 %v1733, 1.0
        %v5184 = vadd.f32 %v1773, 1.0
        %v5185 = vadd.f32 %v1813, 1.0
        %v5186 = vadd.f32 %v1853, 1.0
        %v5187 = vadd.f32 %v1893, 1.0
        %v5188 = vadd.f32 %v1933, 1.0
        %v5189 = vadd.f32 %v1973, 1.0
        %v5190 = vadd.f32 %v2013, 1.0
        %v5191 = vadd.f32 %v2053, 1.0
        %v5192 = vadd.f32 %v2093, 1.0
        %v5193 = vadd.f32 %v2133, 1.0
        %v5194 = vadd.f32 %v2173, 1.0
        %v5195 = vadd.f32 %v2213, 1.0
        %v5196 = vadd.f32 %v2253, 1.0
        %v5197 = vadd.f32 %v2293, 1.0
        %v5198 = vadd.f32 %v2333, 1.0
        %v5199 = vadd.f32 %v2373, 1.0
        %v5200 = vadd.f32 %v2413, 1.0
        %v5201 = vadd.f32 %v2453, 1.0
        %v5202 = vadd.f32 %v2493, 1.0
        %v5203 = vadd.f32 %v2533, 1.0
        %v5204 = vadd.f32 %v2573, 1.0
        %v5205 = vadd.f32 %v2613, 1.0
        %v5206 = vadd.f32 %v2653, 1.0
        %v5207 = vadd.f32 %v2693, 1.0
        %v5208 = vadd.f32 %v2733, 1.0
        %v5209 = vadd.f32 %v2773, 1.0
        %v5210 = vadd.f32 %v2813, 1.0
        %v5211 = vadd.f32 %v2853, 1.0
        %v5212 = vadd.f32 %v2893, 1.0
        %v5213 = vadd.f32 %v2933, 1.0
        %v5214 = vadd.f32 %v2973, 1.0
        %v5215 = vadd.f32 %v3013, 1.0
        %v5216 = vadd.f32 %v3053, 1.0
        %v5217 = vadd.f32 %v3093, 1.0
        %v5218 = vadd.f32 %v3133, 1.0
        %v5219 = vadd.f32 %v3173, 1.0
        %v5220 = vadd.f32 %v3213, 1.0
        %v5221 = vadd.f32 %v3253, 1.0
        %v5222 = vadd.f32 %v3293, 1.0
        %v5223 = vadd.f32 %v3333, 1.0
        %v5224 = vadd.f32 %v3373, 1.0
        %v5225 = vadd.f32 %v3413, 1.0
        %v5226 = vadd.f32 %v3453, 1.0
        %v5227 = vadd.f32 %v3493, 1.0
        %v5228 = vadd.f32 %v3533, 1.0
        %v5229 = vadd.f32 %v3573, 1.0
        %v5230 = vadd.f32 %v3613, 1.0
        %v5231 = vadd.f32 %v3653, 1.0
        %v5232 = vadd.f32 %v3693, 1.0
        %v5233 = vadd.f32 %v3733, 1.0
        %v5234 = vadd.f32 %v3773, 1.0
        %v5235 = vadd.f32 %v3813, 1.0
        %v5236 = vadd.f32 %v3853, 1.0
        %v5237 = vadd.f32 %v3893, 1.0
        %v5238 = vadd.f32 %v3933, 1.0
        %v5239 = vadd.f32 %v3973, 1.0
        %v5240 = vadd.f32 %v4013, 1.0
        %v5241 = vadd.f32 %v4053, 1.0
        %v5242 = vadd.f32 %v4093, 1.0
        %v5243 = vadd.f32 %v4133, 1.0
        %v5244 = vadd.f32 %v4173, 1.0
        %v5245 = vadd.f32 %v4213, 1.0
        %v5246 = vadd.f32 %v4253, 1.0
        %v5247 = vadd.f32 %v4293, 1.0
        %v5248 = vadd.f32 %v4333, 1.0
        %v5249 = vadd.f32 %v4373, 1.0
        %v5250 = vadd.f32 %v4413, 1.0
        %v5251 = vadd.f32 %v4453, 1.0
        %v5252 = vadd.f32 %v4493, 1.0
        %v5253 = vadd.f32 %v4533, 1.0
        %v5254 = vadd.f32 %v4573, 1.0
        %v5255 = vadd.f32 %v4613, 1.0
        %v5256 = vadd.f32 %v4653, 1.0
        %v5257 = vadd.f32 %v4693, 1.0
        %v5258 = vadd.f32 %v4733, 1.0
        %v5259 = vadd.f32 %v4773, 1.0
        %v5260 = vadd.f32 %v4813, 1.0
        %v5261 = vadd.f32 %v4853, 1.0
        %v5262 = vadd.f32 %v4893, 1.0
        %v5263 = vadd.f32 %v4933, 1.0
        %v5264 = vadd.f32 %v4973, 1.0
        %v5265 = vadd.f32 %v5013, 1.0
        %v5266 = vadd.f32 %v5053, 1.0
        %v5267 = vadd.f32 %v5093, 1.0
        %v5268 = vadd.f32 %v5133, 1.0
        %v5269 = vadd.f32 %v5173, 1.0
        %v5270 = vmul.f32 %v1142, %v5174
        %v5271 = vmul.f32 %v1143, %v5175
        %v5272 = vmul.f32 %v1144, %v5176
        %v5273 = vmul.f32 %v1145, %v5177
        %v5274 = vmul.f32 %v1146, %v5178
        %v5275 = vmul.f32 %v1147, %v5179
        %v5276 = vmul.f32 %v1148, %v5180
        %v5277 = vmul.f32 %v1149, %v5181
        %v5278 = vmul.f32 %v1150, %v5182
        %v5279 = vmul.f32 %v1151, %v5183
        %v5280 = vmul.f32 %v1152, %v5184
        %v5281 = vmul.f32 %v1153, %v5185
        %v5282 = vmul.f32 %v1154, %v5186
        %v5283 = vmul.f32 %v1155, %v5187
        %v5284 = vmul.f32 %v1156, %v5188
        %v5285 = vmul.f32 %v1157, %v5189
        %v5286 = vmul.f32 %v1158, %v5190
        %v5287 = vmul.f32 %v1159, %v5191
        %v5288 = vmul.f32 %v1160, %v5192
        %v5289 = vmul.f32 %v1161, %v5193
        %v5290 = vmul.f32 %v1162, %v5194
        %v5291 = vmul.f32 %v1163, %v5195
        %v5292 = vmul.f32 %v1164, %v5196
        %v5293 = vmul.f32 %v1165, %v5197
        %v5294 = vmul.f32 %v1166, %v5198
        %v5295 = vmul.f32 %v1167, %v5199
        %v5296 = vmul.f32 %v1168, %v5200
        %v5297 = vmul.f32 %v1169, %v5201
        %v5298 = vmul.f32 %v1170, %v5202
        %v5299 = vmul.f32 %v1171, %v5203
        %v5300 = vmul.f32 %v1172, %v5204
        %v5301 = vmul.f32 %v1173, %v5205
        %v5302 = vmul.f32 %v1174, %v5206
        %v5303 = vmul.f32 %v1175, %v5207
        %v5304 = vmul.f32 %v1176, %v5208
        %v5305 = vmul.f32 %v1177, %v5209
        %v5306 = vmul.f32 %v1178, %v5210
        %v5307 = vmul.f32 %v1179, %v5211
        %v5308 = vmul.f32 %v1180, %v5212
        %v5309 = vmul.f32 %v1181, %v5213
        %v5310 = vmul.f32 %v1182, %v5214
        %v5311 = vmul.f32 %v1183, %v5215
        %v5312 = vmul.f32 %v1184, %v5216
        %v5313 = vmul.f32 %v1185, %v5217
        %v5314 = vmul.f32 %v1186, %v5218
        %v5315 = vmul.f32 %v1187, %v5219
        %v5316 = vmul.f32 %v1188, %v5220
        %v5317 = vmul.f32 %v1189, %v5221
        %v5318 = vmul.f32 %v1190, %v5222
        %v5319 = vmul.f32 %v1191, %v5223
        %v5320 = vmul.f32 %v1192, %v5224
        %v5321 = vmul.f32 %v1193, %v5225
        %v5322 = vmul.f32 %v1194, %v5226
        %v5323 = vmul.f32 %v1195, %v5227
        %v5324 = vmul.f32 %v1196, %v5228
        %v5325 = vmul.f32 %v1197, %v5229
        %v5326 = vmul.f32 %v1198, %v5230
        %v5327 = vmul.f32 %v1199, %v5231
        %v5328 = vmul.f32 %v1200, %v5232
        %v5329 = vmul.f32 %v1201, %v5233
        %v5330 = vmul.f32 %v1202, %v5234
        %v5331 = vmul.f32 %v1203, %v5235
        %v5332 = vmul.f32 %v1204, %v5236
        %v5333 = vmul.f32 %v1205, %v5237
        %v5334 = vmul.f32 %v1206, %v5238
        %v5335 = vmul.f32 %v1207, %v5239
        %v5336 = vmul.f32 %v1208, %v5240
        %v5337 = vmul.f32 %v1209, %v5241
        %v5338 = vmul.f32 %v1210, %v5242
        %v5339 = vmul.f32 %v1211, %v5243
        %v5340 = vmul.f32 %v1212, %v5244
        %v5341 = vmul.f32 %v1213, %v5245
        %v5342 = vmul.f32 %v1214, %v5246
        %v5343 = vmul.f32 %v1215, %v5247
        %v5344 = vmul.f32 %v1216, %v5248
        %v5345 = vmul.f32 %v1217, %v5249
        %v5346 = vmul.f32 %v1218, %v5250
        %v5347 = vmul.f32 %v1219, %v5251
        %v5348 = vmul.f32 %v1220, %v5252
        %v5349 = vmul.f32 %v1221, %v5253
        %v5350 = vmul.f32 %v1222, %v5254
        %v5351 = vmul.f32 %v1223, %v5255
        %v5352 = vmul.f32 %v1224, %v5256
        %v5353 = vmul.f32 %v1225, %v5257
        %v5354 = vmul.f32 %v1226, %v5258
        %v5355 = vmul.f32 %v1227, %v5259
        %v5356 = vmul.f32 %v1228, %v5260
        %v5357 = vmul.f32 %v1229, %v5261
        %v5358 = vmul.f32 %v1230, %v5262
        %v5359 = vmul.f32 %v1231, %v5263
        %v5360 = vmul.f32 %v1232, %v5264
        %v5361 = vmul.f32 %v1233, %v5265
        %v5362 = vmul.f32 %v1234, %v5266
        %v5363 = vmul.f32 %v1235, %v5267
        %v5364 = vmul.f32 %v1236, %v5268
        %v5365 = vmul.f32 %v1237, %v5269
        %v5366 = vld [vmem:[#allocation8] sm:$0xff]
        %v5367 = vld [vmem:[#allocation8 + $0x8] sm:$0xff]
        %v5368 = vld [vmem:[#allocation8 + $0x10] sm:$0xff]
        %v5369 = vld [vmem:[#allocation8 + $0x18] sm:$0xff]
        %v5370 = vld [vmem:[#allocation8 + $0x20] sm:$0xff]
        %v5371 = vld [vmem:[#allocation8 + $0x28] sm:$0xff]
        %v5372 = vld [vmem:[#allocation8 + $0x30] sm:$0xff]
        %v5373 = vld [vmem:[#allocation8 + $0x38] sm:$0xff]
        %v5374 = vld [vmem:[#allocation8 + $0x40] sm:$0xff]
        %v5375 = vld [vmem:[#allocation8 + $0x48] sm:$0xff]
        %v5376 = vld [vmem:[#allocation8 + $0x50] sm:$0xff]
        %v5377 = vld [vmem:[#allocation8 + $0x58] sm:$0xff]
        %v5378 = vld [vmem:[#allocation8 + $0x60] sm:$0xff]
        %v5379 = vld [vmem:[#allocation8 + $0x68] sm:$0xff]
        %v5380 = vld [vmem:[#allocation8 + $0x70] sm:$0xff]
        %v5381 = vld [vmem:[#allocation8 + $0x78] sm:$0xff]
        %v5382 = vld [vmem:[#allocation8 + $0x80] sm:$0xff]
        %v5383 = vld [vmem:[#allocation8 + $0x88] sm:$0xff]
        %v5384 = vld [vmem:[#allocation8 + $0x90] sm:$0xff]
        %v5385 = vld [vmem:[#allocation8 + $0x98] sm:$0xff]
        %v5386 = vld [vmem:[#allocation8 + $0xa0] sm:$0xff]
        %v5387 = vld [vmem:[#allocation8 + $0xa8] sm:$0xff]
        %v5388 = vld [vmem:[#allocation8 + $0xb0] sm:$0xff]
        %v5389 = vld [vmem:[#allocation8 + $0xb8] sm:$0xff]
        %v5390 = vld [vmem:[#allocation8 + $0xc0] sm:$0xff]
        %v5391 = vld [vmem:[#allocation8 + $0xc8] sm:$0xff]
        %v5392 = vld [vmem:[#allocation8 + $0xd0] sm:$0xff]
        %v5393 = vld [vmem:[#allocation8 + $0xd8] sm:$0xff]
        %v5394 = vld [vmem:[#allocation8 + $0xe0] sm:$0xff]
        %v5395 = vld [vmem:[#allocation8 + $0xe8] sm:$0xff]
        %v5396 = vld [vmem:[#allocation8 + $0xf0] sm:$0xff]
        %v5397 = vld [vmem:[#allocation8 + $0xf8] sm:$0xff]
        %v5398 = vld [vmem:[#allocation8 + $0x100] sm:$0xff]
        %v5399 = vld [vmem:[#allocation8 + $0x108] sm:$0xff]
        %v5400 = vld [vmem:[#allocation8 + $0x110] sm:$0xff]
        %v5401 = vld [vmem:[#allocation8 + $0x118] sm:$0xff]
        %v5402 = vld [vmem:[#allocation8 + $0x120] sm:$0xff]
        %v5403 = vld [vmem:[#allocation8 + $0x128] sm:$0xff]
        %v5404 = vld [vmem:[#allocation8 + $0x130] sm:$0xff]
        %v5405 = vld [vmem:[#allocation8 + $0x138] sm:$0xff]
        %v5406 = vld [vmem:[#allocation8 + $0x140] sm:$0xff]
        %v5407 = vld [vmem:[#allocation8 + $0x148] sm:$0xff]
        %v5408 = vld [vmem:[#allocation8 + $0x150] sm:$0xff]
        %v5409 = vld [vmem:[#allocation8 + $0x158] sm:$0xff]
        %v5410 = vld [vmem:[#allocation8 + $0x160] sm:$0xff]
        %v5411 = vld [vmem:[#allocation8 + $0x168] sm:$0xff]
        %v5412 = vld [vmem:[#allocation8 + $0x170] sm:$0xff]
        %v5413 = vld [vmem:[#allocation8 + $0x178] sm:$0xff]
        %v5414 = vld [vmem:[#allocation8 + $0x180] sm:$0xff]
        %v5415 = vld [vmem:[#allocation8 + $0x188] sm:$0xff]
        %v5416 = vld [vmem:[#allocation8 + $0x190] sm:$0xff]
        %v5417 = vld [vmem:[#allocation8 + $0x198] sm:$0xff]
        %v5418 = vld [vmem:[#allocation8 + $0x1a0] sm:$0xff]
        %v5419 = vld [vmem:[#allocation8 + $0x1a8] sm:$0xff]
        %v5420 = vld [vmem:[#allocation8 + $0x1b0] sm:$0xff]
        %v5421 = vld [vmem:[#allocation8 + $0x1b8] sm:$0xff]
        %v5422 = vld [vmem:[#allocation8 + $0x1c0] sm:$0xff]
        %v5423 = vld [vmem:[#allocation8 + $0x1c8] sm:$0xff]
        %v5424 = vld [vmem:[#allocation8 + $0x1d0] sm:$0xff]
        %v5425 = vld [vmem:[#allocation8 + $0x1d8] sm:$0xff]
        %v5426 = vld [vmem:[#allocation8 + $0x1e0] sm:$0xff]
        %v5427 = vld [vmem:[#allocation8 + $0x1e8] sm:$0xff]
        %v5428 = vld [vmem:[#allocation8 + $0x1f0] sm:$0xff]
        %v5429 = vld [vmem:[#allocation8 + $0x1f8] sm:$0xff]
        %v5430 = vld [vmem:[#allocation8 + $0x200] sm:$0xff]
        %v5431 = vld [vmem:[#allocation8 + $0x208] sm:$0xff]
        %v5432 = vld [vmem:[#allocation8 + $0x210] sm:$0xff]
        %v5433 = vld [vmem:[#allocation8 + $0x218] sm:$0xff]
        %v5434 = vld [vmem:[#allocation8 + $0x220] sm:$0xff]
        %v5435 = vld [vmem:[#allocation8 + $0x228] sm:$0xff]
        %v5436 = vld [vmem:[#allocation8 + $0x230] sm:$0xff]
        %v5437 = vld [vmem:[#allocation8 + $0x238] sm:$0xff]
        %v5438 = vld [vmem:[#allocation8 + $0x240] sm:$0xff]
        %v5439 = vld [vmem:[#allocation8 + $0x248] sm:$0xff]
        %v5440 = vld [vmem:[#allocation8 + $0x250] sm:$0xff]
        %v5441 = vld [vmem:[#allocation8 + $0x258] sm:$0xff]
        %v5442 = vld [vmem:[#allocation8 + $0x260] sm:$0xff]
        %v5443 = vld [vmem:[#allocation8 + $0x268] sm:$0xff]
        %v5444 = vld [vmem:[#allocation8 + $0x270] sm:$0xff]
        %v5445 = vld [vmem:[#allocation8 + $0x278] sm:$0xff]
        %v5446 = vld [vmem:[#allocation8 + $0x280] sm:$0xff]
        %v5447 = vld [vmem:[#allocation8 + $0x288] sm:$0xff]
        %v5448 = vld [vmem:[#allocation8 + $0x290] sm:$0xff]
        %v5449 = vld [vmem:[#allocation8 + $0x298] sm:$0xff]
        %v5450 = vld [vmem:[#allocation8 + $0x2a0] sm:$0xff]
        %v5451 = vld [vmem:[#allocation8 + $0x2a8] sm:$0xff]
        %v5452 = vld [vmem:[#allocation8 + $0x2b0] sm:$0xff]
        %v5453 = vld [vmem:[#allocation8 + $0x2b8] sm:$0xff]
        %v5454 = vld [vmem:[#allocation8 + $0x2c0] sm:$0xff]
        %v5455 = vld [vmem:[#allocation8 + $0x2c8] sm:$0xff]
        %v5456 = vld [vmem:[#allocation8 + $0x2d0] sm:$0xff]
        %v5457 = vld [vmem:[#allocation8 + $0x2d8] sm:$0xff]
        %v5458 = vld [vmem:[#allocation8 + $0x2e0] sm:$0xff]
        %v5459 = vld [vmem:[#allocation8 + $0x2e8] sm:$0xff]
        %v5460 = vld [vmem:[#allocation8 + $0x2f0] sm:$0xff]
        %v5461 = vld [vmem:[#allocation8 + $0x2f8] sm:$0xff]
        %v5462 = vld [vmem:[%s4] sm:$0x3]
        %v5464 = vperm.slane %v5462, 0
        %v5465 = vperm.slane %v5462, 1
        %5468 = vmatpush.msra.mxu0 %v5396
        %5469 = vmatpush.msra.mxu0 %v5394
        %5470 = vmatpush.msra.mxu0 %v5392
        %5471 = vmatpush.msra.mxu0 %v5390
        %5472 = vmatpush.msra.mxu0 %v5388
        %5473 = vmatpush.msra.mxu0 %v5386
        %5474 = vmatpush.msra.mxu0 %v5384
        %5475 = vmatpush.msra.mxu0 %v5382
        %5476 = vmatpush.msra.mxu0 %v5380
        %5477 = vmatpush.msra.mxu0 %v5378
        %5478 = vmatpush.msra.mxu0 %v5376
        %5479 = vmatpush.msra.mxu0 %v5374
        %5480 = vmatpush.msra.mxu0 %v5372
        %5481 = vmatpush.msra.mxu0 %v5370
        %5482 = vmatpush.msra.mxu0 %v5368
        %5483 = vmatpush.msra.mxu0 %v5366
        %5484 = vmatmul.f32.gmra.mxu0 %v5270
        %v5485 = vpop.f32.mrf.mxu0
        %v5486 = vadd.f32 %v5464, %v5485
        %5487 = vmatmul.f32.gmra.mxu0 %v5273
        %v5488 = vpop.f32.mrf.mxu0
        %v5489 = vadd.f32 %v5464, %v5488
        %5490 = vmatmul.f32.gmra.mxu0 %v5276
        %v5491 = vpop.f32.mrf.mxu0
        %v5492 = vadd.f32 %v5464, %v5491
        %5493 = vmatmul.f32.gmra.mxu0 %v5279
        %v5494 = vpop.f32.mrf.mxu0
        %v5495 = vadd.f32 %v5464, %v5494
        %5496 = vmatmul.f32.gmra.mxu0 %v5282
        %v5497 = vpop.f32.mrf.mxu0
        %v5498 = vadd.f32 %v5464, %v5497
        %5499 = vmatmul.f32.gmra.mxu0 %v5285
        %v5500 = vpop.f32.mrf.mxu0
        %v5501 = vadd.f32 %v5464, %v5500
        %5502 = vmatmul.f32.gmra.mxu0 %v5288
        %v5503 = vpop.f32.mrf.mxu0
        %v5504 = vadd.f32 %v5464, %v5503
        %5505 = vmatmul.f32.gmra.mxu0 %v5291
        %v5506 = vpop.f32.mrf.mxu0
        %v5507 = vadd.f32 %v5464, %v5506
        %5508 = vmatmul.f32.gmra.mxu0 %v5294
        %v5509 = vpop.f32.mrf.mxu0
        %v5510 = vadd.f32 %v5464, %v5509
        %5511 = vmatmul.f32.gmra.mxu0 %v5297
        %v5512 = vpop.f32.mrf.mxu0
        %v5513 = vadd.f32 %v5464, %v5512
        %5514 = vmatmul.f32.gmra.mxu0 %v5300
        %v5515 = vpop.f32.mrf.mxu0
        %v5516 = vadd.f32 %v5464, %v5515
        %5517 = vmatmul.f32.gmra.mxu0 %v5303
        %v5518 = vpop.f32.mrf.mxu0
        %v5519 = vadd.f32 %v5464, %v5518
        %5520 = vmatmul.f32.gmra.mxu0 %v5306
        %v5521 = vpop.f32.mrf.mxu0
        %v5522 = vadd.f32 %v5464, %v5521
        %5523 = vmatmul.f32.gmra.mxu0 %v5309
        %v5524 = vpop.f32.mrf.mxu0
        %v5525 = vadd.f32 %v5464, %v5524
        %5526 = vmatmul.f32.gmra.mxu0 %v5312
        %v5527 = vpop.f32.mrf.mxu0
        %v5528 = vadd.f32 %v5464, %v5527
        %5529 = vmatmul.f32.gmra.mxu0 %v5315
        %v5530 = vpop.f32.mrf.mxu0
        %v5531 = vadd.f32 %v5464, %v5530
        %5532 = vmatmul.f32.gmra.mxu0 %v5318
        %v5533 = vpop.f32.mrf.mxu0
        %v5534 = vadd.f32 %v5464, %v5533
        %5535 = vmatmul.f32.gmra.mxu0 %v5321
        %v5536 = vpop.f32.mrf.mxu0
        %v5537 = vadd.f32 %v5464, %v5536
        %5538 = vmatmul.f32.gmra.mxu0 %v5324
        %v5539 = vpop.f32.mrf.mxu0
        %v5540 = vadd.f32 %v5464, %v5539
        %5541 = vmatmul.f32.gmra.mxu0 %v5327
        %v5542 = vpop.f32.mrf.mxu0
        %v5543 = vadd.f32 %v5464, %v5542
        %5544 = vmatmul.f32.gmra.mxu0 %v5330
        %v5545 = vpop.f32.mrf.mxu0
        %v5546 = vadd.f32 %v5464, %v5545
        %5547 = vmatmul.f32.gmra.mxu0 %v5333
        %v5548 = vpop.f32.mrf.mxu0
        %v5549 = vadd.f32 %v5464, %v5548
        %5550 = vmatmul.f32.gmra.mxu0 %v5336
        %v5551 = vpop.f32.mrf.mxu0
        %v5552 = vadd.f32 %v5464, %v5551
        %5553 = vmatmul.f32.gmra.mxu0 %v5339
        %v5554 = vpop.f32.mrf.mxu0
        %v5555 = vadd.f32 %v5464, %v5554
        %5556 = vmatmul.f32.gmra.mxu0 %v5342
        %v5557 = vpop.f32.mrf.mxu0
        %v5558 = vadd.f32 %v5464, %v5557
        %5559 = vmatmul.f32.gmra.mxu0 %v5345
        %v5560 = vpop.f32.mrf.mxu0
        %v5561 = vadd.f32 %v5464, %v5560
        %5562 = vmatmul.f32.gmra.mxu0 %v5348
        %v5563 = vpop.f32.mrf.mxu0
        %v5564 = vadd.f32 %v5464, %v5563
        %5565 = vmatmul.f32.gmra.mxu0 %v5351
        %v5566 = vpop.f32.mrf.mxu0
        %v5567 = vadd.f32 %v5464, %v5566
        %5568 = vmatmul.f32.gmra.mxu0 %v5354
        %v5569 = vpop.f32.mrf.mxu0
        %v5570 = vadd.f32 %v5464, %v5569
        %5571 = vmatmul.f32.gmra.mxu0 %v5357
        %v5572 = vpop.f32.mrf.mxu0
        %v5573 = vadd.f32 %v5464, %v5572
        %5574 = vmatmul.f32.gmra.mxu0 %v5360
        %v5575 = vpop.f32.mrf.mxu0
        %v5576 = vadd.f32 %v5464, %v5575
        %5577 = vmatmul.f32.gmra.mxu0 %v5363
        %v5578 = vpop.f32.mrf.mxu0
        %v5579 = vadd.f32 %v5464, %v5578
        %5580 = vdwg.mxu0
        %5581 = vmatpush.msra.mxu0 %v5428
        %5582 = vmatpush.msra.mxu0 %v5426
        %5583 = vmatpush.msra.mxu0 %v5424
        %5584 = vmatpush.msra.mxu0 %v5422
        %5585 = vmatpush.msra.mxu0 %v5420
        %5586 = vmatpush.msra.mxu0 %v5418
        %5587 = vmatpush.msra.mxu0 %v5416
        %5588 = vmatpush.msra.mxu0 %v5414
        %5589 = vmatpush.msra.mxu0 %v5412
        %5590 = vmatpush.msra.mxu0 %v5410
        %5591 = vmatpush.msra.mxu0 %v5408
        %5592 = vmatpush.msra.mxu0 %v5406
        %5593 = vmatpush.msra.mxu0 %v5404
        %5594 = vmatpush.msra.mxu0 %v5402
        %5595 = vmatpush.msra.mxu0 %v5400
        %5596 = vmatpush.msra.mxu0 %v5398
        %5597 = vmatmul.f32.gmra.mxu0 %v5271
        %v5598 = vpop.f32.mrf.mxu0
        %v5599 = vadd.f32 %v5486, %v5598
        %5600 = vmatmul.f32.gmra.mxu0 %v5274
        %v5601 = vpop.f32.mrf.mxu0
        %v5602 = vadd.f32 %v5489, %v5601
        %5603 = vmatmul.f32.gmra.mxu0 %v5277
        %v5604 = vpop.f32.mrf.mxu0
        %v5605 = vadd.f32 %v5492, %v5604
        %5606 = vmatmul.f32.gmra.mxu0 %v5280
        %v5607 = vpop.f32.mrf.mxu0
        %v5608 = vadd.f32 %v5495, %v5607
        %5609 = vmatmul.f32.gmra.mxu0 %v5283
        %v5610 = vpop.f32.mrf.mxu0
        %v5611 = vadd.f32 %v5498, %v5610
        %5612 = vmatmul.f32.gmra.mxu0 %v5286
        %v5613 = vpop.f32.mrf.mxu0
        %v5614 = vadd.f32 %v5501, %v5613
        %5615 = vmatmul.f32.gmra.mxu0 %v5289
        %v5616 = vpop.f32.mrf.mxu0
        %v5617 = vadd.f32 %v5504, %v5616
        %5618 = vmatmul.f32.gmra.mxu0 %v5292
        %v5619 = vpop.f32.mrf.mxu0
        %v5620 = vadd.f32 %v5507, %v5619
        %5621 = vmatmul.f32.gmra.mxu0 %v5295
        %v5622 = vpop.f32.mrf.mxu0
        %v5623 = vadd.f32 %v5510, %v5622
        %5624 = vmatmul.f32.gmra.mxu0 %v5298
        %v5625 = vpop.f32.mrf.mxu0
        %v5626 = vadd.f32 %v5513, %v5625
        %5627 = vmatmul.f32.gmra.mxu0 %v5301
        %v5628 = vpop.f32.mrf.mxu0
        %v5629 = vadd.f32 %v5516, %v5628
        %5630 = vmatmul.f32.gmra.mxu0 %v5304
        %v5631 = vpop.f32.mrf.mxu0
        %v5632 = vadd.f32 %v5519, %v5631
        %5633 = vmatmul.f32.gmra.mxu0 %v5307
        %v5634 = vpop.f32.mrf.mxu0
        %v5635 = vadd.f32 %v5522, %v5634
        %5636 = vmatmul.f32.gmra.mxu0 %v5310
        %v5637 = vpop.f32.mrf.mxu0
        %v5638 = vadd.f32 %v5525, %v5637
        %5639 = vmatmul.f32.gmra.mxu0 %v5313
        %v5640 = vpop.f32.mrf.mxu0
        %v5641 = vadd.f32 %v5528, %v5640
        %5642 = vmatmul.f32.gmra.mxu0 %v5316
        %v5643 = vpop.f32.mrf.mxu0
        %v5644 = vadd.f32 %v5531, %v5643
        %5645 = vmatmul.f32.gmra.mxu0 %v5319
        %v5646 = vpop.f32.mrf.mxu0
        %v5647 = vadd.f32 %v5534, %v5646
        %5648 = vmatmul.f32.gmra.mxu0 %v5322
        %v5649 = vpop.f32.mrf.mxu0
        %v5650 = vadd.f32 %v5537, %v5649
        %5651 = vmatmul.f32.gmra.mxu0 %v5325
        %v5652 = vpop.f32.mrf.mxu0
        %v5653 = vadd.f32 %v5540, %v5652
        %5654 = vmatmul.f32.gmra.mxu0 %v5328
        %v5655 = vpop.f32.mrf.mxu0
        %v5656 = vadd.f32 %v5543, %v5655
        %5657 = vmatmul.f32.gmra.mxu0 %v5331
        %v5658 = vpop.f32.mrf.mxu0
        %v5659 = vadd.f32 %v5546, %v5658
        %5660 = vmatmul.f32.gmra.mxu0 %v5334
        %v5661 = vpop.f32.mrf.mxu0
        %v5662 = vadd.f32 %v5549, %v5661
        %5663 = vmatmul.f32.gmra.mxu0 %v5337
        %v5664 = vpop.f32.mrf.mxu0
        %v5665 = vadd.f32 %v5552, %v5664
        %5666 = vmatmul.f32.gmra.mxu0 %v5340
        %v5667 = vpop.f32.mrf.mxu0
        %v5668 = vadd.f32 %v5555, %v5667
        %5669 = vmatmul.f32.gmra.mxu0 %v5343
        %v5670 = vpop.f32.mrf.mxu0
        %v5671 = vadd.f32 %v5558, %v5670
        %5672 = vmatmul.f32.gmra.mxu0 %v5346
        %v5673 = vpop.f32.mrf.mxu0
        %v5674 = vadd.f32 %v5561, %v5673
        %5675 = vmatmul.f32.gmra.mxu0 %v5349
        %v5676 = vpop.f32.mrf.mxu0
        %v5677 = vadd.f32 %v5564, %v5676
        %5678 = vmatmul.f32.gmra.mxu0 %v5352
        %v5679 = vpop.f32.mrf.mxu0
        %v5680 = vadd.f32 %v5567, %v5679
        %5681 = vmatmul.f32.gmra.mxu0 %v5355
        %v5682 = vpop.f32.mrf.mxu0
        %v5683 = vadd.f32 %v5570, %v5682
        %5684 = vmatmul.f32.gmra.mxu0 %v5358
        %v5685 = vpop.f32.mrf.mxu0
        %v5686 = vadd.f32 %v5573, %v5685
        %5687 = vmatmul.f32.gmra.mxu0 %v5361
        %v5688 = vpop.f32.mrf.mxu0
        %v5689 = vadd.f32 %v5576, %v5688
        %5690 = vmatmul.f32.gmra.mxu0 %v5364
        %v5691 = vpop.f32.mrf.mxu0
        %v5692 = vadd.f32 %v5579, %v5691
        %5693 = vdwg.mxu0
        %5694 = vmatpush.msra.mxu0 %v5460
        %5695 = vmatpush.msra.mxu0 %v5458
        %5696 = vmatpush.msra.mxu0 %v5456
        %5697 = vmatpush.msra.mxu0 %v5454
        %5698 = vmatpush.msra.mxu0 %v5452
        %5699 = vmatpush.msra.mxu0 %v5450
        %5700 = vmatpush.msra.mxu0 %v5448
        %5701 = vmatpush.msra.mxu0 %v5446
        %5702 = vmatpush.msra.mxu0 %v5444
        %5703 = vmatpush.msra.mxu0 %v5442
        %5704 = vmatpush.msra.mxu0 %v5440
        %5705 = vmatpush.msra.mxu0 %v5438
        %5706 = vmatpush.msra.mxu0 %v5436
        %5707 = vmatpush.msra.mxu0 %v5434
        %5708 = vmatpush.msra.mxu0 %v5432
        %5709 = vmatpush.msra.mxu0 %v5430
        %5710 = vmatmul.f32.gmra.mxu0 %v5272
        %v5711 = vpop.f32.mrf.mxu0
        %v5712 = vadd.f32 %v5599, %v5711
        %5713 = vmatmul.f32.gmra.mxu0 %v5275
        %v5714 = vpop.f32.mrf.mxu0
        %v5715 = vadd.f32 %v5602, %v5714
        %5716 = vmatmul.f32.gmra.mxu0 %v5278
        %v5717 = vpop.f32.mrf.mxu0
        %v5718 = vadd.f32 %v5605, %v5717
        %5719 = vmatmul.f32.gmra.mxu0 %v5281
        %v5720 = vpop.f32.mrf.mxu0
        %v5721 = vadd.f32 %v5608, %v5720
        %5722 = vmatmul.f32.gmra.mxu0 %v5284
        %v5723 = vpop.f32.mrf.mxu0
        %v5724 = vadd.f32 %v5611, %v5723
        %5725 = vmatmul.f32.gmra.mxu0 %v5287
        %v5726 = vpop.f32.mrf.mxu0
        %v5727 = vadd.f32 %v5614, %v5726
        %5728 = vmatmul.f32.gmra.mxu0 %v5290
        %v5729 = vpop.f32.mrf.mxu0
        %v5730 = vadd.f32 %v5617, %v5729
        %5731 = vmatmul.f32.gmra.mxu0 %v5293
        %v5732 = vpop.f32.mrf.mxu0
        %v5733 = vadd.f32 %v5620, %v5732
        %5734 = vmatmul.f32.gmra.mxu0 %v5296
        %v5735 = vpop.f32.mrf.mxu0
        %v5736 = vadd.f32 %v5623, %v5735
        %5737 = vmatmul.f32.gmra.mxu0 %v5299
        %v5738 = vpop.f32.mrf.mxu0
        %v5739 = vadd.f32 %v5626, %v5738
        %5740 = vmatmul.f32.gmra.mxu0 %v5302
        %v5741 = vpop.f32.mrf.mxu0
        %v5742 = vadd.f32 %v5629, %v5741
        %5743 = vmatmul.f32.gmra.mxu0 %v5305
        %v5744 = vpop.f32.mrf.mxu0
        %v5745 = vadd.f32 %v5632, %v5744
        %5746 = vmatmul.f32.gmra.mxu0 %v5308
        %v5747 = vpop.f32.mrf.mxu0
        %v5748 = vadd.f32 %v5635, %v5747
        %5749 = vmatmul.f32.gmra.mxu0 %v5311
        %v5750 = vpop.f32.mrf.mxu0
        %v5751 = vadd.f32 %v5638, %v5750
        %5752 = vmatmul.f32.gmra.mxu0 %v5314
        %v5753 = vpop.f32.mrf.mxu0
        %v5754 = vadd.f32 %v5641, %v5753
        %5755 = vmatmul.f32.gmra.mxu0 %v5317
        %v5756 = vpop.f32.mrf.mxu0
        %v5757 = vadd.f32 %v5644, %v5756
        %5758 = vmatmul.f32.gmra.mxu0 %v5320
        %v5759 = vpop.f32.mrf.mxu0
        %v5760 = vadd.f32 %v5647, %v5759
        %5761 = vmatmul.f32.gmra.mxu0 %v5323
        %v5762 = vpop.f32.mrf.mxu0
        %v5763 = vadd.f32 %v5650, %v5762
        %5764 = vmatmul.f32.gmra.mxu0 %v5326
        %v5765 = vpop.f32.mrf.mxu0
        %v5766 = vadd.f32 %v5653, %v5765
        %5767 = vmatmul.f32.gmra.mxu0 %v5329
        %v5768 = vpop.f32.mrf.mxu0
        %v5769 = vadd.f32 %v5656, %v5768
        %5770 = vmatmul.f32.gmra.mxu0 %v5332
        %v5771 = vpop.f32.mrf.mxu0
        %v5772 = vadd.f32 %v5659, %v5771
        %5773 = vmatmul.f32.gmra.mxu0 %v5335
        %v5774 = vpop.f32.mrf.mxu0
        %v5775 = vadd.f32 %v5662, %v5774
        %5776 = vmatmul.f32.gmra.mxu0 %v5338
        %v5777 = vpop.f32.mrf.mxu0
        %v5778 = vadd.f32 %v5665, %v5777
        %5779 = vmatmul.f32.gmra.mxu0 %v5341
        %v5780 = vpop.f32.mrf.mxu0
        %v5781 = vadd.f32 %v5668, %v5780
        %5782 = vmatmul.f32.gmra.mxu0 %v5344
        %v5783 = vpop.f32.mrf.mxu0
        %v5784 = vadd.f32 %v5671, %v5783
        %5785 = vmatmul.f32.gmra.mxu0 %v5347
        %v5786 = vpop.f32.mrf.mxu0
        %v5787 = vadd.f32 %v5674, %v5786
        %5788 = vmatmul.f32.gmra.mxu0 %v5350
        %v5789 = vpop.f32.mrf.mxu0
        %v5790 = vadd.f32 %v5677, %v5789
        %5791 = vmatmul.f32.gmra.mxu0 %v5353
        %v5792 = vpop.f32.mrf.mxu0
        %v5793 = vadd.f32 %v5680, %v5792
        %5794 = vmatmul.f32.gmra.mxu0 %v5356
        %v5795 = vpop.f32.mrf.mxu0
        %v5796 = vadd.f32 %v5683, %v5795
        %5797 = vmatmul.f32.gmra.mxu0 %v5359
        %v5798 = vpop.f32.mrf.mxu0
        %v5799 = vadd.f32 %v5686, %v5798
        %5800 = vmatmul.f32.gmra.mxu0 %v5362
        %v5801 = vpop.f32.mrf.mxu0
        %v5802 = vadd.f32 %v5689, %v5801
        %5803 = vmatmul.f32.gmra.mxu0 %v5365
        %v5804 = vpop.f32.mrf.mxu0
        %v5805 = vadd.f32 %v5692, %v5804
        %5806 = vdwg.mxu0
        %5807 = vmatpush.msra.mxu0 %v5397
        %5808 = vmatpush.msra.mxu0 %v5395
        %5809 = vmatpush.msra.mxu0 %v5393
        %5810 = vmatpush.msra.mxu0 %v5391
        %5811 = vmatpush.msra.mxu0 %v5389
        %5812 = vmatpush.msra.mxu0 %v5387
        %5813 = vmatpush.msra.mxu0 %v5385
        %5814 = vmatpush.msra.mxu0 %v5383
        %5815 = vmatpush.msra.mxu0 %v5381
        %5816 = vmatpush.msra.mxu0 %v5379
        %5817 = vmatpush.msra.mxu0 %v5377
        %5818 = vmatpush.msra.mxu0 %v5375
        %5819 = vmatpush.msra.mxu0 %v5373
        %5820 = vmatpush.msra.mxu0 %v5371
        %5821 = vmatpush.msra.mxu0 %v5369
        %5822 = vmatpush.msra.mxu0 %v5367
        %5823 = vmatmul.f32.gmra.mxu0 %v5270
        %v5824 = vpop.f32.mrf.mxu0
        %v5825 = vadd.f32 %v5465, %v5824
        %5826 = vmatmul.f32.gmra.mxu0 %v5273
        %v5827 = vpop.f32.mrf.mxu0
        %v5828 = vadd.f32 %v5465, %v5827
        %5829 = vmatmul.f32.gmra.mxu0 %v5276
        %v5830 = vpop.f32.mrf.mxu0
        %v5831 = vadd.f32 %v5465, %v5830
        %5832 = vmatmul.f32.gmra.mxu0 %v5279
        %v5833 = vpop.f32.mrf.mxu0
        %v5834 = vadd.f32 %v5465, %v5833
        %5835 = vmatmul.f32.gmra.mxu0 %v5282
        %v5836 = vpop.f32.mrf.mxu0
        %v5837 = vadd.f32 %v5465, %v5836
        %5838 = vmatmul.f32.gmra.mxu0 %v5285
        %v5839 = vpop.f32.mrf.mxu0
        %v5840 = vadd.f32 %v5465, %v5839
        %5841 = vmatmul.f32.gmra.mxu0 %v5288
        %v5842 = vpop.f32.mrf.mxu0
        %v5843 = vadd.f32 %v5465, %v5842
        %5844 = vmatmul.f32.gmra.mxu0 %v5291
        %v5845 = vpop.f32.mrf.mxu0
        %v5846 = vadd.f32 %v5465, %v5845
        %5847 = vmatmul.f32.gmra.mxu0 %v5294
        %v5848 = vpop.f32.mrf.mxu0
        %v5849 = vadd.f32 %v5465, %v5848
        %5850 = vmatmul.f32.gmra.mxu0 %v5297
        %v5851 = vpop.f32.mrf.mxu0
        %v5852 = vadd.f32 %v5465, %v5851
        %5853 = vmatmul.f32.gmra.mxu0 %v5300
        %v5854 = vpop.f32.mrf.mxu0
        %v5855 = vadd.f32 %v5465, %v5854
        %5856 = vmatmul.f32.gmra.mxu0 %v5303
        %v5857 = vpop.f32.mrf.mxu0
        %v5858 = vadd.f32 %v5465, %v5857
        %5859 = vmatmul.f32.gmra.mxu0 %v5306
        %v5860 = vpop.f32.mrf.mxu0
        %v5861 = vadd.f32 %v5465, %v5860
        %5862 = vmatmul.f32.gmra.mxu0 %v5309
        %v5863 = vpop.f32.mrf.mxu0
        %v5864 = vadd.f32 %v5465, %v5863
        %5865 = vmatmul.f32.gmra.mxu0 %v5312
        %v5866 = vpop.f32.mrf.mxu0
        %v5867 = vadd.f32 %v5465, %v5866
        %5868 = vmatmul.f32.gmra.mxu0 %v5315
        %v5869 = vpop.f32.mrf.mxu0
        %v5870 = vadd.f32 %v5465, %v5869
        %5871 = vmatmul.f32.gmra.mxu0 %v5318
        %v5872 = vpop.f32.mrf.mxu0
        %v5873 = vadd.f32 %v5465, %v5872
        %5874 = vmatmul.f32.gmra.mxu0 %v5321
        %v5875 = vpop.f32.mrf.mxu0
        %v5876 = vadd.f32 %v5465, %v5875
        %5877 = vmatmul.f32.gmra.mxu0 %v5324
        %v5878 = vpop.f32.mrf.mxu0
        %v5879 = vadd.f32 %v5465, %v5878
        %5880 = vmatmul.f32.gmra.mxu0 %v5327
        %v5881 = vpop.f32.mrf.mxu0
        %v5882 = vadd.f32 %v5465, %v5881
        %5883 = vmatmul.f32.gmra.mxu0 %v5330
        %v5884 = vpop.f32.mrf.mxu0
        %v5885 = vadd.f32 %v5465, %v5884
        %5886 = vmatmul.f32.gmra.mxu0 %v5333
        %v5887 = vpop.f32.mrf.mxu0
        %v5888 = vadd.f32 %v5465, %v5887
        %5889 = vmatmul.f32.gmra.mxu0 %v5336
        %v5890 = vpop.f32.mrf.mxu0
        %v5891 = vadd.f32 %v5465, %v5890
        %5892 = vmatmul.f32.gmra.mxu0 %v5339
        %v5893 = vpop.f32.mrf.mxu0
        %v5894 = vadd.f32 %v5465, %v5893
        %5895 = vmatmul.f32.gmra.mxu0 %v5342
        %v5896 = vpop.f32.mrf.mxu0
        %v5897 = vadd.f32 %v5465, %v5896
        %5898 = vmatmul.f32.gmra.mxu0 %v5345
        %v5899 = vpop.f32.mrf.mxu0
        %v5900 = vadd.f32 %v5465, %v5899
        %5901 = vmatmul.f32.gmra.mxu0 %v5348
        %v5902 = vpop.f32.mrf.mxu0
        %v5903 = vadd.f32 %v5465, %v5902
        %5904 = vmatmul.f32.gmra.mxu0 %v5351
        %v5905 = vpop.f32.mrf.mxu0
        %v5906 = vadd.f32 %v5465, %v5905
        %5907 = vmatmul.f32.gmra.mxu0 %v5354
        %v5908 = vpop.f32.mrf.mxu0
        %v5909 = vadd.f32 %v5465, %v5908
        %5910 = vmatmul.f32.gmra.mxu0 %v5357
        %v5911 = vpop.f32.mrf.mxu0
        %v5912 = vadd.f32 %v5465, %v5911
        %5913 = vmatmul.f32.gmra.mxu0 %v5360
        %v5914 = vpop.f32.mrf.mxu0
        %v5915 = vadd.f32 %v5465, %v5914
        %5916 = vmatmul.f32.gmra.mxu0 %v5363
        %v5917 = vpop.f32.mrf.mxu0
        %v5918 = vadd.f32 %v5465, %v5917
        %5919 = vdwg.mxu0
        %5920 = vmatpush.msra.mxu0 %v5429
        %5921 = vmatpush.msra.mxu0 %v5427
        %5922 = vmatpush.msra.mxu0 %v5425
        %5923 = vmatpush.msra.mxu0 %v5423
        %5924 = vmatpush.msra.mxu0 %v5421
        %5925 = vmatpush.msra.mxu0 %v5419
        %5926 = vmatpush.msra.mxu0 %v5417
        %5927 = vmatpush.msra.mxu0 %v5415
        %5928 = vmatpush.msra.mxu0 %v5413
        %5929 = vmatpush.msra.mxu0 %v5411
        %5930 = vmatpush.msra.mxu0 %v5409
        %5931 = vmatpush.msra.mxu0 %v5407
        %5932 = vmatpush.msra.mxu0 %v5405
        %5933 = vmatpush.msra.mxu0 %v5403
        %5934 = vmatpush.msra.mxu0 %v5401
        %5935 = vmatpush.msra.mxu0 %v5399
        %5936 = vmatmul.f32.gmra.mxu0 %v5271
        %v5937 = vpop.f32.mrf.mxu0
        %v5938 = vadd.f32 %v5825, %v5937
        %5939 = vmatmul.f32.gmra.mxu0 %v5274
        %v5940 = vpop.f32.mrf.mxu0
        %v5941 = vadd.f32 %v5828, %v5940
        %5942 = vmatmul.f32.gmra.mxu0 %v5277
        %v5943 = vpop.f32.mrf.mxu0
        %v5944 = vadd.f32 %v5831, %v5943
        %5945 = vmatmul.f32.gmra.mxu0 %v5280
        %v5946 = vpop.f32.mrf.mxu0
        %v5947 = vadd.f32 %v5834, %v5946
        %5948 = vmatmul.f32.gmra.mxu0 %v5283
        %v5949 = vpop.f32.mrf.mxu0
        %v5950 = vadd.f32 %v5837, %v5949
        %5951 = vmatmul.f32.gmra.mxu0 %v5286
        %v5952 = vpop.f32.mrf.mxu0
        %v5953 = vadd.f32 %v5840, %v5952
        %5954 = vmatmul.f32.gmra.mxu0 %v5289
        %v5955 = vpop.f32.mrf.mxu0
        %v5956 = vadd.f32 %v5843, %v5955
        %5957 = vmatmul.f32.gmra.mxu0 %v5292
        %v5958 = vpop.f32.mrf.mxu0
        %v5959 = vadd.f32 %v5846, %v5958
        %5960 = vmatmul.f32.gmra.mxu0 %v5295
        %v5961 = vpop.f32.mrf.mxu0
        %v5962 = vadd.f32 %v5849, %v5961
        %5963 = vmatmul.f32.gmra.mxu0 %v5298
        %v5964 = vpop.f32.mrf.mxu0
        %v5965 = vadd.f32 %v5852, %v5964
        %5966 = vmatmul.f32.gmra.mxu0 %v5301
        %v5967 = vpop.f32.mrf.mxu0
        %v5968 = vadd.f32 %v5855, %v5967
        %5969 = vmatmul.f32.gmra.mxu0 %v5304
        %v5970 = vpop.f32.mrf.mxu0
        %v5971 = vadd.f32 %v5858, %v5970
        %5972 = vmatmul.f32.gmra.mxu0 %v5307
        %v5973 = vpop.f32.mrf.mxu0
        %v5974 = vadd.f32 %v5861, %v5973
        %5975 = vmatmul.f32.gmra.mxu0 %v5310
        %v5976 = vpop.f32.mrf.mxu0
        %v5977 = vadd.f32 %v5864, %v5976
        %5978 = vmatmul.f32.gmra.mxu0 %v5313
        %v5979 = vpop.f32.mrf.mxu0
        %v5980 = vadd.f32 %v5867, %v5979
        %5981 = vmatmul.f32.gmra.mxu0 %v5316
        %v5982 = vpop.f32.mrf.mxu0
        %v5983 = vadd.f32 %v5870, %v5982
        %5984 = vmatmul.f32.gmra.mxu0 %v5319
        %v5985 = vpop.f32.mrf.mxu0
        %v5986 = vadd.f32 %v5873, %v5985
        %5987 = vmatmul.f32.gmra.mxu0 %v5322
        %v5988 = vpop.f32.mrf.mxu0
        %v5989 = vadd.f32 %v5876, %v5988
        %5990 = vmatmul.f32.gmra.mxu0 %v5325
        %v5991 = vpop.f32.mrf.mxu0
        %v5992 = vadd.f32 %v5879, %v5991
        %5993 = vmatmul.f32.gmra.mxu0 %v5328
        %v5994 = vpop.f32.mrf.mxu0
        %v5995 = vadd.f32 %v5882, %v5994
        %5996 = vmatmul.f32.gmra.mxu0 %v5331
        %v5997 = vpop.f32.mrf.mxu0
        %v5998 = vadd.f32 %v5885, %v5997
        %5999 = vmatmul.f32.gmra.mxu0 %v5334
        %v6000 = vpop.f32.mrf.mxu0
        %v6001 = vadd.f32 %v5888, %v6000
        %6002 = vmatmul.f32.gmra.mxu0 %v5337
        %v6003 = vpop.f32.mrf.mxu0
        %v6004 = vadd.f32 %v5891, %v6003
        %6005 = vmatmul.f32.gmra.mxu0 %v5340
        %v6006 = vpop.f32.mrf.mxu0
        %v6007 = vadd.f32 %v5894, %v6006
        %6008 = vmatmul.f32.gmra.mxu0 %v5343
        %v6009 = vpop.f32.mrf.mxu0
        %v6010 = vadd.f32 %v5897, %v6009
        %6011 = vmatmul.f32.gmra.mxu0 %v5346
        %v6012 = vpop.f32.mrf.mxu0
        %v6013 = vadd.f32 %v5900, %v6012
        %6014 = vmatmul.f32.gmra.mxu0 %v5349
        %v6015 = vpop.f32.mrf.mxu0
        %v6016 = vadd.f32 %v5903, %v6015
        %6017 = vmatmul.f32.gmra.mxu0 %v5352
        %v6018 = vpop.f32.mrf.mxu0
        %v6019 = vadd.f32 %v5906, %v6018
        %6020 = vmatmul.f32.gmra.mxu0 %v5355
        %v6021 = vpop.f32.mrf.mxu0
        %v6022 = vadd.f32 %v5909, %v6021
        %6023 = vmatmul.f32.gmra.mxu0 %v5358
        %v6024 = vpop.f32.mrf.mxu0
        %v6025 = vadd.f32 %v5912, %v6024
        %6026 = vmatmul.f32.gmra.mxu0 %v5361
        %v6027 = vpop.f32.mrf.mxu0
        %v6028 = vadd.f32 %v5915, %v6027
        %6029 = vmatmul.f32.gmra.mxu0 %v5364
        %v6030 = vpop.f32.mrf.mxu0
        %v6031 = vadd.f32 %v5918, %v6030
        %6032 = vdwg.mxu0
        %6033 = vmatpush.msra.mxu0 %v5461
        %6034 = vmatpush.msra.mxu0 %v5459
        %6035 = vmatpush.msra.mxu0 %v5457
        %6036 = vmatpush.msra.mxu0 %v5455
        %6037 = vmatpush.msra.mxu0 %v5453
        %6038 = vmatpush.msra.mxu0 %v5451
        %6039 = vmatpush.msra.mxu0 %v5449
        %6040 = vmatpush.msra.mxu0 %v5447
        %6041 = vmatpush.msra.mxu0 %v5445
        %6042 = vmatpush.msra.mxu0 %v5443
        %6043 = vmatpush.msra.mxu0 %v5441
        %6044 = vmatpush.msra.mxu0 %v5439
        %6045 = vmatpush.msra.mxu0 %v5437
        %6046 = vmatpush.msra.mxu0 %v5435
        %6047 = vmatpush.msra.mxu0 %v5433
        %6048 = vmatpush.msra.mxu0 %v5431
        %6049 = vmatmul.f32.gmra.mxu0 %v5272
        %v6050 = vpop.f32.mrf.mxu0
        %v6051 = vadd.f32 %v5938, %v6050
        %6052 = vmatmul.f32.gmra.mxu0 %v5275
        %v6053 = vpop.f32.mrf.mxu0
        %v6054 = vadd.f32 %v5941, %v6053
        %6055 = vmatmul.f32.gmra.mxu0 %v5278
        %v6056 = vpop.f32.mrf.mxu0
        %v6057 = vadd.f32 %v5944, %v6056
        %6058 = vmatmul.f32.gmra.mxu0 %v5281
        %v6059 = vpop.f32.mrf.mxu0
        %v6060 = vadd.f32 %v5947, %v6059
        %6061 = vmatmul.f32.gmra.mxu0 %v5284
        %v6062 = vpop.f32.mrf.mxu0
        %v6063 = vadd.f32 %v5950, %v6062
        %6064 = vmatmul.f32.gmra.mxu0 %v5287
        %v6065 = vpop.f32.mrf.mxu0
        %v6066 = vadd.f32 %v5953, %v6065
        %6067 = vmatmul.f32.gmra.mxu0 %v5290
        %v6068 = vpop.f32.mrf.mxu0
        %v6069 = vadd.f32 %v5956, %v6068
        %6070 = vmatmul.f32.gmra.mxu0 %v5293
        %v6071 = vpop.f32.mrf.mxu0
        %v6072 = vadd.f32 %v5959, %v6071
        %6073 = vmatmul.f32.gmra.mxu0 %v5296
        %v6074 = vpop.f32.mrf.mxu0
        %v6075 = vadd.f32 %v5962, %v6074
        %6076 = vmatmul.f32.gmra.mxu0 %v5299
        %v6077 = vpop.f32.mrf.mxu0
        %v6078 = vadd.f32 %v5965, %v6077
        %6079 = vmatmul.f32.gmra.mxu0 %v5302
        %v6080 = vpop.f32.mrf.mxu0
        %v6081 = vadd.f32 %v5968, %v6080
        %6082 = vmatmul.f32.gmra.mxu0 %v5305
        %v6083 = vpop.f32.mrf.mxu0
        %v6084 = vadd.f32 %v5971, %v6083
        %6085 = vmatmul.f32.gmra.mxu0 %v5308
        %v6086 = vpop.f32.mrf.mxu0
        %v6087 = vadd.f32 %v5974, %v6086
        %6088 = vmatmul.f32.gmra.mxu0 %v5311
        %v6089 = vpop.f32.mrf.mxu0
        %v6090 = vadd.f32 %v5977, %v6089
        %6091 = vmatmul.f32.gmra.mxu0 %v5314
        %v6092 = vpop.f32.mrf.mxu0
        %v6093 = vadd.f32 %v5980, %v6092
        %6094 = vmatmul.f32.gmra.mxu0 %v5317
        %v6095 = vpop.f32.mrf.mxu0
        %v6096 = vadd.f32 %v5983, %v6095
        %6097 = vmatmul.f32.gmra.mxu0 %v5320
        %v6098 = vpop.f32.mrf.mxu0
        %v6099 = vadd.f32 %v5986, %v6098
        %6100 = vmatmul.f32.gmra.mxu0 %v5323
        %v6101 = vpop.f32.mrf.mxu0
        %v6102 = vadd.f32 %v5989, %v6101
        %6103 = vmatmul.f32.gmra.mxu0 %v5326
        %v6104 = vpop.f32.mrf.mxu0
        %v6105 = vadd.f32 %v5992, %v6104
        %6106 = vmatmul.f32.gmra.mxu0 %v5329
        %v6107 = vpop.f32.mrf.mxu0
        %v6108 = vadd.f32 %v5995, %v6107
        %6109 = vmatmul.f32.gmra.mxu0 %v5332
        %v6110 = vpop.f32.mrf.mxu0
        %v6111 = vadd.f32 %v5998, %v6110
        %6112 = vmatmul.f32.gmra.mxu0 %v5335
        %v6113 = vpop.f32.mrf.mxu0
        %v6114 = vadd.f32 %v6001, %v6113
        %6115 = vmatmul.f32.gmra.mxu0 %v5338
        %v6116 = vpop.f32.mrf.mxu0
        %v6117 = vadd.f32 %v6004, %v6116
        %6118 = vmatmul.f32.gmra.mxu0 %v5341
        %v6119 = vpop.f32.mrf.mxu0
        %v6120 = vadd.f32 %v6007, %v6119
        %6121 = vmatmul.f32.gmra.mxu0 %v5344
        %v6122 = vpop.f32.mrf.mxu0
        %v6123 = vadd.f32 %v6010, %v6122
        %6124 = vmatmul.f32.gmra.mxu0 %v5347
        %v6125 = vpop.f32.mrf.mxu0
        %v6126 = vadd.f32 %v6013, %v6125
        %6127 = vmatmul.f32.gmra.mxu0 %v5350
        %v6128 = vpop.f32.mrf.mxu0
        %v6129 = vadd.f32 %v6016, %v6128
        %6130 = vmatmul.f32.gmra.mxu0 %v5353
        %v6131 = vpop.f32.mrf.mxu0
        %v6132 = vadd.f32 %v6019, %v6131
        %6133 = vmatmul.f32.gmra.mxu0 %v5356
        %v6134 = vpop.f32.mrf.mxu0
        %v6135 = vadd.f32 %v6022, %v6134
        %6136 = vmatmul.f32.gmra.mxu0 %v5359
        %v6137 = vpop.f32.mrf.mxu0
        %v6138 = vadd.f32 %v6025, %v6137
        %6139 = vmatmul.f32.gmra.mxu0 %v5362
        %v6140 = vpop.f32.mrf.mxu0
        %v6141 = vadd.f32 %v6028, %v6140
        %6142 = vmatmul.f32.gmra.mxu0 %v5365
        %v6143 = vpop.f32.mrf.mxu0
        %v6144 = vadd.f32 %v6031, %v6143
        %6145 = vdwg.mxu0
        %6146 = vst [vmem:[%s293] sm:$0xff] %v5712
        %6147 = vst [vmem:[%s293 + $0x8] sm:$0xff] %v6051
        %6148 = vst [vmem:[%s293 + $0x10] sm:$0xff] %v5715
        %6149 = vst [vmem:[%s293 + $0x18] sm:$0xff] %v6054
        %6150 = vst [vmem:[%s293 + $0x20] sm:$0xff] %v5718
        %6151 = vst [vmem:[%s293 + $0x28] sm:$0xff] %v6057
        %6152 = vst [vmem:[%s293 + $0x30] sm:$0xff] %v5721
        %6153 = vst [vmem:[%s293 + $0x38] sm:$0xff] %v6060
        %6154 = vst [vmem:[%s293 + $0x40] sm:$0xff] %v5724
        %6155 = vst [vmem:[%s293 + $0x48] sm:$0xff] %v6063
        %6156 = vst [vmem:[%s293 + $0x50] sm:$0xff] %v5727
        %6157 = vst [vmem:[%s293 + $0x58] sm:$0xff] %v6066
        %6158 = vst [vmem:[%s293 + $0x60] sm:$0xff] %v5730
        %6159 = vst [vmem:[%s293 + $0x68] sm:$0xff] %v6069
        %6160 = vst [vmem:[%s293 + $0x70] sm:$0xff] %v5733
        %6161 = vst [vmem:[%s293 + $0x78] sm:$0xff] %v6072
        %6162 = vst [vmem:[%s293 + $0x80] sm:$0xff] %v5736
        %6163 = vst [vmem:[%s293 + $0x88] sm:$0xff] %v6075
        %6164 = vst [vmem:[%s293 + $0x90] sm:$0xff] %v5739
        %6165 = vst [vmem:[%s293 + $0x98] sm:$0xff] %v6078
        %6166 = vst [vmem:[%s293 + $0xa0] sm:$0xff] %v5742
        %6167 = vst [vmem:[%s293 + $0xa8] sm:$0xff] %v6081
        %6168 = vst [vmem:[%s293 + $0xb0] sm:$0xff] %v5745
        %6169 = vst [vmem:[%s293 + $0xb8] sm:$0xff] %v6084
        %6170 = vst [vmem:[%s293 + $0xc0] sm:$0xff] %v5748
        %6171 = vst [vmem:[%s293 + $0xc8] sm:$0xff] %v6087
        %6172 = vst [vmem:[%s293 + $0xd0] sm:$0xff] %v5751
        %6173 = vst [vmem:[%s293 + $0xd8] sm:$0xff] %v6090
        %6174 = vst [vmem:[%s293 + $0xe0] sm:$0xff] %v5754
        %6175 = vst [vmem:[%s293 + $0xe8] sm:$0xff] %v6093
        %6176 = vst [vmem:[%s293 + $0xf0] sm:$0xff] %v5757
        %6177 = vst [vmem:[%s293 + $0xf8] sm:$0xff] %v6096
        %6178 = vst [vmem:[%s293 + $0x100] sm:$0xff] %v5760
        %6179 = vst [vmem:[%s293 + $0x108] sm:$0xff] %v6099
        %6180 = vst [vmem:[%s293 + $0x110] sm:$0xff] %v5763
        %6181 = vst [vmem:[%s293 + $0x118] sm:$0xff] %v6102
        %6182 = vst [vmem:[%s293 + $0x120] sm:$0xff] %v5766
        %6183 = vst [vmem:[%s293 + $0x128] sm:$0xff] %v6105
        %6184 = vst [vmem:[%s293 + $0x130] sm:$0xff] %v5769
        %6185 = vst [vmem:[%s293 + $0x138] sm:$0xff] %v6108
        %6186 = vst [vmem:[%s293 + $0x140] sm:$0xff] %v5772
        %6187 = vst [vmem:[%s293 + $0x148] sm:$0xff] %v6111
        %6188 = vst [vmem:[%s293 + $0x150] sm:$0xff] %v5775
        %6189 = vst [vmem:[%s293 + $0x158] sm:$0xff] %v6114
        %6190 = vst [vmem:[%s293 + $0x160] sm:$0xff] %v5778
        %6191 = vst [vmem:[%s293 + $0x168] sm:$0xff] %v6117
        %6192 = vst [vmem:[%s293 + $0x170] sm:$0xff] %v5781
        %6193 = vst [vmem:[%s293 + $0x178] sm:$0xff] %v6120
        %6194 = vst [vmem:[%s293 + $0x180] sm:$0xff] %v5784
        %6195 = vst [vmem:[%s293 + $0x188] sm:$0xff] %v6123
        %6196 = vst [vmem:[%s293 + $0x190] sm:$0xff] %v5787
        %6197 = vst [vmem:[%s293 + $0x198] sm:$0xff] %v6126
        %6198 = vst [vmem:[%s293 + $0x1a0] sm:$0xff] %v5790
        %6199 = vst [vmem:[%s293 + $0x1a8] sm:$0xff] %v6129
        %6200 = vst [vmem:[%s293 + $0x1b0] sm:$0xff] %v5793
        %6201 = vst [vmem:[%s293 + $0x1b8] sm:$0xff] %v6132
        %6202 = vst [vmem:[%s293 + $0x1c0] sm:$0xff] %v5796
        %6203 = vst [vmem:[%s293 + $0x1c8] sm:$0xff] %v6135
        %6204 = vst [vmem:[%s293 + $0x1d0] sm:$0xff] %v5799
        %6205 = vst [vmem:[%s293 + $0x1d8] sm:$0xff] %v6138
        %6206 = vst [vmem:[%s293 + $0x1e0] sm:$0xff] %v5802
        %6207 = vst [vmem:[%s293 + $0x1e8] sm:$0xff] %v6141
        %6208 = vst [vmem:[%s293 + $0x1f0] sm:$0xff] %v5805
        %6209 = vst [vmem:[%s293 + $0x1f8] sm:$0xff] %v6144
        %s6210 = sand.u32 %s142, 1
        %s6211 = scalar_lea.sflag [#allocation4], %s6210
        %s6212 = sand.u32 %s142, 1
        %s6213 = smul.addr %s6212, 512
        %s6214 = scalar_lea.vmem [#allocation10], %s6213
        // Predicated region
        $region57: #{tpu_custom_call.1} parent=39 // pred_check
          %p6215 = pneg %p152
        $region58: #{tpu_custom_call.1} parent=39 // pred_check_branch
          %6217 = sbr.rel (%p6215) target = $region60
        $region59: #{tpu_custom_call.1} parent=39 // pred_region
          %s6218 = smul.u32 32, %s24
          %6220 = vsyncadd %s6211, 0
          %s6221 = smul.addr %s6218, 2
          %s6222 = smul.addr %s6221, 8
          %s6223 = scalar_lea.hbm %s5, %s6222
          %s6224 = sshll.u32 %s6214, 4
          %s6225 = int_to_ptr.vmem [resolvable:$true] %s6224
          %s6226 = sshll.u32 %s6223, 4
          %s6227 = int_to_ptr.hbm [resolvable:$true] %s6226
          %6232 = dma.vmem_to_hbm [thread:$0]  %s6225, 8192, %s6227, %s6211, 256, 256, 16
        $region60: #{tpu_custom_call.1} parent=39 // pred_fallthru
          _
      $region40: #{tpu_custom_call.1} parent=5 // pred_fallthru
        _
      %p6233 = scmp.le.s32.totalorder 2, %s19
      // Predicated region
      $region61: #{tpu_custom_call.1} parent=5 // pred_check
        %p6234 = pneg %p6233
      $region62: #{tpu_custom_call.1} parent=5 // pred_check_branch
        %6236 = sbr.rel (%p6234) target = $region64
      $region63: #{tpu_custom_call.1} parent=5 // pred_region
        %s6237 = ssub.s32 %s19, 2
        // Predicated region
        $region65: #{tpu_custom_call.1} parent=63 // pred_check
          %p6238 = pneg %p158
        $region66: #{tpu_custom_call.1} parent=63 // pred_check_branch
          %6240 = sbr.rel (%p6238) target = $region68
        $region67: #{tpu_custom_call.1} parent=63 // pred_region
          %s6241 = sand.u32 %s143, 1
          %s6242 = scalar_lea.sflag [#allocation4], %s6241
          %s6243 = sand.u32 %s143, 1
          %s6244 = smul.addr %s6243, 512
          %s6245 = scalar_lea.vmem [#allocation10], %s6244
          %6247 = dma.done %s6242, 8192
        $region68: #{tpu_custom_call.1} parent=63 // pred_fallthru
          _
      $region64: #{tpu_custom_call.1} parent=5 // pred_fallthru
        _
    $region6: #{tpu_custom_call.1} parent=1 // loop_footer
      %s23 = sadd.s32 1, %s19
    $region7: #{tpu_custom_call.1} parent=1 // loop_footer_branch
      %18 = sbr.rel target = $region3
    $region8: #{tpu_custom_call.1} parent=1 // loop_exit
      _
    %6248 = vsyncpa [#allocation3], 1
    %s6249 = scalar_lea.sflag [#allocation3], 1
    %6250 = vsyncpa %s6249, 1
    %6251 = vsyncpa [#allocation6], 1
    %6252 = vsyncpa [#allocation9], 1
    %6253 = vsyncpa [#allocation4], 1
    %s6254 = scalar_lea.sflag [#allocation4], 1
    %6255 = vsyncpa %s6254, 1

</llo_original>
